<compile_context>
chip_gen: v5e
topology: v5e:2x2
jax: 0.10.0
libtpu: 0.0.40
codegen_flags: <defaults>
</compile_context>

<pallas_src>
import functools

import jax
import jax.numpy as jnp
from jax.experimental import pallas as pl
from jax.experimental.pallas import tpu as pltpu


_LN_EPS = 1e-5  # torch.nn.LayerNorm default


# ------------------------------- the kernel ---------------------------------

def _mlp_n_kernel(num_layers, x_ref, *refs):
    """Fused [Linear -> LayerNorm -> ReLU] * num_layers on one batch tile.

    refs = (w0, b0, g0, be0, w1, b1, g1, be1, ..., out_ref)
      w_l            : [D_l, D_{l+1}]  bf16, resident in VMEM across grid steps
      b_l, g_l, be_l : [1, D_{l+1}]    f32,  resident in VMEM across grid steps
    """
    out_ref = refs[-1]
    p = refs[:-1]

    h = x_ref[...]                                            # [TB, D0] bf16
    for l in range(num_layers):
        w = p[4 * l][...]                                     # [D_l, D_{l+1}] bf16
        b = p[4 * l + 1][...]                                 # [1, D_{l+1}] f32
        g = p[4 * l + 2][...]
        be = p[4 * l + 3][...]

        # Linear: bf16 x bf16 operands, f32 MXU accumulation.
        z = jnp.dot(h, w, preferred_element_type=jnp.float32) + b

        # LayerNorm over features. var = E[z^2] - mu^2 (avoids materialising (z-mu)
        # just for the variance); rsqrt goes to the EUP slot (≈ free); the per-row
        # shift (-mu*inv) is folded so normalisation is one mul + one broadcast sub.
        mu = jnp.mean(z, axis=-1, keepdims=True)                      # [TB, 1]
        var = jnp.mean(z * z, axis=-1, keepdims=True) - mu * mu       # [TB, 1]
        inv = jax.lax.rsqrt(jnp.maximum(var, 0.0) + _LN_EPS)          # EUP, [TB, 1]
        z = (z * inv - mu * inv) * g + be

        # ReLU; carry the inter-layer activation in bf16.
        h = jnp.maximum(z, 0.0).astype(jnp.bfloat16)

    out_ref[...] = h.astype(out_ref.dtype)


# ------------------------------- tiling helpers -------------------------------

def _choose_block_b(B, max_block=512, target_steps=4):
    """Batch tile: multiple of 8 sublanes; prefer (a) zero padded rows, (b) MXU/lane
    friendly multiples of 128, (c) >= target_steps grid steps so the BlockSpec
    pipeline can hide the activation DMA, (d) an even step count (v7x megacore),
    (e) the largest remaining tile."""
    b8 = ((B + 7) // 8) * 8
    hi = min(max_block, b8)
    lo = min(64, hi)
    cands = range(lo, hi + 1, 8)

    def score(tb):
        steps = -(-b8 // tb)                   # cdiv
        pad = steps * tb - B                   # padded rows
        return (
            -pad,                              # fewest wasted rows
            tb % 128 == 0,                     # lane / MXU friendly
            min(steps, target_steps),          # pipeline depth (capped)
            steps % 2 == 0,                    # even split across 2 TCs (v7x)
            tb,                                # then biggest tile
        )

    return max(cands, key=score)


def _vmem_limit_bytes(tb, d0_pad, d_out, flat_params, out_itemsize, single_buffer):
    """Explicit VMEM budget from the actual shapes, capped at ~3/4 physical VMEM."""
    n_param_buf = 1 if single_buffer else 2
    need = 2 * tb * d0_pad * 2                      # double-buffered bf16 x tile
    need += 2 * tb * d_out * out_itemsize           # double-buffered out tile
    for arr in flat_params:
        need += n_param_buf * arr.size * arr.dtype.itemsize
    widest = max(arr.shape[-1] for arr in flat_params)
    need += 6 * tb * widest * 4                     # f32 LN intermediates headroom
    try:
        cap = pltpu.get_tpu_info().vmem_capacity_bytes
    except Exception:
        cap = 64 * 1024 * 1024                      # conservative (v7x-sized) default
    cap = (3 * cap) // 4                            # leave room for compiler scratch
    return min(cap, max(32 * 1024 * 1024, int(need * 1.25) + (4 << 20)))


# ------------------------------- wrapper -------------------------------------

def mlp_n_forward(x, params, *, max_block_b=512, out_dtype=jnp.bfloat16):
    """x: [B, fcn_dim[0]]; params: list of (w, b, gamma, beta) per layer."""
    B, D0 = x.shape
    num_layers = len(params)
    d_out = params[-1][0].shape[1]

    # Batch tile: no padded rows when possible, enough grid steps to pipeline.
    tb = _choose_block_b(B, max_block=max_block_b)
    b_pad = pl.cdiv(B, tb) * tb

    # Lane-dense K for the first matmul: pad input features (and w0 rows) to 128.
    d0_pad = pl.cdiv(D0, 128) * 128

    # Stream activations in bf16 (halves HBM traffic vs f32).
    x = x.astype(jnp.bfloat16)
    if b_pad != B or d0_pad != D0:
        x = jnp.pad(x, ((0, b_pad - B), (0, d0_pad - D0)))

    flat_params = []
    for li, (w, b, g, be) in enumerate(params):
        if li == 0 and d0_pad != D0:
            w = jnp.pad(w, ((0, d0_pad - D0), (0, 0)))  # zero rows: math unchanged
        flat_params.extend((w, b, g, be))

    kernel = functools.partial(_mlp_n_kernel, num_layers)
    x_spec = pl.BlockSpec((tb, d0_pad), lambda i: (i, 0))
    out_spec = pl.BlockSpec((tb, d_out), lambda i: (i, 0))
    out_itemsize = jnp.dtype(out_dtype).itemsize

    def build(single_buffer_params):
        pkw = {"pipeline_mode": pl.Buffered(1)} if single_buffer_params else {}
        param_specs = [
            pl.BlockSpec(arr.shape, lambda i, _nd=arr.ndim: (0,) * _nd, **pkw)
            for arr in flat_params
        ]
        return pl.pallas_call(
            kernel,
            out_shape=jax.ShapeDtypeStruct((b_pad, d_out), out_dtype),
            grid=(b_pad // tb,),
            in_specs=[x_spec] + param_specs,
            out_specs=out_spec,
            compiler_params=pltpu.CompilerParams(
                dimension_semantics=("parallel",),      # batch tiles across TCs (v7x)
                vmem_limit_bytes=_vmem_limit_bytes(
                    tb, d0_pad, d_out, flat_params, out_itemsize,
                    single_buffer=single_buffer_params),
            ),
        )

    # TODO(synk): if single-buffered resident params ever exceed the VMEM cap (very
    # wide fcn_dim on v7x's 64 MiB), split the layer stack across two pallas_calls
    # (layer groups) instead of letting the compiler shrink tiles.
    try:
        out = jax.block_until_ready(build(True)(x, *flat_params))
    except Exception:
        # pl.Buffered(1) (single-buffered resident params) unsupported by this jax
        # version -> fall back to default double-buffered param specs.
        out = build(False)(x, *flat_params)

    return out[:B]


# --------------------------- pure-JAX reference -------------------------------

def mlp_n_reference(x, params):
    """f32-carry reference (same bf16-stored weights, f32 math throughout)."""
    h = x.astype(jnp.float32)
    for (w, b, g, be) in params:
        z = jnp.dot(h, w.astype(jnp.float32)) + b
        mu = jnp.mean(z, axis=-1, keepdims=True)
        var = jnp.mean((z - mu) ** 2, axis=-1, keepdims=True)
        z = (z - mu) * jax.lax.rsqrt(var + _LN_EPS) * g + be
        h = jnp.maximum(z, 0.0)
    return h


# ------------------------------ param setup ----------------------------------

def make_params(key, fcn_dim):
    """Per layer: Linear(fcn_dim[i], fcn_dim[i+1]) + LayerNorm(fcn_dim[i+1])."""
    params = []
    keys = jax.random.split(key, 4 * (len(fcn_dim) - 1))
    for i in range(len(fcn_dim) - 1):
        d_in, d_out = fcn_dim[i], fcn_dim[i + 1]
        k0, k1, k2, k3 = keys[4 * i: 4 * i + 4]
        w = (0.1 * jax.random.normal(k0, (d_in, d_out))).astype(jnp.bfloat16)
        b = (0.1 * jax.random.normal(k1, (1, d_out))).astype(jnp.float32)
        # LayerNorm affine (randomised around the default init so the test exercises it)
        g = (1.0 + 0.1 * jax.random.normal(k2, (1, d_out))).astype(jnp.float32)
        be = (0.1 * jax.random.normal(k3, (1, d_out))).astype(jnp.float32)
        params.append((w, b, g, be))
    return params


# ---------------------------------- main --------------------------------------

if __name__ == "__main__":
    # MLP_N([64, 256, 128]) on a 384-row batch: exercises the D0 64->128 lane pad
    # and gives a 3-step, zero-padding batch grid (tb=128).
    B = 384
    fcn_dim = [64, 256, 128]

    key = jax.random.PRNGKey(0)
    k_par, k_x = jax.random.split(key, 2)

    params = make_params(k_par, fcn_dim)
    x = (0.5 * jax.random.normal(k_x, (B, fcn_dim[0]))).astype(jnp.float32)

    out = mlp_n_forward(x, params)
    out = jax.block_until_ready(out)

    ref = mlp_n_reference(x, params)

    assert out.shape == (B, fcn_dim[-1])
    out_f32 = out.astype(jnp.float32)
    assert bool(jnp.all(jnp.isfinite(out_f32)))
    assert bool(jnp.allclose(out_f32, ref, atol=4e-2, rtol=4e-2))
    print("KERNEL_OK")
</pallas_src>

<mosaic_0001>
module attributes {stable_mosaic.version = 11 : i64} {
  func.func @_mlp_n_kernel(%arg0: i32, %arg1: memref<128x128xbf16, #tpu.memory_space<vmem>>, %arg2: memref<128x256xbf16, #tpu.memory_space<vmem>>, %arg3: memref<1x256xf32, #tpu.memory_space<vmem>>, %arg4: memref<1x256xf32, #tpu.memory_space<vmem>>, %arg5: memref<1x256xf32, #tpu.memory_space<vmem>>, %arg6: memref<256x128xbf16, #tpu.memory_space<vmem>>, %arg7: memref<1x128xf32, #tpu.memory_space<vmem>>, %arg8: memref<1x128xf32, #tpu.memory_space<vmem>>, %arg9: memref<1x128xf32, #tpu.memory_space<vmem>>, %arg10: memref<128x128xbf16, #tpu.memory_space<vmem>>) attributes {dimension_semantics = [#tpu.dimension_semantics<parallel>], iteration_bounds = array<i64: 3>, scalar_prefetch = 0 : i64, scratch_operands = 0 : i64, tpu.core_type = #tpu.core_type<tc>, window_params = [{transform_indices = @transform_0, window_bounds = array<i64: 128, 128>}, {pipeline_mode = #tpu.pipeline_mode<synchronous>, transform_indices = @transform_1, window_bounds = array<i64: 128, 256>}, {pipeline_mode = #tpu.pipeline_mode<synchronous>, transform_indices = @transform_2, window_bounds = array<i64: 1, 256>}, {pipeline_mode = #tpu.pipeline_mode<synchronous>, transform_indices = @transform_3, window_bounds = array<i64: 1, 256>}, {pipeline_mode = #tpu.pipeline_mode<synchronous>, transform_indices = @transform_4, window_bounds = array<i64: 1, 256>}, {pipeline_mode = #tpu.pipeline_mode<synchronous>, transform_indices = @transform_5, window_bounds = array<i64: 256, 128>}, {pipeline_mode = #tpu.pipeline_mode<synchronous>, transform_indices = @transform_6, window_bounds = array<i64: 1, 128>}, {pipeline_mode = #tpu.pipeline_mode<synchronous>, transform_indices = @transform_7, window_bounds = array<i64: 1, 128>}, {pipeline_mode = #tpu.pipeline_mode<synchronous>, transform_indices = @transform_8, window_bounds = array<i64: 1, 128>}, {transform_indices = @transform_9, window_bounds = array<i64: 128, 128>}]} {
    %c0 = arith.constant 0 : index
    %c0_0 = arith.constant 0 : index
    %0 = vector.load %arg1[%c0, %c0_0] : memref<128x128xbf16, #tpu.memory_space<vmem>>, vector<128x128xbf16>
    %c0_1 = arith.constant 0 : index
    %c0_2 = arith.constant 0 : index
    %1 = vector.load %arg2[%c0_1, %c0_2] : memref<128x256xbf16, #tpu.memory_space<vmem>>, vector<128x256xbf16>
    %c0_3 = arith.constant 0 : index
    %c0_4 = arith.constant 0 : index
    %2 = vector.load %arg3[%c0_3, %c0_4] : memref<1x256xf32, #tpu.memory_space<vmem>>, vector<1x256xf32>
    %c0_5 = arith.constant 0 : index
    %c0_6 = arith.constant 0 : index
    %3 = vector.load %arg4[%c0_5, %c0_6] : memref<1x256xf32, #tpu.memory_space<vmem>>, vector<1x256xf32>
    %c0_7 = arith.constant 0 : index
    %c0_8 = arith.constant 0 : index
    %4 = vector.load %arg5[%c0_7, %c0_8] : memref<1x256xf32, #tpu.memory_space<vmem>>, vector<1x256xf32>
    %cst = arith.constant dense<0.000000e+00> : vector<128x256xf32>
    %5 = tpu.matmul %0, %1, %cst {dimension_numbers = #tpu.dot_dimension_numbers<[1], [0], [0], [1], [0, 0, 1, 1], [], []>} : vector<128x128xbf16>, vector<128x256xbf16>, vector<128x256xf32> -> vector<128x256xf32>
    %6 = vector.broadcast %2 : vector<1x256xf32> to vector<128x256xf32>
    %7 = arith.addf %5, %6 : vector<128x256xf32>
    %cst_9 = arith.constant dense<0.000000e+00> : vector<128xf32>
    %8 = vector.multi_reduction <add>, %7, %cst_9 [1] : vector<128x256xf32> to vector<128xf32>
    %9 = vector.shape_cast %8 : vector<128xf32> to vector<128x1xf32>
    %cst_10 = arith.constant 2.560000e+02 : f32
    %10 = vector.broadcast %cst_10 : f32 to vector<128x1xf32>
    %11 = arith.divf %9, %10 : vector<128x1xf32>
    %12 = arith.mulf %7, %7 : vector<128x256xf32>
    %cst_11 = arith.constant dense<0.000000e+00> : vector<128xf32>
    %13 = vector.multi_reduction <add>, %12, %cst_11 [1] : vector<128x256xf32> to vector<128xf32>
    %14 = vector.shape_cast %13 : vector<128xf32> to vector<128x1xf32>
    %cst_12 = arith.constant 2.560000e+02 : f32
    %15 = vector.broadcast %cst_12 : f32 to vector<128x1xf32>
    %16 = arith.divf %14, %15 : vector<128x1xf32>
    %17 = arith.mulf %11, %11 : vector<128x1xf32>
    %18 = arith.subf %16, %17 : vector<128x1xf32>
    %cst_13 = arith.constant 0.000000e+00 : f32
    %19 = vector.broadcast %cst_13 : f32 to vector<128x1xf32>
    %20 = arith.maximumf %18, %19 : vector<128x1xf32>
    %cst_14 = arith.constant 9.99999974E-6 : f32
    %21 = vector.broadcast %cst_14 : f32 to vector<128x1xf32>
    %22 = arith.addf %20, %21 : vector<128x1xf32>
    %23 = math.rsqrt %22 : vector<128x1xf32>
    %24 = vector.broadcast %23 : vector<128x1xf32> to vector<128x256xf32>
    %25 = arith.mulf %7, %24 : vector<128x256xf32>
    %26 = arith.mulf %11, %23 : vector<128x1xf32>
    %27 = vector.broadcast %26 : vector<128x1xf32> to vector<128x256xf32>
    %28 = arith.subf %25, %27 : vector<128x256xf32>
    %29 = vector.broadcast %3 : vector<1x256xf32> to vector<128x256xf32>
    %30 = arith.mulf %28, %29 : vector<128x256xf32>
    %31 = vector.broadcast %4 : vector<1x256xf32> to vector<128x256xf32>
    %32 = arith.addf %30, %31 : vector<128x256xf32>
    %cst_15 = arith.constant 0.000000e+00 : f32
    %33 = vector.broadcast %cst_15 : f32 to vector<128x256xf32>
    %34 = arith.maximumf %32, %33 : vector<128x256xf32>
    %35 = arith.truncf %34 : vector<128x256xf32> to vector<128x256xbf16>
    %c0_16 = arith.constant 0 : index
    %c0_17 = arith.constant 0 : index
    %36 = vector.load %arg6[%c0_16, %c0_17] : memref<256x128xbf16, #tpu.memory_space<vmem>>, vector<256x128xbf16>
    %c0_18 = arith.constant 0 : index
    %c0_19 = arith.constant 0 : index
    %37 = vector.load %arg7[%c0_18, %c0_19] : memref<1x128xf32, #tpu.memory_space<vmem>>, vector<1x128xf32>
    %c0_20 = arith.constant 0 : index
    %c0_21 = arith.constant 0 : index
    %38 = vector.load %arg8[%c0_20, %c0_21] : memref<1x128xf32, #tpu.memory_space<vmem>>, vector<1x128xf32>
    %c0_22 = arith.constant 0 : index
    %c0_23 = arith.constant 0 : index
    %39 = vector.load %arg9[%c0_22, %c0_23] : memref<1x128xf32, #tpu.memory_space<vmem>>, vector<1x128xf32>
    %cst_24 = arith.constant dense<0.000000e+00> : vector<128x128xf32>
    %40 = tpu.matmul %35, %36, %cst_24 {dimension_numbers = #tpu.dot_dimension_numbers<[1], [0], [0], [1], [0, 0, 1, 1], [], []>} : vector<128x256xbf16>, vector<256x128xbf16>, vector<128x128xf32> -> vector<128x128xf32>
    %41 = vector.broadcast %37 : vector<1x128xf32> to vector<128x128xf32>
    %42 = arith.addf %40, %41 : vector<128x128xf32>
    %cst_25 = arith.constant dense<0.000000e+00> : vector<128xf32>
    %43 = vector.multi_reduction <add>, %42, %cst_25 [1] : vector<128x128xf32> to vector<128xf32>
    %44 = vector.shape_cast %43 : vector<128xf32> to vector<128x1xf32>
    %cst_26 = arith.constant 1.280000e+02 : f32
    %45 = vector.broadcast %cst_26 : f32 to vector<128x1xf32>
    %46 = arith.divf %44, %45 : vector<128x1xf32>
    %47 = arith.mulf %42, %42 : vector<128x128xf32>
    %cst_27 = arith.constant dense<0.000000e+00> : vector<128xf32>
    %48 = vector.multi_reduction <add>, %47, %cst_27 [1] : vector<128x128xf32> to vector<128xf32>
    %49 = vector.shape_cast %48 : vector<128xf32> to vector<128x1xf32>
    %cst_28 = arith.constant 1.280000e+02 : f32
    %50 = vector.broadcast %cst_28 : f32 to vector<128x1xf32>
    %51 = arith.divf %49, %50 : vector<128x1xf32>
    %52 = arith.mulf %46, %46 : vector<128x1xf32>
    %53 = arith.subf %51, %52 : vector<128x1xf32>
    %cst_29 = arith.constant 0.000000e+00 : f32
    %54 = vector.broadcast %cst_29 : f32 to vector<128x1xf32>
    %55 = arith.maximumf %53, %54 : vector<128x1xf32>
    %cst_30 = arith.constant 9.99999974E-6 : f32
    %56 = vector.broadcast %cst_30 : f32 to vector<128x1xf32>
    %57 = arith.addf %55, %56 : vector<128x1xf32>
    %58 = math.rsqrt %57 : vector<128x1xf32>
    %59 = vector.broadcast %58 : vector<128x1xf32> to vector<128x128xf32>
    %60 = arith.mulf %42, %59 : vector<128x128xf32>
    %61 = arith.mulf %46, %58 : vector<128x1xf32>
    %62 = vector.broadcast %61 : vector<128x1xf32> to vector<128x128xf32>
    %63 = arith.subf %60, %62 : vector<128x128xf32>
    %64 = vector.broadcast %38 : vector<1x128xf32> to vector<128x128xf32>
    %65 = arith.mulf %63, %64 : vector<128x128xf32>
    %66 = vector.broadcast %39 : vector<1x128xf32> to vector<128x128xf32>
    %67 = arith.addf %65, %66 : vector<128x128xf32>
    %cst_31 = arith.constant 0.000000e+00 : f32
    %68 = vector.broadcast %cst_31 : f32 to vector<128x128xf32>
    %69 = arith.maximumf %67, %68 : vector<128x128xf32>
    %70 = arith.truncf %69 : vector<128x128xf32> to vector<128x128xbf16>
    %c0_32 = arith.constant 0 : index
    %c0_33 = arith.constant 0 : index
    %71 = vector.load %arg10[%c0_32, %c0_33] : memref<128x128xbf16, #tpu.memory_space<vmem>>, vector<128x128xbf16>
    tpu.vector_store %arg10[%c0_32, %c0_33], %70 {strides = array<i32>} : memref<128x128xbf16, #tpu.memory_space<vmem>>, vector<128x128xbf16>,
    return
  }
  func.func @transform_0(%arg0: i32) -> (i32, i32) {
    %c0_i32 = arith.constant 0 : i32
    %c0_i32_0 = arith.constant 0 : i32
    return %arg0, %c0_i32 : i32, i32
  }
  func.func @transform_1(%arg0: i32) -> (i32, i32) {
    %c0_i32 = arith.constant 0 : i32
    %c0_i32_0 = arith.constant 0 : i32
    %c0_i32_1 = arith.constant 0 : i32
    return %c0_i32, %c0_i32_0 : i32, i32
  }
  func.func @transform_2(%arg0: i32) -> (i32, i32) {
    %c0_i32 = arith.constant 0 : i32
    %c0_i32_0 = arith.constant 0 : i32
    %c0_i32_1 = arith.constant 0 : i32
    return %c0_i32, %c0_i32_0 : i32, i32
  }
  func.func @transform_3(%arg0: i32) -> (i32, i32) {
    %c0_i32 = arith.constant 0 : i32
    %c0_i32_0 = arith.constant 0 : i32
    %c0_i32_1 = arith.constant 0 : i32
    return %c0_i32, %c0_i32_0 : i32, i32
  }
  func.func @transform_4(%arg0: i32) -> (i32, i32) {
    %c0_i32 = arith.constant 0 : i32
    %c0_i32_0 = arith.constant 0 : i32
    %c0_i32_1 = arith.constant 0 : i32
    return %c0_i32, %c0_i32_0 : i32, i32
  }
  func.func @transform_5(%arg0: i32) -> (i32, i32) {
    %c0_i32 = arith.constant 0 : i32
    %c0_i32_0 = arith.constant 0 : i32
    %c0_i32_1 = arith.constant 0 : i32
    return %c0_i32, %c0_i32_0 : i32, i32
  }
  func.func @transform_6(%arg0: i32) -> (i32, i32) {
    %c0_i32 = arith.constant 0 : i32
    %c0_i32_0 = arith.constant 0 : i32
    %c0_i32_1 = arith.constant 0 : i32
    return %c0_i32, %c0_i32_0 : i32, i32
  }
  func.func @transform_7(%arg0: i32) -> (i32, i32) {
    %c0_i32 = arith.constant 0 : i32
    %c0_i32_0 = arith.constant 0 : i32
    %c0_i32_1 = arith.constant 0 : i32
    return %c0_i32, %c0_i32_0 : i32, i32
  }
  func.func @transform_8(%arg0: i32) -> (i32, i32) {
    %c0_i32 = arith.constant 0 : i32
    %c0_i32_0 = arith.constant 0 : i32
    %c0_i32_1 = arith.constant 0 : i32
    return %c0_i32, %c0_i32_0 : i32, i32
  }
  func.func @transform_9(%arg0: i32) -> (i32, i32) {
    %c0_i32 = arith.constant 0 : i32
    %c0_i32_0 = arith.constant 0 : i32
    return %arg0, %c0_i32 : i32, i32
  }
}

module attributes {stable_mosaic.version = 11 : i64} {
  func.func @_mlp_n_kernel(%arg0: i32, %arg1: memref<128x128xbf16, #tpu.memory_space<vmem>>, %arg2: memref<128x256xbf16, #tpu.memory_space<vmem>>, %arg3: memref<1x256xf32, #tpu.memory_space<vmem>>, %arg4: memref<1x256xf32, #tpu.memory_space<vmem>>, %arg5: memref<1x256xf32, #tpu.memory_space<vmem>>, %arg6: memref<256x128xbf16, #tpu.memory_space<vmem>>, %arg7: memref<1x128xf32, #tpu.memory_space<vmem>>, %arg8: memref<1x128xf32, #tpu.memory_space<vmem>>, %arg9: memref<1x128xf32, #tpu.memory_space<vmem>>, %arg10: memref<128x128xbf16, #tpu.memory_space<vmem>>) attributes {dimension_semantics = [#tpu.dimension_semantics<parallel>], iteration_bounds = array<i64: 3>, scalar_prefetch = 0 : i64, scratch_operands = 0 : i64, tpu.core_type = #tpu.core_type<tc>, window_params = [{transform_indices = @transform_0, window_bounds = array<i64: 128, 128>}, {pipeline_mode = #tpu.pipeline_mode<synchronous>, transform_indices = @transform_1, window_bounds = array<i64: 128, 256>}, {pipeline_mode = #tpu.pipeline_mode<synchronous>, transform_indices = @transform_2, window_bounds = array<i64: 1, 256>}, {pipeline_mode = #tpu.pipeline_mode<synchronous>, transform_indices = @transform_3, window_bounds = array<i64: 1, 256>}, {pipeline_mode = #tpu.pipeline_mode<synchronous>, transform_indices = @transform_4, window_bounds = array<i64: 1, 256>}, {pipeline_mode = #tpu.pipeline_mode<synchronous>, transform_indices = @transform_5, window_bounds = array<i64: 256, 128>}, {pipeline_mode = #tpu.pipeline_mode<synchronous>, transform_indices = @transform_6, window_bounds = array<i64: 1, 128>}, {pipeline_mode = #tpu.pipeline_mode<synchronous>, transform_indices = @transform_7, window_bounds = array<i64: 1, 128>}, {pipeline_mode = #tpu.pipeline_mode<synchronous>, transform_indices = @transform_8, window_bounds = array<i64: 1, 128>}, {transform_indices = @transform_9, window_bounds = array<i64: 128, 128>}]} {
    %c0 = arith.constant 0 : index
    %c0_0 = arith.constant 0 : index
    %0 = vector.load %arg1[%c0, %c0_0] : memref<128x128xbf16, #tpu.memory_space<vmem>>, vector<128x128xbf16>
    %c0_1 = arith.constant 0 : index
    %c0_2 = arith.constant 0 : index
    %1 = vector.load %arg2[%c0_1, %c0_2] : memref<128x256xbf16, #tpu.memory_space<vmem>>, vector<128x256xbf16>
    %c0_3 = arith.constant 0 : index
    %c0_4 = arith.constant 0 : index
    %2 = vector.load %arg3[%c0_3, %c0_4] : memref<1x256xf32, #tpu.memory_space<vmem>>, vector<1x256xf32>
    %c0_5 = arith.constant 0 : index
    %c0_6 = arith.constant 0 : index
    %3 = vector.load %arg4[%c0_5, %c0_6] : memref<1x256xf32, #tpu.memory_space<vmem>>, vector<1x256xf32>
    %c0_7 = arith.constant 0 : index
    %c0_8 = arith.constant 0 : index
    %4 = vector.load %arg5[%c0_7, %c0_8] : memref<1x256xf32, #tpu.memory_space<vmem>>, vector<1x256xf32>
    %cst = arith.constant dense<0.000000e+00> : vector<128x256xf32>
    %5 = tpu.matmul %0, %1, %cst {dimension_numbers = #tpu.dot_dimension_numbers<[1], [0], [0], [1], [0, 0, 1, 1], [], []>} : vector<128x128xbf16>, vector<128x256xbf16>, vector<128x256xf32> -> vector<128x256xf32>
    %6 = vector.broadcast %2 : vector<1x256xf32> to vector<128x256xf32>
    %7 = arith.addf %5, %6 : vector<128x256xf32>
    %cst_9 = arith.constant dense<0.000000e+00> : vector<128xf32>
    %8 = vector.multi_reduction <add>, %7, %cst_9 [1] : vector<128x256xf32> to vector<128xf32>
    %9 = vector.shape_cast %8 : vector<128xf32> to vector<128x1xf32>
    %cst_10 = arith.constant 2.560000e+02 : f32
    %10 = vector.broadcast %cst_10 : f32 to vector<128x1xf32>
    %11 = arith.divf %9, %10 : vector<128x1xf32>
    %12 = arith.mulf %7, %7 : vector<128x256xf32>
    %cst_11 = arith.constant dense<0.000000e+00> : vector<128xf32>
    %13 = vector.multi_reduction <add>, %12, %cst_11 [1] : vector<128x256xf32> to vector<128xf32>
    %14 = vector.shape_cast %13 : vector<128xf32> to vector<128x1xf32>
    %cst_12 = arith.constant 2.560000e+02 : f32
    %15 = vector.broadcast %cst_12 : f32 to vector<128x1xf32>
    %16 = arith.divf %14, %15 : vector<128x1xf32>
    %17 = arith.mulf %11, %11 : vector<128x1xf32>
    %18 = arith.subf %16, %17 : vector<128x1xf32>
    %cst_13 = arith.constant 0.000000e+00 : f32
    %19 = vector.broadcast %cst_13 : f32 to vector<128x1xf32>
    %20 = arith.maximumf %18, %19 : vector<128x1xf32>
    %cst_14 = arith.constant 9.99999974E-6 : f32
    %21 = vector.broadcast %cst_14 : f32 to vector<128x1xf32>
    %22 = arith.addf %20, %21 : vector<128x1xf32>
    %23 = math.rsqrt %22 : vector<128x1xf32>
    %24 = vector.broadcast %23 : vector<128x1xf32> to vector<128x256xf32>
    %25 = arith.mulf %7, %24 : vector<128x256xf32>
    %26 = arith.mulf %11, %23 : vector<128x1xf32>
    %27 = vector.broadcast %26 : vector<128x1xf32> to vector<128x256xf32>
    %28 = arith.subf %25, %27 : vector<128x256xf32>
    %29 = vector.broadcast %3 : vector<1x256xf32> to vector<128x256xf32>
    %30 = arith.mulf %28, %29 : vector<128x256xf32>
    %31 = vector.broadcast %4 : vector<1x256xf32> to vector<128x256xf32>
    %32 = arith.addf %30, %31 : vector<128x256xf32>
    %cst_15 = arith.constant 0.000000e+00 : f32
    %33 = vector.broadcast %cst_15 : f32 to vector<128x256xf32>
    %34 = arith.maximumf %32, %33 : vector<128x256xf32>
    %35 = arith.truncf %34 : vector<128x256xf32> to vector<128x256xbf16>
    %c0_16 = arith.constant 0 : index
    %c0_17 = arith.constant 0 : index
    %36 = vector.load %arg6[%c0_16, %c0_17] : memref<256x128xbf16, #tpu.memory_space<vmem>>, vector<256x128xbf16>
    %c0_18 = arith.constant 0 : index
    %c0_19 = arith.constant 0 : index
    %37 = vector.load %arg7[%c0_18, %c0_19] : memref<1x128xf32, #tpu.memory_space<vmem>>, vector<1x128xf32>
    %c0_20 = arith.constant 0 : index
    %c0_21 = arith.constant 0 : index
    %38 = vector.load %arg8[%c0_20, %c0_21] : memref<1x128xf32, #tpu.memory_space<vmem>>, vector<1x128xf32>
    %c0_22 = arith.constant 0 : index
    %c0_23 = arith.constant 0 : index
    %39 = vector.load %arg9[%c0_22, %c0_23] : memref<1x128xf32, #tpu.memory_space<vmem>>, vector<1x128xf32>
    %cst_24 = arith.constant dense<0.000000e+00> : vector<128x128xf32>
    %40 = tpu.matmul %35, %36, %cst_24 {dimension_numbers = #tpu.dot_dimension_numbers<[1], [0], [0], [1], [0, 0, 1, 1], [], []>} : vector<128x256xbf16>, vector<256x128xbf16>, vector<128x128xf32> -> vector<128x128xf32>
    %41 = vector.broadcast %37 : vector<1x128xf32> to vector<128x128xf32>
    %42 = arith.addf %40, %41 : vector<128x128xf32>
    %cst_25 = arith.constant dense<0.000000e+00> : vector<128xf32>
    %43 = vector.multi_reduction <add>, %42, %cst_25 [1] : vector<128x128xf32> to vector<128xf32>
    %44 = vector.shape_cast %43 : vector<128xf32> to vector<128x1xf32>
    %cst_26 = arith.constant 1.280000e+02 : f32
    %45 = vector.broadcast %cst_26 : f32 to vector<128x1xf32>
    %46 = arith.divf %44, %45 : vector<128x1xf32>
    %47 = arith.mulf %42, %42 : vector<128x128xf32>
    %cst_27 = arith.constant dense<0.000000e+00> : vector<128xf32>
    %48 = vector.multi_reduction <add>, %47, %cst_27 [1] : vector<128x128xf32> to vector<128xf32>
    %49 = vector.shape_cast %48 : vector<128xf32> to vector<128x1xf32>
    %cst_28 = arith.constant 1.280000e+02 : f32
    %50 = vector.broadcast %cst_28 : f32 to vector<128x1xf32>
    %51 = arith.divf %49, %50 : vector<128x1xf32>
    %52 = arith.mulf %46, %46 : vector<128x1xf32>
    %53 = arith.subf %51, %52 : vector<128x1xf32>
    %cst_29 = arith.constant 0.000000e+00 : f32
    %54 = vector.broadcast %cst_29 : f32 to vector<128x1xf32>
    %55 = arith.maximumf %53, %54 : vector<128x1xf32>
    %cst_30 = arith.constant 9.99999974E-6 : f32
    %56 = vector.broadcast %cst_30 : f32 to vector<128x1xf32>
    %57 = arith.addf %55, %56 : vector<128x1xf32>
    %58 = math.rsqrt %57 : vector<128x1xf32>
    %59 = vector.broadcast %58 : vector<128x1xf32> to vector<128x128xf32>
    %60 = arith.mulf %42, %59 : vector<128x128xf32>
    %61 = arith.mulf %46, %58 : vector<128x1xf32>
    %62 = vector.broadcast %61 : vector<128x1xf32> to vector<128x128xf32>
    %63 = arith.subf %60, %62 : vector<128x128xf32>
    %64 = vector.broadcast %38 : vector<1x128xf32> to vector<128x128xf32>
    %65 = arith.mulf %63, %64 : vector<128x128xf32>
    %66 = vector.broadcast %39 : vector<1x128xf32> to vector<128x128xf32>
    %67 = arith.addf %65, %66 : vector<128x128xf32>
    %cst_31 = arith.constant 0.000000e+00 : f32
    %68 = vector.broadcast %cst_31 : f32 to vector<128x128xf32>
    %69 = arith.maximumf %67, %68 : vector<128x128xf32>
    %70 = arith.truncf %69 : vector<128x128xf32> to vector<128x128xbf16>
    %c0_32 = arith.constant 0 : index
    %c0_33 = arith.constant 0 : index
    %71 = vector.load %arg10[%c0_32, %c0_33] : memref<128x128xbf16, #tpu.memory_space<vmem>>, vector<128x128xbf16>
    tpu.vector_store %arg10[%c0_32, %c0_33], %70 {strides = array<i32>} : memref<128x128xbf16, #tpu.memory_space<vmem>>, vector<128x128xbf16>,
    return
  }
  func.func @transform_0(%arg0: i32) -> (i32, i32) {
    %c0_i32 = arith.constant 0 : i32
    %c0_i32_0 = arith.constant 0 : i32
    return %arg0, %c0_i32 : i32, i32
  }
  func.func @transform_1(%arg0: i32) -> (i32, i32) {
    %c0_i32 = arith.constant 0 : i32
    %c0_i32_0 = arith.constant 0 : i32
    %c0_i32_1 = arith.constant 0 : i32
    return %c0_i32, %c0_i32_0 : i32, i32
  }
  func.func @transform_2(%arg0: i32) -> (i32, i32) {
    %c0_i32 = arith.constant 0 : i32
    %c0_i32_0 = arith.constant 0 : i32
    %c0_i32_1 = arith.constant 0 : i32
    return %c0_i32, %c0_i32_0 : i32, i32
  }
  func.func @transform_3(%arg0: i32) -> (i32, i32) {
    %c0_i32 = arith.constant 0 : i32
    %c0_i32_0 = arith.constant 0 : i32
    %c0_i32_1 = arith.constant 0 : i32
    return %c0_i32, %c0_i32_0 : i32, i32
  }
  func.func @transform_4(%arg0: i32) -> (i32, i32) {
    %c0_i32 = arith.constant 0 : i32
    %c0_i32_0 = arith.constant 0 : i32
    %c0_i32_1 = arith.constant 0 : i32
    return %c0_i32, %c0_i32_0 : i32, i32
  }
  func.func @transform_5(%arg0: i32) -> (i32, i32) {
    %c0_i32 = arith.constant 0 : i32
    %c0_i32_0 = arith.constant 0 : i32
    %c0_i32_1 = arith.constant 0 : i32
    return %c0_i32, %c0_i32_0 : i32, i32
  }
  func.func @transform_6(%arg0: i32) -> (i32, i32) {
    %c0_i32 = arith.constant 0 : i32
    %c0_i32_0 = arith.constant 0 : i32
    %c0_i32_1 = arith.constant 0 : i32
    return %c0_i32, %c0_i32_0 : i32, i32
  }
  func.func @transform_7(%arg0: i32) -> (i32, i32) {
    %c0_i32 = arith.constant 0 : i32
    %c0_i32_0 = arith.constant 0 : i32
    %c0_i32_1 = arith.constant 0 : i32
    return %c0_i32, %c0_i32_0 : i32, i32
  }
  func.func @transform_8(%arg0: i32) -> (i32, i32) {
    %c0_i32 = arith.constant 0 : i32
    %c0_i32_0 = arith.constant 0 : i32
    %c0_i32_1 = arith.constant 0 : i32
    return %c0_i32, %c0_i32_0 : i32, i32
  }
  func.func @transform_9(%arg0: i32) -> (i32, i32) {
    %c0_i32 = arith.constant 0 : i32
    %c0_i32_0 = arith.constant 0 : i32
    return %arg0, %c0_i32 : i32, i32
  }
}

</mosaic_0001>

<llo_original>
// kernel: tpu_custom_call.1
$region0: #{tpu_custom_call.1}
  #allocation0 [shape = 'u32[]', space=smem, size = 0x4, offset = 0x4, fixed_abs, tag = 'smem constant byte address 0x4 - core index']
  #allocation1 [shape = 'u32[72,128]{1,0:T(1,128)}', space=vmem, size = 0x9000, scoped, tag = 'internal scratch']
  %s0 = inlined_call_operand.hbm [shape: bf16[384,128], index: 0, kind: input, shape index: {}]
  %s1 = inlined_call_operand.hbm [shape: bf16[128,256], index: 1, kind: input, shape index: {}]
  %s2 = inlined_call_operand.hbm [shape: f32[1,256], index: 2, kind: input, shape index: {}]
  %s3 = inlined_call_operand.vmem [shape: f32[1,256], index: 3, kind: input, shape index: {}]
  %s4 = inlined_call_operand.hbm [shape: f32[1,256], index: 4, kind: input, shape index: {}]
  %s5 = inlined_call_operand.hbm [shape: bf16[256,128], index: 5, kind: input, shape index: {}]
  %s6 = inlined_call_operand.vmem [shape: f32[1,128], index: 6, kind: input, shape index: {}]
  %s7 = inlined_call_operand.vmem [shape: f32[1,128], index: 7, kind: input, shape index: {}]
  %s8 = inlined_call_operand.vmem [shape: f32[1,128], index: 8, kind: input, shape index: {}]
  %s9 = inlined_call_operand.hbm [shape: bf16[384,128], index: 9, kind: output, shape index: {}]
  %s10 = sld [smem:[#allocation0]]
  $region89: #{tpu_custom_call.1} parent=0
    _
  %s12 = ssub.s32 1, %s10
  %s13 = scalar_select 0, %s12, %s10
  $region1: #{tpu_custom_call.1} parent=0
    #allocation2 [shape = 'u8[65536]{0}', space=vmem, size = 0x10000, scoped, tag = 'input window, operand 0']
    #allocation3 [shape = 's32[2]{0}', space=sflag, size = 0x8, scoped, tag = 'scoped memory for tpu_custom_call.1']
    #allocation4 [shape = 's32[2]{0}', space=sflag, size = 0x8, scoped, tag = 'scoped memory for tpu_custom_call.1']
    #allocation5 [shape = 'u8[65536]{0}', space=vmem, size = 0x10000, scoped, tag = 'input window, operand 1, single buffered']
    #allocation6 [shape = 's32[1]{0}', space=sflag, size = 0x4, scoped, tag = 'scoped memory for tpu_custom_call.1']
    #allocation7 [shape = 'u8[1024]{0}', space=vmem, size = 0x400, scoped, tag = 'input window, operand 2, single buffered']
    #allocation8 [shape = 'u8[1024]{0}', space=vmem, size = 0x400, scoped, tag = 'input window, operand 4, single buffered']
    #allocation9 [shape = 's32[1]{0}', space=sflag, size = 0x4, scoped, tag = 'scoped memory for tpu_custom_call.1']
    #allocation10 [shape = 'u8[65536]{0}', space=vmem, size = 0x10000, scoped, tag = 'input window, operand 5, single buffered']
    #allocation11 [shape = 'u8[65536]{0}', space=vmem, size = 0x10000, scoped, tag = 'output window, operand 0']
    %14 = vsyncpa [#allocation3], 0
    %s15 = scalar_lea.sflag [#allocation3], 1
    %16 = vsyncpa %s15, 0
    %17 = vsyncpa [#allocation6], 0
    %18 = vsyncpa [#allocation9], 0
    %19 = vsyncpa [#allocation4], 0
    %s20 = scalar_lea.sflag [#allocation4], 1
    %21 = vsyncpa %s20, 0
    loop: start=0, step=1, limit=5
    $region2: #{tpu_custom_call.1} parent=1 // loop_pre_header
      _
    $region3: #{tpu_custom_call.1} parent=1 // loop_header
      %s23 = sphi 0, %s27
      %p24 = scmp.ge.s32.totalorder %s23, 5
      %s33 = sphi 0, %s35
      %s36 = sphi 0, %s33
      %s37 = sphi 0, %s36
      %s53 = sphi 0, %s37
      %s57 = sphi 0, %s57
      %s59 = sphi 0, %s57
      %s60 = sphi 0, %s59
      %s74 = sphi 0, %s60
      %s78 = sphi 0, %s78
      %s80 = sphi 0, %s78
      %s81 = sphi 0, %s80
      %s95 = sphi 0, %s81
      %s99 = sphi 0, %s99
      %s101 = sphi 0, %s99
      %s102 = sphi 0, %s101
      %s116 = sphi 0, %s102
      %s120 = sphi 0, %s120
      %s122 = sphi 0, %s120
      %s123 = sphi 0, %s122
      %s137 = sphi 0, %s123
      %s141 = sphi 0, %s141
      %s143 = sphi 0, %s141
      %s144 = sphi 0, %s143
      %s158 = sphi 0, %s144
      %s162 = sphi 0, %s162
      %s164 = sphi 0, %s162
      %s165 = sphi 0, %s164
      %s179 = sphi 0, %s165
      %s183 = sphi 0, %s183
      %s185 = sphi 0, %s183
      %s186 = sphi 0, %s185
      %s200 = sphi 0, %s186
      %s204 = sphi 0, %s204
      %s206 = sphi 0, %s204
      %s207 = sphi 0, %s206
      %s221 = sphi 0, %s207
      %s227 = sphi 0, %s229
      %s230 = sphi 0, %s227
      %s231 = sphi 0, %s230
      %s247 = sphi 0, %s231
    $region4: #{tpu_custom_call.1} parent=1 // loop_header_branch
      %26 = sbr.rel (%p24) target = $region8
    $region5: #{tpu_custom_call.1} parent=1 // loop_body
      %s28 = ssub.s32 %s23, 1
      %s29 = ssub.s32 %s23, 2
      %s30 = sadd.s32 %s23, 1
      %s31 = ssub.s32 %s23, %s30
      %p32 = scmp.eq.s32.totalorder %s31, 0
      %s34 = sadd.s32 %s33, 1
      %s35 = scalar_select %p32, %s33, %s34
      %p38 = pneg %p32
      %p39 = scmp.eq.s32.totalorder %s23, 2
      %p40 = por %p38, %p39
      %p41 = scmp.ne.s32.totalorder %s33, %s36
      %p42 = scmp.eq.s32.totalorder %s23, 0
      %p43 = por %p41, %p42
      %p44 = scmp.ne.s32.totalorder %s33, %s36
      %p45 = scmp.eq.s32.totalorder %s28, 2
      %p46 = por %p44, %p45
      %p47 = scmp.ne.s32.totalorder %s36, %s37
      %p48 = scmp.eq.s32.totalorder %s28, 0
      %p49 = por %p47, %p48
      %p50 = scmp.ne.s32.totalorder %s36, %s37
      %p51 = scmp.eq.s32.totalorder %s29, 2
      %p52 = por %p50, %p51
      %p54 = scmp.ne.s32.totalorder %s37, %s53
      %p55 = scmp.eq.s32.totalorder %s29, 0
      %p56 = por %p54, %p55
      %s58 = sadd.s32 %s57, 1
      %p61 = scmp.eq.s32.totalorder %s23, 2
      %p62 = scmp.ne.s32.totalorder %s57, %s59
      %p63 = scmp.eq.s32.totalorder %s23, 0
      %p64 = por %p62, %p63
      %p65 = scmp.ne.s32.totalorder %s57, %s59
      %p66 = scmp.eq.s32.totalorder %s28, 2
      %p67 = por %p65, %p66
      %p68 = scmp.ne.s32.totalorder %s59, %s60
      %p69 = scmp.eq.s32.totalorder %s28, 0
      %p70 = por %p68, %p69
      %p71 = scmp.ne.s32.totalorder %s59, %s60
      %p72 = scmp.eq.s32.totalorder %s29, 2
      %p73 = por %p71, %p72
      %p75 = scmp.ne.s32.totalorder %s60, %s74
      %p76 = scmp.eq.s32.totalorder %s29, 0
      %p77 = por %p75, %p76
      %s79 = sadd.s32 %s78, 1
      %p82 = scmp.eq.s32.totalorder %s23, 2
      %p83 = scmp.ne.s32.totalorder %s78, %s80
      %p84 = scmp.eq.s32.totalorder %s23, 0
      %p85 = por %p83, %p84
      %p86 = scmp.ne.s32.totalorder %s78, %s80
      %p87 = scmp.eq.s32.totalorder %s28, 2
      %p88 = por %p86, %p87
      %p89 = scmp.ne.s32.totalorder %s80, %s81
      %p90 = scmp.eq.s32.totalorder %s28, 0
      %p91 = por %p89, %p90
      %p92 = scmp.ne.s32.totalorder %s80, %s81
      %p93 = scmp.eq.s32.totalorder %s29, 2
      %p94 = por %p92, %p93
      %p96 = scmp.ne.s32.totalorder %s81, %s95
      %p97 = scmp.eq.s32.totalorder %s29, 0
      %p98 = por %p96, %p97
      %s100 = sadd.s32 %s99, 1
      %p103 = scmp.eq.s32.totalorder %s23, 2
      %p104 = scmp.ne.s32.totalorder %s99, %s101
      %p105 = scmp.eq.s32.totalorder %s23, 0
      %p106 = por %p104, %p105
      %p107 = scmp.ne.s32.totalorder %s99, %s101
      %p108 = scmp.eq.s32.totalorder %s28, 2
      %p109 = por %p107, %p108
      %p110 = scmp.ne.s32.totalorder %s101, %s102
      %p111 = scmp.eq.s32.totalorder %s28, 0
      %p112 = por %p110, %p111
      %p113 = scmp.ne.s32.totalorder %s101, %s102
      %p114 = scmp.eq.s32.totalorder %s29, 2
      %p115 = por %p113, %p114
      %p117 = scmp.ne.s32.totalorder %s102, %s116
      %p118 = scmp.eq.s32.totalorder %s29, 0
      %p119 = por %p117, %p118
      %s121 = sadd.s32 %s120, 1
      %p124 = scmp.eq.s32.totalorder %s23, 2
      %p125 = scmp.ne.s32.totalorder %s120, %s122
      %p126 = scmp.eq.s32.totalorder %s23, 0
      %p127 = por %p125, %p126
      %p128 = scmp.ne.s32.totalorder %s120, %s122
      %p129 = scmp.eq.s32.totalorder %s28, 2
      %p130 = por %p128, %p129
      %p131 = scmp.ne.s32.totalorder %s122, %s123
      %p132 = scmp.eq.s32.totalorder %s28, 0
      %p133 = por %p131, %p132
      %p134 = scmp.ne.s32.totalorder %s122, %s123
      %p135 = scmp.eq.s32.totalorder %s29, 2
      %p136 = por %p134, %p135
      %p138 = scmp.ne.s32.totalorder %s123, %s137
      %p139 = scmp.eq.s32.totalorder %s29, 0
      %p140 = por %p138, %p139
      %s142 = sadd.s32 %s141, 1
      %p145 = scmp.eq.s32.totalorder %s23, 2
      %p146 = scmp.ne.s32.totalorder %s141, %s143
      %p147 = scmp.eq.s32.totalorder %s23, 0
      %p148 = por %p146, %p147
      %p149 = scmp.ne.s32.totalorder %s141, %s143
      %p150 = scmp.eq.s32.totalorder %s28, 2
      %p151 = por %p149, %p150
      %p152 = scmp.ne.s32.totalorder %s143, %s144
      %p153 = scmp.eq.s32.totalorder %s28, 0
      %p154 = por %p152, %p153
      %p155 = scmp.ne.s32.totalorder %s143, %s144
      %p156 = scmp.eq.s32.totalorder %s29, 2
      %p157 = por %p155, %p156
      %p159 = scmp.ne.s32.totalorder %s144, %s158
      %p160 = scmp.eq.s32.totalorder %s29, 0
      %p161 = por %p159, %p160
      %s163 = sadd.s32 %s162, 1
      %p166 = scmp.eq.s32.totalorder %s23, 2
      %p167 = scmp.ne.s32.totalorder %s162, %s164
      %p168 = scmp.eq.s32.totalorder %s23, 0
      %p169 = por %p167, %p168
      %p170 = scmp.ne.s32.totalorder %s162, %s164
      %p171 = scmp.eq.s32.totalorder %s28, 2
      %p172 = por %p170, %p171
      %p173 = scmp.ne.s32.totalorder %s164, %s165
      %p174 = scmp.eq.s32.totalorder %s28, 0
      %p175 = por %p173, %p174
      %p176 = scmp.ne.s32.totalorder %s164, %s165
      %p177 = scmp.eq.s32.totalorder %s29, 2
      %p178 = por %p176, %p177
      %p180 = scmp.ne.s32.totalorder %s165, %s179
      %p181 = scmp.eq.s32.totalorder %s29, 0
      %p182 = por %p180, %p181
      %s184 = sadd.s32 %s183, 1
      %p187 = scmp.eq.s32.totalorder %s23, 2
      %p188 = scmp.ne.s32.totalorder %s183, %s185
      %p189 = scmp.eq.s32.totalorder %s23, 0
      %p190 = por %p188, %p189
      %p191 = scmp.ne.s32.totalorder %s183, %s185
      %p192 = scmp.eq.s32.totalorder %s28, 2
      %p193 = por %p191, %p192
      %p194 = scmp.ne.s32.totalorder %s185, %s186
      %p195 = scmp.eq.s32.totalorder %s28, 0
      %p196 = por %p194, %p195
      %p197 = scmp.ne.s32.totalorder %s185, %s186
      %p198 = scmp.eq.s32.totalorder %s29, 2
      %p199 = por %p197, %p198
      %p201 = scmp.ne.s32.totalorder %s186, %s200
      %p202 = scmp.eq.s32.totalorder %s29, 0
      %p203 = por %p201, %p202
      %s205 = sadd.s32 %s204, 1
      %p208 = scmp.eq.s32.totalorder %s23, 2
      %p209 = scmp.ne.s32.totalorder %s204, %s206
      %p210 = scmp.eq.s32.totalorder %s23, 0
      %p211 = por %p209, %p210
      %p212 = scmp.ne.s32.totalorder %s204, %s206
      %p213 = scmp.eq.s32.totalorder %s28, 2
      %p214 = por %p212, %p213
      %p215 = scmp.ne.s32.totalorder %s206, %s207
      %p216 = scmp.eq.s32.totalorder %s28, 0
      %p217 = por %p215, %p216
      %p218 = scmp.ne.s32.totalorder %s206, %s207
      %p219 = scmp.eq.s32.totalorder %s29, 2
      %p220 = por %p218, %p219
      %p222 = scmp.ne.s32.totalorder %s207, %s221
      %p223 = scmp.eq.s32.totalorder %s29, 0
      %p224 = por %p222, %p223
      %s225 = ssub.s32 %s23, %s30
      %p226 = scmp.eq.s32.totalorder %s225, 0
      %s228 = sadd.s32 %s227, 1
      %s229 = scalar_select %p226, %s227, %s228
      %p232 = pneg %p226
      %p233 = scmp.eq.s32.totalorder %s23, 2
      %p234 = por %p232, %p233
      %p235 = scmp.ne.s32.totalorder %s227, %s230
      %p236 = scmp.eq.s32.totalorder %s23, 0
      %p237 = por %p235, %p236
      %p238 = scmp.ne.s32.totalorder %s227, %s230
      %p239 = scmp.eq.s32.totalorder %s28, 2
      %p240 = por %p238, %p239
      %p241 = scmp.ne.s32.totalorder %s230, %s231
      %p242 = scmp.eq.s32.totalorder %s28, 0
      %p243 = por %p241, %p242
      %p244 = scmp.ne.s32.totalorder %s230, %s231
      %p245 = scmp.eq.s32.totalorder %s29, 2
      %p246 = por %p244, %p245
      %p248 = scmp.ne.s32.totalorder %s231, %s247
      %p249 = scmp.eq.s32.totalorder %s29, 0
      %p250 = por %p248, %p249
      %p251 = scmp.le.s32.totalorder 1, %s23
      %p252 = scmp.lt.s32.totalorder %s23, 4
      %p253 = pnand %p251, %p252
      %p254 = pneg %p253
      // Predicated region
      $region9: #{tpu_custom_call.1} parent=5 // pred_check
        _
      $region10: #{tpu_custom_call.1} parent=5 // pred_check_branch
        %256 = sbr.rel (%p253) target = $region12
      $region11: #{tpu_custom_call.1} parent=5 // pred_region
        %s257 = ssub.s32 %s23, 1
        // Predicated region
        $region13: #{tpu_custom_call.1} parent=11 // pred_check
          %p258 = pneg %p70
        $region14: #{tpu_custom_call.1} parent=11 // pred_check_branch
          %260 = sbr.rel (%p258) target = $region16
        $region15: #{tpu_custom_call.1} parent=11 // pred_region
          %262 = vsyncadd [#allocation6], 0
          %s263 = sshll.u32 %s1, 4
          %s264 = int_to_ptr.hbm [resolvable:$true] %s263
          %s265 = sshll.u32 [#allocation5], 4
          %s266 = int_to_ptr.vmem [resolvable:$true] %s265
          %271 = dma.hbm_to_vmem [thread:$0]  %s264, 2048, %s266, [#allocation6], 128, 128, 8
        $region16: #{tpu_custom_call.1} parent=11 // pred_fallthru
          _
        // Predicated region
        $region17: #{tpu_custom_call.1} parent=11 // pred_check
          %p272 = pneg %p91
        $region18: #{tpu_custom_call.1} parent=11 // pred_check_branch
          %274 = sbr.rel (%p272) target = $region20
        $region19: #{tpu_custom_call.1} parent=11 // pred_region
          %276 = vsyncadd [#allocation6], 0
          %s278 = sshll.u32 %s2, 4
          %s279 = int_to_ptr.hbm [resolvable:$true] %s278
          %s280 = sshll.u32 [#allocation7], 4
          %s281 = int_to_ptr.vmem [resolvable:$true] %s280
          %283 = dma.hbm_to_vmem [thread:$0]  %s279, 32, %s281, [#allocation6]
        $region20: #{tpu_custom_call.1} parent=11 // pred_fallthru
          _
        // Predicated region
        $region21: #{tpu_custom_call.1} parent=11 // pred_check
          %p284 = pneg %p112
        $region22: #{tpu_custom_call.1} parent=11 // pred_check_branch
          %286 = sbr.rel (%p284) target = $region24
        $region23: #{tpu_custom_call.1} parent=11 // pred_region
          _
        $region24: #{tpu_custom_call.1} parent=11 // pred_fallthru
          _
        // Predicated region
        $region25: #{tpu_custom_call.1} parent=11 // pred_check
          %p287 = pneg %p133
        $region26: #{tpu_custom_call.1} parent=11 // pred_check_branch
          %289 = sbr.rel (%p287) target = $region28
        $region27: #{tpu_custom_call.1} parent=11 // pred_region
          %291 = vsyncadd [#allocation9], 0
          %s293 = sshll.u32 %s4, 4
          %s294 = int_to_ptr.hbm [resolvable:$true] %s293
          %s295 = sshll.u32 [#allocation8], 4
          %s296 = int_to_ptr.vmem [resolvable:$true] %s295
          %298 = dma.hbm_to_vmem [thread:$0]  %s294, 32, %s296, [#allocation9]
        $region28: #{tpu_custom_call.1} parent=11 // pred_fallthru
          _
        // Predicated region
        $region29: #{tpu_custom_call.1} parent=11 // pred_check
          %p299 = pneg %p154
        $region30: #{tpu_custom_call.1} parent=11 // pred_check_branch
          %301 = sbr.rel (%p299) target = $region32
        $region31: #{tpu_custom_call.1} parent=11 // pred_region
          %303 = vsyncadd [#allocation9], 0
          %s304 = sshll.u32 %s5, 4
          %s305 = int_to_ptr.hbm [resolvable:$true] %s304
          %s306 = sshll.u32 [#allocation10], 4
          %s307 = int_to_ptr.vmem [resolvable:$true] %s306
          %312 = dma.hbm_to_vmem [thread:$0]  %s305, 2048, %s307, [#allocation9], 64, 64, 4
        $region32: #{tpu_custom_call.1} parent=11 // pred_fallthru
          _
        // Predicated region
        $region33: #{tpu_custom_call.1} parent=11 // pred_check
          %p313 = pneg %p175
        $region34: #{tpu_custom_call.1} parent=11 // pred_check_branch
          %315 = sbr.rel (%p313) target = $region36
        $region35: #{tpu_custom_call.1} parent=11 // pred_region
          _
        $region36: #{tpu_custom_call.1} parent=11 // pred_fallthru
          _
        // Predicated region
        $region37: #{tpu_custom_call.1} parent=11 // pred_check
          %p316 = pneg %p196
        $region38: #{tpu_custom_call.1} parent=11 // pred_check_branch
          %318 = sbr.rel (%p316) target = $region40
        $region39: #{tpu_custom_call.1} parent=11 // pred_region
          _
        $region40: #{tpu_custom_call.1} parent=11 // pred_fallthru
          _
        // Predicated region
        $region41: #{tpu_custom_call.1} parent=11 // pred_check
          %p319 = pneg %p217
        $region42: #{tpu_custom_call.1} parent=11 // pred_check_branch
          %321 = sbr.rel (%p319) target = $region44
        $region43: #{tpu_custom_call.1} parent=11 // pred_region
          _
        $region44: #{tpu_custom_call.1} parent=11 // pred_fallthru
          _
      $region12: #{tpu_custom_call.1} parent=5 // pred_fallthru
        _
      %p322 = scmp.lt.s32.totalorder %s23, 3
      // Predicated region
      $region45: #{tpu_custom_call.1} parent=5 // pred_check
        %p323 = pneg %p322
      $region46: #{tpu_custom_call.1} parent=5 // pred_check_branch
        %325 = sbr.rel (%p323) target = $region48
      $region47: #{tpu_custom_call.1} parent=5 // pred_region
        // Predicated region
        $region49: #{tpu_custom_call.1} parent=47 // pred_check
          %p326 = pneg %p43
        $region50: #{tpu_custom_call.1} parent=47 // pred_check_branch
          %328 = sbr.rel (%p326) target = $region52
        $region51: #{tpu_custom_call.1} parent=47 // pred_region
          %s329 = sand.u32 %s33, 1
          %s330 = scalar_lea.sflag [#allocation3], %s329
          %s331 = sand.u32 %s33, 1
          %s332 = smul.addr %s331, 64
          %s333 = scalar_lea.vmem [#allocation2], %s332
          %s334 = smul.u32 16, %s23
          %336 = vsyncadd %s330, 0
          %s337 = smul.addr %s334, 4
          %s338 = scalar_lea.hbm %s0, %s337
          %s339 = sshll.u32 %s338, 4
          %s340 = int_to_ptr.hbm [resolvable:$true] %s339
          %s341 = sshll.u32 %s333, 4
          %s342 = int_to_ptr.vmem [resolvable:$true] %s341
          %347 = dma.hbm_to_vmem [thread:$0]  %s340, 1024, %s342, %s330, 64, 64, 4
        $region52: #{tpu_custom_call.1} parent=47 // pred_fallthru
          _
      $region48: #{tpu_custom_call.1} parent=5 // pred_fallthru
        _
      %p348 = scmp.le.s32.totalorder 1, %s23
      %p349 = scmp.lt.s32.totalorder %s23, 4
      %p350 = pnand %p348, %p349
      %p351 = pneg %p350
      // Predicated region
      $region53: #{tpu_custom_call.1} parent=5 // pred_check
        _
      $region54: #{tpu_custom_call.1} parent=5 // pred_check_branch
        %353 = sbr.rel (%p350) target = $region56
      $region55: #{tpu_custom_call.1} parent=5 // pred_region
        %s354 = ssub.s32 %s23, 1
        %s355 = sand.u32 %s36, 1
        %s356 = scalar_lea.sflag [#allocation3], %s355
        %s357 = sand.u32 %s36, 1
        %s358 = smul.addr %s357, 64
        %s359 = scalar_lea.vmem [#allocation2], %s358
        // Predicated region
        $region57: #{tpu_custom_call.1} parent=55 // pred_check
          %p360 = pneg %p49
        $region58: #{tpu_custom_call.1} parent=55 // pred_check_branch
          %362 = sbr.rel (%p360) target = $region60
        $region59: #{tpu_custom_call.1} parent=55 // pred_region
          %364 = dma.done %s356, 1024
        $region60: #{tpu_custom_call.1} parent=55 // pred_fallthru
          _
        // Predicated region
        $region61: #{tpu_custom_call.1} parent=55 // pred_check
          %p365 = pneg %p70
        $region62: #{tpu_custom_call.1} parent=55 // pred_check_branch
          %367 = sbr.rel (%p365) target = $region64
        $region63: #{tpu_custom_call.1} parent=55 // pred_region
          %369 = dma.done [#allocation6], 2048
        $region64: #{tpu_custom_call.1} parent=55 // pred_fallthru
          _
        // Predicated region
        $region65: #{tpu_custom_call.1} parent=55 // pred_check
          %p370 = pneg %p91
        $region66: #{tpu_custom_call.1} parent=55 // pred_check_branch
          %372 = sbr.rel (%p370) target = $region68
        $region67: #{tpu_custom_call.1} parent=55 // pred_region
          %374 = dma.done [#allocation6], 32
        $region68: #{tpu_custom_call.1} parent=55 // pred_fallthru
          _
        // Predicated region
        $region69: #{tpu_custom_call.1} parent=55 // pred_check
          %p375 = pneg %p133
        $region70: #{tpu_custom_call.1} parent=55 // pred_check_branch
          %377 = sbr.rel (%p375) target = $region72
        $region71: #{tpu_custom_call.1} parent=55 // pred_region
          %379 = dma.done [#allocation9], 32
        $region72: #{tpu_custom_call.1} parent=55 // pred_fallthru
          _
        // Predicated region
        $region73: #{tpu_custom_call.1} parent=55 // pred_check
          %p380 = pneg %p154
        $region74: #{tpu_custom_call.1} parent=55 // pred_check_branch
          %382 = sbr.rel (%p380) target = $region76
        $region75: #{tpu_custom_call.1} parent=55 // pred_region
          %384 = dma.done [#allocation9], 2048
        $region76: #{tpu_custom_call.1} parent=55 // pred_fallthru
          _
        %s385 = sand.u32 %s36, 1
        %s386 = scalar_lea.sflag [#allocation3], %s385
        %s387 = sand.u32 %s36, 1
        %s388 = smul.addr %s387, 64
        %s389 = scalar_lea.vmem [#allocation2], %s388
        %p390 = pneg %p49
        %p391 = pneg %p46
        %p392 = pneg %p70
        %p393 = pneg %p67
        %p394 = pneg %p91
        %p395 = pneg %p88
        %p396 = pneg %p112
        %p397 = pneg %p109
        %p398 = pneg %p133
        %p399 = pneg %p130
        %p400 = pneg %p154
        %p401 = pneg %p151
        %p402 = pneg %p175
        %p403 = pneg %p172
        %p404 = pneg %p196
        %p405 = pneg %p193
        %p406 = pneg %p217
        %p407 = pneg %p214
        %p408 = pneg %p243
        %p409 = pneg %p240
        %s410 = sand.u32 %s230, 1
        %s411 = scalar_lea.sflag [#allocation4], %s410
        %s412 = sand.u32 %s230, 1
        %s413 = smul.addr %s412, 64
        %s414 = scalar_lea.vmem [#allocation11], %s413
        %s415 = smul.u32 16, %s28
        %s416 = smul.u32 16, %s28
        %v417 = vld [vmem:[%s359] sm:$0xf]
        %v418 = vld [vmem:[%s359 + $0x4] sm:$0xf]
        %v419 = vld [vmem:[%s359 + $0x8] sm:$0xf]
        %v420 = vld [vmem:[%s359 + $0xc] sm:$0xf]
        %v421 = vld [vmem:[%s359 + $0x10] sm:$0xf]
        %v422 = vld [vmem:[%s359 + $0x14] sm:$0xf]
        %v423 = vld [vmem:[%s359 + $0x18] sm:$0xf]
        %v424 = vld [vmem:[%s359 + $0x1c] sm:$0xf]
        %v425 = vld [vmem:[%s359 + $0x20] sm:$0xf]
        %v426 = vld [vmem:[%s359 + $0x24] sm:$0xf]
        %v427 = vld [vmem:[%s359 + $0x28] sm:$0xf]
        %v428 = vld [vmem:[%s359 + $0x2c] sm:$0xf]
        %v429 = vld [vmem:[%s359 + $0x30] sm:$0xf]
        %v430 = vld [vmem:[%s359 + $0x34] sm:$0xf]
        %v431 = vld [vmem:[%s359 + $0x38] sm:$0xf]
        %v432 = vld [vmem:[%s359 + $0x3c] sm:$0xf]
        %v433 = vld [vmem:[#allocation5] sm:$0xff]
        %v434 = vld [vmem:[#allocation5 + $0x8] sm:$0xff]
        %v435 = vld [vmem:[#allocation5 + $0x10] sm:$0xff]
        %v436 = vld [vmem:[#allocation5 + $0x18] sm:$0xff]
        %v437 = vld [vmem:[#allocation5 + $0x20] sm:$0xff]
        %v438 = vld [vmem:[#allocation5 + $0x28] sm:$0xff]
        %v439 = vld [vmem:[#allocation5 + $0x30] sm:$0xff]
        %v440 = vld [vmem:[#allocation5 + $0x38] sm:$0xff]
        %v441 = vld [vmem:[#allocation5 + $0x40] sm:$0xff]
        %v442 = vld [vmem:[#allocation5 + $0x48] sm:$0xff]
        %v443 = vld [vmem:[#allocation5 + $0x50] sm:$0xff]
        %v444 = vld [vmem:[#allocation5 + $0x58] sm:$0xff]
        %v445 = vld [vmem:[#allocation5 + $0x60] sm:$0xff]
        %v446 = vld [vmem:[#allocation5 + $0x68] sm:$0xff]
        %v447 = vld [vmem:[#allocation5 + $0x70] sm:$0xff]
        %v448 = vld [vmem:[#allocation5 + $0x78] sm:$0xff]
        %v449 = vld [vmem:[#allocation7] sm:$0x3]
        %v450 = vld [vmem:[%s3] sm:$0x3]
        %v451 = vld [vmem:[#allocation8] sm:$0x3]
        %v453 = vperm.slane %v449, 0
        %v454 = vperm.slane %v449, 1
        %v473 = vunpack.c.l.b16 %v417
        %v474 = vunpack.c.l.b16 %v418
        %v475 = vunpack.c.l.b16 %v419
        %v476 = vunpack.c.l.b16 %v420
        %v477 = vunpack.c.l.b16 %v421
        %v478 = vunpack.c.l.b16 %v422
        %v479 = vunpack.c.l.b16 %v423
        %v480 = vunpack.c.l.b16 %v424
        %v481 = vunpack.c.l.b16 %v425
        %v482 = vunpack.c.l.b16 %v426
        %v483 = vunpack.c.l.b16 %v427
        %v484 = vunpack.c.l.b16 %v428
        %v485 = vunpack.c.l.b16 %v429
        %v486 = vunpack.c.l.b16 %v430
        %v487 = vunpack.c.l.b16 %v431
        %v488 = vunpack.c.l.b16 %v432
        %v489 = vpack.c.b16 %v474, %v473
        %v490 = vpack.c.b16 %v476, %v475
        %v491 = vpack.c.b16 %v478, %v477
        %v492 = vpack.c.b16 %v480, %v479
        %v493 = vpack.c.b16 %v482, %v481
        %v494 = vpack.c.b16 %v484, %v483
        %v495 = vpack.c.b16 %v486, %v485
        %v496 = vpack.c.b16 %v488, %v487
        %v521 = vunpack.c.l.b16 %v433
        %v522 = vunpack.c.h.b16 %v433
        %v523 = vunpack.c.l.b16 %v434
        %v524 = vunpack.c.h.b16 %v434
        %v525 = vunpack.c.l.b16 %v435
        %v526 = vunpack.c.h.b16 %v435
        %v527 = vunpack.c.l.b16 %v436
        %v528 = vunpack.c.h.b16 %v436
        %v529 = vunpack.c.l.b16 %v437
        %v530 = vunpack.c.h.b16 %v437
        %v531 = vunpack.c.l.b16 %v438
        %v532 = vunpack.c.h.b16 %v438
        %v533 = vunpack.c.l.b16 %v439
        %v534 = vunpack.c.h.b16 %v439
        %v535 = vunpack.c.l.b16 %v440
        %v536 = vunpack.c.h.b16 %v440
        %v537 = vunpack.c.l.b16 %v441
        %v538 = vunpack.c.h.b16 %v441
        %v539 = vunpack.c.l.b16 %v442
        %v540 = vunpack.c.h.b16 %v442
        %v541 = vunpack.c.l.b16 %v443
        %v542 = vunpack.c.h.b16 %v443
        %v543 = vunpack.c.l.b16 %v444
        %v544 = vunpack.c.h.b16 %v444
        %v545 = vunpack.c.l.b16 %v445
        %v546 = vunpack.c.h.b16 %v445
        %v547 = vunpack.c.l.b16 %v446
        %v548 = vunpack.c.h.b16 %v446
        %v549 = vunpack.c.l.b16 %v447
        %v550 = vunpack.c.h.b16 %v447
        %v551 = vunpack.c.l.b16 %v448
        %v552 = vunpack.c.h.b16 %v448
        %v553 = vpack.c.b16 %v523, %v521
        %v554 = vpack.c.b16 %v524, %v522
        %v555 = vpack.c.b16 %v527, %v525
        %v556 = vpack.c.b16 %v528, %v526
        %v557 = vpack.c.b16 %v531, %v529
        %v558 = vpack.c.b16 %v532, %v530
        %v559 = vpack.c.b16 %v535, %v533
        %v560 = vpack.c.b16 %v536, %v534
        %v561 = vpack.c.b16 %v539, %v537
        %v562 = vpack.c.b16 %v540, %v538
        %v563 = vpack.c.b16 %v543, %v541
        %v564 = vpack.c.b16 %v544, %v542
        %v565 = vpack.c.b16 %v547, %v545
        %v566 = vpack.c.b16 %v548, %v546
        %v567 = vpack.c.b16 %v551, %v549
        %v568 = vpack.c.b16 %v552, %v550
        %585 = vmatpush.bf16.msra.mxu0 %v567
        %586 = vmatpush.bf16.msra.mxu0 %v565
        %587 = vmatpush.bf16.msra.mxu0 %v563
        %588 = vmatpush.bf16.msra.mxu0 %v561
        %589 = vmatpush.bf16.msra.mxu0 %v559
        %590 = vmatpush.bf16.msra.mxu0 %v557
        %591 = vmatpush.bf16.msra.mxu0 %v555
        %592 = vmatpush.bf16.msra.mxu0 %v553
        %593 = vmatmul.bf16.gmra.mxu0 %v489
        %v594 = vpop.f32.mrf.mxu0
        %v595 = vadd.f32 %v453, %v594
        %v596 = vpop.f32.mrf.mxu0
        %v597 = vadd.f32 %v453, %v596
        %598 = vmatmul.bf16.gmra.mxu0 %v490
        %v599 = vpop.f32.mrf.mxu0
        %v600 = vadd.f32 %v453, %v599
        %v601 = vpop.f32.mrf.mxu0
        %v602 = vadd.f32 %v453, %v601
        %603 = vmatmul.bf16.gmra.mxu0 %v491
        %v604 = vpop.f32.mrf.mxu0
        %v605 = vadd.f32 %v453, %v604
        %v606 = vpop.f32.mrf.mxu0
        %v607 = vadd.f32 %v453, %v606
        %608 = vmatmul.bf16.gmra.mxu0 %v492
        %v609 = vpop.f32.mrf.mxu0
        %v610 = vadd.f32 %v453, %v609
        %v611 = vpop.f32.mrf.mxu0
        %v612 = vadd.f32 %v453, %v611
        %613 = vmatmul.bf16.gmra.mxu0 %v493
        %v614 = vpop.f32.mrf.mxu0
        %v615 = vadd.f32 %v453, %v614
        %v616 = vpop.f32.mrf.mxu0
        %v617 = vadd.f32 %v453, %v616
        %618 = vmatmul.bf16.gmra.mxu0 %v494
        %v619 = vpop.f32.mrf.mxu0
        %v620 = vadd.f32 %v453, %v619
        %v621 = vpop.f32.mrf.mxu0
        %v622 = vadd.f32 %v453, %v621
        %623 = vmatmul.bf16.gmra.mxu0 %v495
        %v624 = vpop.f32.mrf.mxu0
        %v625 = vadd.f32 %v453, %v624
        %v626 = vpop.f32.mrf.mxu0
        %v627 = vadd.f32 %v453, %v626
        %628 = vmatmul.bf16.gmra.mxu0 %v496
        %v629 = vpop.f32.mrf.mxu0
        %v630 = vadd.f32 %v453, %v629
        %v631 = vpop.f32.mrf.mxu0
        %v632 = vadd.f32 %v453, %v631
        %633 = vdwg.mxu0
        %634 = vmatpush.bf16.msra.mxu0 %v568
        %635 = vmatpush.bf16.msra.mxu0 %v566
        %636 = vmatpush.bf16.msra.mxu0 %v564
        %637 = vmatpush.bf16.msra.mxu0 %v562
        %638 = vmatpush.bf16.msra.mxu0 %v560
        %639 = vmatpush.bf16.msra.mxu0 %v558
        %640 = vmatpush.bf16.msra.mxu0 %v556
        %641 = vmatpush.bf16.msra.mxu0 %v554
        %642 = vmatmul.bf16.gmra.mxu0 %v489
        %v643 = vpop.f32.mrf.mxu0
        %v644 = vadd.f32 %v454, %v643
        %v645 = vpop.f32.mrf.mxu0
        %v646 = vadd.f32 %v454, %v645
        %647 = vmatmul.bf16.gmra.mxu0 %v490
        %v648 = vpop.f32.mrf.mxu0
        %v649 = vadd.f32 %v454, %v648
        %v650 = vpop.f32.mrf.mxu0
        %v651 = vadd.f32 %v454, %v650
        %652 = vmatmul.bf16.gmra.mxu0 %v491
        %v653 = vpop.f32.mrf.mxu0
        %v654 = vadd.f32 %v454, %v653
        %v655 = vpop.f32.mrf.mxu0
        %v656 = vadd.f32 %v454, %v655
        %657 = vmatmul.bf16.gmra.mxu0 %v492
        %v658 = vpop.f32.mrf.mxu0
        %v659 = vadd.f32 %v454, %v658
        %v660 = vpop.f32.mrf.mxu0
        %v661 = vadd.f32 %v454, %v660
        %662 = vmatmul.bf16.gmra.mxu0 %v493
        %v663 = vpop.f32.mrf.mxu0
        %v664 = vadd.f32 %v454, %v663
        %v665 = vpop.f32.mrf.mxu0
        %v666 = vadd.f32 %v454, %v665
        %667 = vmatmul.bf16.gmra.mxu0 %v494
        %v668 = vpop.f32.mrf.mxu0
        %v669 = vadd.f32 %v454, %v668
        %v670 = vpop.f32.mrf.mxu0
        %v671 = vadd.f32 %v454, %v670
        %672 = vmatmul.bf16.gmra.mxu0 %v495
        %v673 = vpop.f32.mrf.mxu0
        %v674 = vadd.f32 %v454, %v673
        %v675 = vpop.f32.mrf.mxu0
        %v676 = vadd.f32 %v454, %v675
        %677 = vmatmul.bf16.gmra.mxu0 %v496
        %v678 = vpop.f32.mrf.mxu0
        %v679 = vadd.f32 %v454, %v678
        %v680 = vpop.f32.mrf.mxu0
        %v681 = vadd.f32 %v454, %v680
        %682 = vdwg.mxu0
        %v683 = vadd.f32 %v595, %v644
        %684 = vadd.xlane.f32.xlu0 %v683
        %v685 = vpop.xlane.xlu0 %684
        %v686 = vadd.f32 %v597, %v646
        %687 = vadd.xlane.f32.xlu0 %v686
        %v688 = vpop.xlane.xlu0 %687
        %v689 = vadd.f32 %v600, %v649
        %690 = vadd.xlane.f32.xlu0 %v689
        %v691 = vpop.xlane.xlu0 %690
        %v692 = vadd.f32 %v602, %v651
        %693 = vadd.xlane.f32.xlu0 %v692
        %v694 = vpop.xlane.xlu0 %693
        %v695 = vadd.f32 %v605, %v654
        %696 = vadd.xlane.f32.xlu0 %v695
        %v697 = vpop.xlane.xlu0 %696
        %v698 = vadd.f32 %v607, %v656
        %699 = vadd.xlane.f32.xlu0 %v698
        %v700 = vpop.xlane.xlu0 %699
        %v701 = vadd.f32 %v610, %v659
        %702 = vadd.xlane.f32.xlu0 %v701
        %v703 = vpop.xlane.xlu0 %702
        %v704 = vadd.f32 %v612, %v661
        %705 = vadd.xlane.f32.xlu0 %v704
        %v706 = vpop.xlane.xlu0 %705
        %v707 = vadd.f32 %v615, %v664
        %708 = vadd.xlane.f32.xlu0 %v707
        %v709 = vpop.xlane.xlu0 %708
        %v710 = vadd.f32 %v617, %v666
        %711 = vadd.xlane.f32.xlu0 %v710
        %v712 = vpop.xlane.xlu0 %711
        %v713 = vadd.f32 %v620, %v669
        %714 = vadd.xlane.f32.xlu0 %v713
        %v715 = vpop.xlane.xlu0 %714
        %v716 = vadd.f32 %v622, %v671
        %717 = vadd.xlane.f32.xlu0 %v716
        %v718 = vpop.xlane.xlu0 %717
        %v719 = vadd.f32 %v625, %v674
        %720 = vadd.xlane.f32.xlu0 %v719
        %v721 = vpop.xlane.xlu0 %720
        %v722 = vadd.f32 %v627, %v676
        %723 = vadd.xlane.f32.xlu0 %v722
        %v724 = vpop.xlane.xlu0 %723
        %v725 = vadd.f32 %v630, %v679
        %726 = vadd.xlane.f32.xlu0 %v725
        %v727 = vpop.xlane.xlu0 %726
        %v728 = vadd.f32 %v632, %v681
        %729 = vadd.xlane.f32.xlu0 %v728
        %v730 = vpop.xlane.xlu0 %729
        %v731 = vrcp.pop 256.0
        %v732 = vmul.f32 256.0, %v731
        %v733 = vsub.f32 1.0, %v732
        %v734 = vmul.f32 %v731, %v733
        %v735 = vadd.f32 %v731, %v734
        %vm736 = vweird.f32 %v731
        %v737 = vsel %vm736, %v731, %v735
        %v738 = vmul.f32 %v685, %v737
        %v739 = vmul.f32 %v688, %v737
        %v740 = vmul.f32 %v691, %v737
        %v741 = vmul.f32 %v694, %v737
        %v742 = vmul.f32 %v697, %v737
        %v743 = vmul.f32 %v700, %v737
        %v744 = vmul.f32 %v703, %v737
        %v745 = vmul.f32 %v706, %v737
        %v746 = vmul.f32 %v709, %v737
        %v747 = vmul.f32 %v712, %v737
        %v748 = vmul.f32 %v715, %v737
        %v749 = vmul.f32 %v718, %v737
        %v750 = vmul.f32 %v721, %v737
        %v751 = vmul.f32 %v724, %v737
        %v752 = vmul.f32 %v727, %v737
        %v753 = vmul.f32 %v730, %v737
        %v754 = vmul.f32 %v595, %v595
        %v755 = vmul.f32 %v644, %v644
        %v756 = vmul.f32 %v597, %v597
        %v757 = vmul.f32 %v646, %v646
        %v758 = vmul.f32 %v600, %v600
        %v759 = vmul.f32 %v649, %v649
        %v760 = vmul.f32 %v602, %v602
        %v761 = vmul.f32 %v651, %v651
        %v762 = vmul.f32 %v605, %v605
        %v763 = vmul.f32 %v654, %v654
        %v764 = vmul.f32 %v607, %v607
        %v765 = vmul.f32 %v656, %v656
        %v766 = vmul.f32 %v610, %v610
        %v767 = vmul.f32 %v659, %v659
        %v768 = vmul.f32 %v612, %v612
        %v769 = vmul.f32 %v661, %v661
        %v770 = vmul.f32 %v615, %v615
        %v771 = vmul.f32 %v664, %v664
        %v772 = vmul.f32 %v617, %v617
        %v773 = vmul.f32 %v666, %v666
        %v774 = vmul.f32 %v620, %v620
        %v775 = vmul.f32 %v669, %v669
        %v776 = vmul.f32 %v622, %v622
        %v777 = vmul.f32 %v671, %v671
        %v778 = vmul.f32 %v625, %v625
        %v779 = vmul.f32 %v674, %v674
        %v780 = vmul.f32 %v627, %v627
        %v781 = vmul.f32 %v676, %v676
        %v782 = vmul.f32 %v630, %v630
        %v783 = vmul.f32 %v679, %v679
        %v784 = vmul.f32 %v632, %v632
        %v785 = vmul.f32 %v681, %v681
        %v786 = vadd.f32 %v754, %v755
        %787 = vadd.xlane.f32.xlu0 %v786
        %v788 = vpop.xlane.xlu0 %787
        %v789 = vadd.f32 %v756, %v757
        %790 = vadd.xlane.f32.xlu0 %v789
        %v791 = vpop.xlane.xlu0 %790
        %v792 = vadd.f32 %v758, %v759
        %793 = vadd.xlane.f32.xlu0 %v792
        %v794 = vpop.xlane.xlu0 %793
        %v795 = vadd.f32 %v760, %v761
        %796 = vadd.xlane.f32.xlu0 %v795
        %v797 = vpop.xlane.xlu0 %796
        %v798 = vadd.f32 %v762, %v763
        %799 = vadd.xlane.f32.xlu0 %v798
        %v800 = vpop.xlane.xlu0 %799
        %v801 = vadd.f32 %v764, %v765
        %802 = vadd.xlane.f32.xlu0 %v801
        %v803 = vpop.xlane.xlu0 %802
        %v804 = vadd.f32 %v766, %v767
        %805 = vadd.xlane.f32.xlu0 %v804
        %v806 = vpop.xlane.xlu0 %805
        %v807 = vadd.f32 %v768, %v769
        %808 = vadd.xlane.f32.xlu0 %v807
        %v809 = vpop.xlane.xlu0 %808
        %v810 = vadd.f32 %v770, %v771
        %811 = vadd.xlane.f32.xlu0 %v810
        %v812 = vpop.xlane.xlu0 %811
        %v813 = vadd.f32 %v772, %v773
        %814 = vadd.xlane.f32.xlu0 %v813
        %v815 = vpop.xlane.xlu0 %814
        %v816 = vadd.f32 %v774, %v775
        %817 = vadd.xlane.f32.xlu0 %v816
        %v818 = vpop.xlane.xlu0 %817
        %v819 = vadd.f32 %v776, %v777
        %820 = vadd.xlane.f32.xlu0 %v819
        %v821 = vpop.xlane.xlu0 %820
        %v822 = vadd.f32 %v778, %v779
        %823 = vadd.xlane.f32.xlu0 %v822
        %v824 = vpop.xlane.xlu0 %823
        %v825 = vadd.f32 %v780, %v781
        %826 = vadd.xlane.f32.xlu0 %v825
        %v827 = vpop.xlane.xlu0 %826
        %v828 = vadd.f32 %v782, %v783
        %829 = vadd.xlane.f32.xlu0 %v828
        %v830 = vpop.xlane.xlu0 %829
        %v831 = vadd.f32 %v784, %v785
        %832 = vadd.xlane.f32.xlu0 %v831
        %v833 = vpop.xlane.xlu0 %832
        %v834 = vmul.f32 %v788, %v737
        %v835 = vmul.f32 %v791, %v737
        %v836 = vmul.f32 %v794, %v737
        %v837 = vmul.f32 %v797, %v737
        %v838 = vmul.f32 %v800, %v737
        %v839 = vmul.f32 %v803, %v737
        %v840 = vmul.f32 %v806, %v737
        %v841 = vmul.f32 %v809, %v737
        %v842 = vmul.f32 %v812, %v737
        %v843 = vmul.f32 %v815, %v737
        %v844 = vmul.f32 %v818, %v737
        %v845 = vmul.f32 %v821, %v737
        %v846 = vmul.f32 %v824, %v737
        %v847 = vmul.f32 %v827, %v737
        %v848 = vmul.f32 %v830, %v737
        %v849 = vmul.f32 %v833, %v737
        %v850 = vmul.f32 %v738, %v738
        %v851 = vmul.f32 %v739, %v739
        %v852 = vmul.f32 %v740, %v740
        %v853 = vmul.f32 %v741, %v741
        %v854 = vmul.f32 %v742, %v742
        %v855 = vmul.f32 %v743, %v743
        %v856 = vmul.f32 %v744, %v744
        %v857 = vmul.f32 %v745, %v745
        %v858 = vmul.f32 %v746, %v746
        %v859 = vmul.f32 %v747, %v747
        %v860 = vmul.f32 %v748, %v748
        %v861 = vmul.f32 %v749, %v749
        %v862 = vmul.f32 %v750, %v750
        %v863 = vmul.f32 %v751, %v751
        %v864 = vmul.f32 %v752, %v752
        %v865 = vmul.f32 %v753, %v753
        %v866 = vsub.f32 %v834, %v850
        %v867 = vsub.f32 %v835, %v851
        %v868 = vsub.f32 %v836, %v852
        %v869 = vsub.f32 %v837, %v853
        %v870 = vsub.f32 %v838, %v854
        %v871 = vsub.f32 %v839, %v855
        %v872 = vsub.f32 %v840, %v856
        %v873 = vsub.f32 %v841, %v857
        %v874 = vsub.f32 %v842, %v858
        %v875 = vsub.f32 %v843, %v859
        %v876 = vsub.f32 %v844, %v860
        %v877 = vsub.f32 %v845, %v861
        %v878 = vsub.f32 %v846, %v862
        %v879 = vsub.f32 %v847, %v863
        %v880 = vsub.f32 %v848, %v864
        %v881 = vsub.f32 %v849, %v865
        %v882 = vmax.f32 %v866, 0.0
        %v883 = vmax.f32 %v867, 0.0
        %v884 = vmax.f32 %v868, 0.0
        %v885 = vmax.f32 %v869, 0.0
        %v886 = vmax.f32 %v870, 0.0
        %v887 = vmax.f32 %v871, 0.0
        %v888 = vmax.f32 %v872, 0.0
        %v889 = vmax.f32 %v873, 0.0
        %v890 = vmax.f32 %v874, 0.0
        %v891 = vmax.f32 %v875, 0.0
        %v892 = vmax.f32 %v876, 0.0
        %v893 = vmax.f32 %v877, 0.0
        %v894 = vmax.f32 %v878, 0.0
        %v895 = vmax.f32 %v879, 0.0
        %v896 = vmax.f32 %v880, 0.0
        %v897 = vmax.f32 %v881, 0.0
        %v898 = vadd.f32 %v882, 1e-05
        %v899 = vadd.f32 %v883, 1e-05
        %v900 = vadd.f32 %v884, 1e-05
        %v901 = vadd.f32 %v885, 1e-05
        %v902 = vadd.f32 %v886, 1e-05
        %v903 = vadd.f32 %v887, 1e-05
        %v904 = vadd.f32 %v888, 1e-05
        %v905 = vadd.f32 %v889, 1e-05
        %v906 = vadd.f32 %v890, 1e-05
        %v907 = vadd.f32 %v891, 1e-05
        %v908 = vadd.f32 %v892, 1e-05
        %v909 = vadd.f32 %v893, 1e-05
        %v910 = vadd.f32 %v894, 1e-05
        %v911 = vadd.f32 %v895, 1e-05
        %v912 = vadd.f32 %v896, 1e-05
        %v913 = vadd.f32 %v897, 1e-05
        %v914 = vrsqrt.pop %v898
        %v915 = vmul.f32 %v914, %v898
        %v916 = vmul.f32 %v915, %v914
        %v917 = vmul.f32 0.5, %v916
        %v918 = vsub.f32 1.5, %v917
        %v919 = vmul.f32 %v914, %v918
        %vm920 = vweird.f32 %v898
        %vm921 = vweird.f32 %v914
        %vm922 = vmor %vm920, %vm921
        %v923 = vsel %vm922, %v914, %v919
        %v924 = vrsqrt.pop %v899
        %v925 = vmul.f32 %v924, %v899
        %v926 = vmul.f32 %v925, %v924
        %v927 = vmul.f32 0.5, %v926
        %v928 = vsub.f32 1.5, %v927
        %v929 = vmul.f32 %v924, %v928
        %vm930 = vweird.f32 %v899
        %vm931 = vweird.f32 %v924
        %vm932 = vmor %vm930, %vm931
        %v933 = vsel %vm932, %v924, %v929
        %v934 = vrsqrt.pop %v900
        %v935 = vmul.f32 %v934, %v900
        %v936 = vmul.f32 %v935, %v934
        %v937 = vmul.f32 0.5, %v936
        %v938 = vsub.f32 1.5, %v937
        %v939 = vmul.f32 %v934, %v938
        %vm940 = vweird.f32 %v900
        %vm941 = vweird.f32 %v934
        %vm942 = vmor %vm940, %vm941
        %v943 = vsel %vm942, %v934, %v939
        %v944 = vrsqrt.pop %v901
        %v945 = vmul.f32 %v944, %v901
        %v946 = vmul.f32 %v945, %v944
        %v947 = vmul.f32 0.5, %v946
        %v948 = vsub.f32 1.5, %v947
        %v949 = vmul.f32 %v944, %v948
        %vm950 = vweird.f32 %v901
        %vm951 = vweird.f32 %v944
        %vm952 = vmor %vm950, %vm951
        %v953 = vsel %vm952, %v944, %v949
        %v954 = vrsqrt.pop %v902
        %v955 = vmul.f32 %v954, %v902
        %v956 = vmul.f32 %v955, %v954
        %v957 = vmul.f32 0.5, %v956
        %v958 = vsub.f32 1.5, %v957
        %v959 = vmul.f32 %v954, %v958
        %vm960 = vweird.f32 %v902
        %vm961 = vweird.f32 %v954
        %vm962 = vmor %vm960, %vm961
        %v963 = vsel %vm962, %v954, %v959
        %v964 = vrsqrt.pop %v903
        %v965 = vmul.f32 %v964, %v903
        %v966 = vmul.f32 %v965, %v964
        %v967 = vmul.f32 0.5, %v966
        %v968 = vsub.f32 1.5, %v967
        %v969 = vmul.f32 %v964, %v968
        %vm970 = vweird.f32 %v903
        %vm971 = vweird.f32 %v964
        %vm972 = vmor %vm970, %vm971
        %v973 = vsel %vm972, %v964, %v969
        %v974 = vrsqrt.pop %v904
        %v975 = vmul.f32 %v974, %v904
        %v976 = vmul.f32 %v975, %v974
        %v977 = vmul.f32 0.5, %v976
        %v978 = vsub.f32 1.5, %v977
        %v979 = vmul.f32 %v974, %v978
        %vm980 = vweird.f32 %v904
        %vm981 = vweird.f32 %v974
        %vm982 = vmor %vm980, %vm981
        %v983 = vsel %vm982, %v974, %v979
        %v984 = vrsqrt.pop %v905
        %v985 = vmul.f32 %v984, %v905
        %v986 = vmul.f32 %v985, %v984
        %v987 = vmul.f32 0.5, %v986
        %v988 = vsub.f32 1.5, %v987
        %v989 = vmul.f32 %v984, %v988
        %vm990 = vweird.f32 %v905
        %vm991 = vweird.f32 %v984
        %vm992 = vmor %vm990, %vm991
        %v993 = vsel %vm992, %v984, %v989
        %v994 = vrsqrt.pop %v906
        %v995 = vmul.f32 %v994, %v906
        %v996 = vmul.f32 %v995, %v994
        %v997 = vmul.f32 0.5, %v996
        %v998 = vsub.f32 1.5, %v997
        %v999 = vmul.f32 %v994, %v998
        %vm1000 = vweird.f32 %v906
        %vm1001 = vweird.f32 %v994
        %vm1002 = vmor %vm1000, %vm1001
        %v1003 = vsel %vm1002, %v994, %v999
        %v1004 = vrsqrt.pop %v907
        %v1005 = vmul.f32 %v1004, %v907
        %v1006 = vmul.f32 %v1005, %v1004
        %v1007 = vmul.f32 0.5, %v1006
        %v1008 = vsub.f32 1.5, %v1007
        %v1009 = vmul.f32 %v1004, %v1008
        %vm1010 = vweird.f32 %v907
        %vm1011 = vweird.f32 %v1004
        %vm1012 = vmor %vm1010, %vm1011
        %v1013 = vsel %vm1012, %v1004, %v1009
        %v1014 = vrsqrt.pop %v908
        %v1015 = vmul.f32 %v1014, %v908
        %v1016 = vmul.f32 %v1015, %v1014
        %v1017 = vmul.f32 0.5, %v1016
        %v1018 = vsub.f32 1.5, %v1017
        %v1019 = vmul.f32 %v1014, %v1018
        %vm1020 = vweird.f32 %v908
        %vm1021 = vweird.f32 %v1014
        %vm1022 = vmor %vm1020, %vm1021
        %v1023 = vsel %vm1022, %v1014, %v1019
        %v1024 = vrsqrt.pop %v909
        %v1025 = vmul.f32 %v1024, %v909
        %v1026 = vmul.f32 %v1025, %v1024
        %v1027 = vmul.f32 0.5, %v1026
        %v1028 = vsub.f32 1.5, %v1027
        %v1029 = vmul.f32 %v1024, %v1028
        %vm1030 = vweird.f32 %v909
        %vm1031 = vweird.f32 %v1024
        %vm1032 = vmor %vm1030, %vm1031
        %v1033 = vsel %vm1032, %v1024, %v1029
        %v1034 = vrsqrt.pop %v910
        %v1035 = vmul.f32 %v1034, %v910
        %v1036 = vmul.f32 %v1035, %v1034
        %v1037 = vmul.f32 0.5, %v1036
        %v1038 = vsub.f32 1.5, %v1037
        %v1039 = vmul.f32 %v1034, %v1038
        %vm1040 = vweird.f32 %v910
        %vm1041 = vweird.f32 %v1034
        %vm1042 = vmor %vm1040, %vm1041
        %v1043 = vsel %vm1042, %v1034, %v1039
        %v1044 = vrsqrt.pop %v911
        %v1045 = vmul.f32 %v1044, %v911
        %v1046 = vmul.f32 %v1045, %v1044
        %v1047 = vmul.f32 0.5, %v1046
        %v1048 = vsub.f32 1.5, %v1047
        %v1049 = vmul.f32 %v1044, %v1048
        %vm1050 = vweird.f32 %v911
        %vm1051 = vweird.f32 %v1044
        %vm1052 = vmor %vm1050, %vm1051
        %v1053 = vsel %vm1052, %v1044, %v1049
        %v1054 = vrsqrt.pop %v912
        %v1055 = vmul.f32 %v1054, %v912
        %v1056 = vmul.f32 %v1055, %v1054
        %v1057 = vmul.f32 0.5, %v1056
        %v1058 = vsub.f32 1.5, %v1057
        %v1059 = vmul.f32 %v1054, %v1058
        %vm1060 = vweird.f32 %v912
        %vm1061 = vweird.f32 %v1054
        %vm1062 = vmor %vm1060, %vm1061
        %v1063 = vsel %vm1062, %v1054, %v1059
        %v1064 = vrsqrt.pop %v913
        %v1065 = vmul.f32 %v1064, %v913
        %v1066 = vmul.f32 %v1065, %v1064
        %v1067 = vmul.f32 0.5, %v1066
        %v1068 = vsub.f32 1.5, %v1067
        %v1069 = vmul.f32 %v1064, %v1068
        %vm1070 = vweird.f32 %v913
        %vm1071 = vweird.f32 %v1064
        %vm1072 = vmor %vm1070, %vm1071
        %v1073 = vsel %vm1072, %v1064, %v1069
        %v1074 = vmul.f32 %v595, %v923
        %v1075 = vmul.f32 %v644, %v923
        %v1076 = vmul.f32 %v597, %v933
        %v1077 = vmul.f32 %v646, %v933
        %v1078 = vmul.f32 %v600, %v943
        %v1079 = vmul.f32 %v649, %v943
        %v1080 = vmul.f32 %v602, %v953
        %v1081 = vmul.f32 %v651, %v953
        %v1082 = vmul.f32 %v605, %v963
        %v1083 = vmul.f32 %v654, %v963
        %v1084 = vmul.f32 %v607, %v973
        %v1085 = vmul.f32 %v656, %v973
        %v1086 = vmul.f32 %v610, %v983
        %v1087 = vmul.f32 %v659, %v983
        %v1088 = vmul.f32 %v612, %v993
        %v1089 = vmul.f32 %v661, %v993
        %v1090 = vmul.f32 %v615, %v1003
        %v1091 = vmul.f32 %v664, %v1003
        %v1092 = vmul.f32 %v617, %v1013
        %v1093 = vmul.f32 %v666, %v1013
        %v1094 = vmul.f32 %v620, %v1023
        %v1095 = vmul.f32 %v669, %v1023
        %v1096 = vmul.f32 %v622, %v1033
        %v1097 = vmul.f32 %v671, %v1033
        %v1098 = vmul.f32 %v625, %v1043
        %v1099 = vmul.f32 %v674, %v1043
        %v1100 = vmul.f32 %v627, %v1053
        %v1101 = vmul.f32 %v676, %v1053
        %v1102 = vmul.f32 %v630, %v1063
        %v1103 = vmul.f32 %v679, %v1063
        %v1104 = vmul.f32 %v632, %v1073
        %v1105 = vmul.f32 %v681, %v1073
        %v1106 = vmul.f32 %v738, %v923
        %v1107 = vmul.f32 %v739, %v933
        %v1108 = vmul.f32 %v740, %v943
        %v1109 = vmul.f32 %v741, %v953
        %v1110 = vmul.f32 %v742, %v963
        %v1111 = vmul.f32 %v743, %v973
        %v1112 = vmul.f32 %v744, %v983
        %v1113 = vmul.f32 %v745, %v993
        %v1114 = vmul.f32 %v746, %v1003
        %v1115 = vmul.f32 %v747, %v1013
        %v1116 = vmul.f32 %v748, %v1023
        %v1117 = vmul.f32 %v749, %v1033
        %v1118 = vmul.f32 %v750, %v1043
        %v1119 = vmul.f32 %v751, %v1053
        %v1120 = vmul.f32 %v752, %v1063
        %v1121 = vmul.f32 %v753, %v1073
        %v1122 = vsub.f32 %v1074, %v1106
        %v1123 = vsub.f32 %v1075, %v1106
        %v1124 = vsub.f32 %v1076, %v1107
        %v1125 = vsub.f32 %v1077, %v1107
        %v1126 = vsub.f32 %v1078, %v1108
        %v1127 = vsub.f32 %v1079, %v1108
        %v1128 = vsub.f32 %v1080, %v1109
        %v1129 = vsub.f32 %v1081, %v1109
        %v1130 = vsub.f32 %v1082, %v1110
        %v1131 = vsub.f32 %v1083, %v1110
        %v1132 = vsub.f32 %v1084, %v1111
        %v1133 = vsub.f32 %v1085, %v1111
        %v1134 = vsub.f32 %v1086, %v1112
        %v1135 = vsub.f32 %v1087, %v1112
        %v1136 = vsub.f32 %v1088, %v1113
        %v1137 = vsub.f32 %v1089, %v1113
        %v1138 = vsub.f32 %v1090, %v1114
        %v1139 = vsub.f32 %v1091, %v1114
        %v1140 = vsub.f32 %v1092, %v1115
        %v1141 = vsub.f32 %v1093, %v1115
        %v1142 = vsub.f32 %v1094, %v1116
        %v1143 = vsub.f32 %v1095, %v1116
        %v1144 = vsub.f32 %v1096, %v1117
        %v1145 = vsub.f32 %v1097, %v1117
        %v1146 = vsub.f32 %v1098, %v1118
        %v1147 = vsub.f32 %v1099, %v1118
        %v1148 = vsub.f32 %v1100, %v1119
        %v1149 = vsub.f32 %v1101, %v1119
        %v1150 = vsub.f32 %v1102, %v1120
        %v1151 = vsub.f32 %v1103, %v1120
        %v1152 = vsub.f32 %v1104, %v1121
        %v1153 = vsub.f32 %v1105, %v1121
        %v1155 = vperm.slane %v450, 0
        %v1156 = vperm.slane %v450, 1
        %v1159 = vmul.f32 %v1122, %v1155
        %v1160 = vmul.f32 %v1123, %v1156
        %v1161 = vmul.f32 %v1124, %v1155
        %v1162 = vmul.f32 %v1125, %v1156
        %v1163 = vmul.f32 %v1126, %v1155
        %v1164 = vmul.f32 %v1127, %v1156
        %v1165 = vmul.f32 %v1128, %v1155
        %v1166 = vmul.f32 %v1129, %v1156
        %v1167 = vmul.f32 %v1130, %v1155
        %v1168 = vmul.f32 %v1131, %v1156
        %v1169 = vmul.f32 %v1132, %v1155
        %v1170 = vmul.f32 %v1133, %v1156
        %v1171 = vmul.f32 %v1134, %v1155
        %v1172 = vmul.f32 %v1135, %v1156
        %v1173 = vmul.f32 %v1136, %v1155
        %v1174 = vmul.f32 %v1137, %v1156
        %v1175 = vmul.f32 %v1138, %v1155
        %v1176 = vmul.f32 %v1139, %v1156
        %v1177 = vmul.f32 %v1140, %v1155
        %v1178 = vmul.f32 %v1141, %v1156
        %v1179 = vmul.f32 %v1142, %v1155
        %v1180 = vmul.f32 %v1143, %v1156
        %v1181 = vmul.f32 %v1144, %v1155
        %v1182 = vmul.f32 %v1145, %v1156
        %v1183 = vmul.f32 %v1146, %v1155
        %v1184 = vmul.f32 %v1147, %v1156
        %v1185 = vmul.f32 %v1148, %v1155
        %v1186 = vmul.f32 %v1149, %v1156
        %v1187 = vmul.f32 %v1150, %v1155
        %v1188 = vmul.f32 %v1151, %v1156
        %v1189 = vmul.f32 %v1152, %v1155
        %v1190 = vmul.f32 %v1153, %v1156
        %v1192 = vperm.slane %v451, 0
        %v1193 = vperm.slane %v451, 1
        %v1196 = vadd.f32 %v1159, %v1192
        %v1197 = vadd.f32 %v1160, %v1193
        %v1198 = vadd.f32 %v1161, %v1192
        %v1199 = vadd.f32 %v1162, %v1193
        %v1200 = vadd.f32 %v1163, %v1192
        %v1201 = vadd.f32 %v1164, %v1193
        %v1202 = vadd.f32 %v1165, %v1192
        %v1203 = vadd.f32 %v1166, %v1193
        %v1204 = vadd.f32 %v1167, %v1192
        %v1205 = vadd.f32 %v1168, %v1193
        %v1206 = vadd.f32 %v1169, %v1192
        %v1207 = vadd.f32 %v1170, %v1193
        %v1208 = vadd.f32 %v1171, %v1192
        %v1209 = vadd.f32 %v1172, %v1193
        %v1210 = vadd.f32 %v1173, %v1192
        %v1211 = vadd.f32 %v1174, %v1193
        %v1212 = vadd.f32 %v1175, %v1192
        %v1213 = vadd.f32 %v1176, %v1193
        %v1214 = vadd.f32 %v1177, %v1192
        %v1215 = vadd.f32 %v1178, %v1193
        %v1216 = vadd.f32 %v1179, %v1192
        %v1217 = vadd.f32 %v1180, %v1193
        %v1218 = vadd.f32 %v1181, %v1192
        %v1219 = vadd.f32 %v1182, %v1193
        %v1220 = vadd.f32 %v1183, %v1192
        %v1221 = vadd.f32 %v1184, %v1193
        %v1222 = vadd.f32 %v1185, %v1192
        %v1223 = vadd.f32 %v1186, %v1193
        %v1224 = vadd.f32 %v1187, %v1192
        %v1225 = vadd.f32 %v1188, %v1193
        %v1226 = vadd.f32 %v1189, %v1192
        %v1227 = vadd.f32 %v1190, %v1193
        %v1228 = vmax.f32 %v1196, 0.0
        %v1229 = vmax.f32 %v1197, 0.0
        %v1230 = vmax.f32 %v1198, 0.0
        %v1231 = vmax.f32 %v1199, 0.0
        %v1232 = vmax.f32 %v1200, 0.0
        %v1233 = vmax.f32 %v1201, 0.0
        %v1234 = vmax.f32 %v1202, 0.0
        %v1235 = vmax.f32 %v1203, 0.0
        %v1236 = vmax.f32 %v1204, 0.0
        %v1237 = vmax.f32 %v1205, 0.0
        %v1238 = vmax.f32 %v1206, 0.0
        %v1239 = vmax.f32 %v1207, 0.0
        %v1240 = vmax.f32 %v1208, 0.0
        %v1241 = vmax.f32 %v1209, 0.0
        %v1242 = vmax.f32 %v1210, 0.0
        %v1243 = vmax.f32 %v1211, 0.0
        %v1244 = vmax.f32 %v1212, 0.0
        %v1245 = vmax.f32 %v1213, 0.0
        %v1246 = vmax.f32 %v1214, 0.0
        %v1247 = vmax.f32 %v1215, 0.0
        %v1248 = vmax.f32 %v1216, 0.0
        %v1249 = vmax.f32 %v1217, 0.0
        %v1250 = vmax.f32 %v1218, 0.0
        %v1251 = vmax.f32 %v1219, 0.0
        %v1252 = vmax.f32 %v1220, 0.0
        %v1253 = vmax.f32 %v1221, 0.0
        %v1254 = vmax.f32 %v1222, 0.0
        %v1255 = vmax.f32 %v1223, 0.0
        %v1256 = vmax.f32 %v1224, 0.0
        %v1257 = vmax.f32 %v1225, 0.0
        %v1258 = vmax.f32 %v1226, 0.0
        %v1259 = vmax.f32 %v1227, 0.0
        %v1260 = vpack.c.bf16 %v1230, %v1228
        %v1261 = vpack.c.bf16 %v1231, %v1229
        %v1262 = vpack.c.bf16 %v1234, %v1232
        %v1263 = vpack.c.bf16 %v1235, %v1233
        %v1264 = vpack.c.bf16 %v1238, %v1236
        %v1265 = vpack.c.bf16 %v1239, %v1237
        %v1266 = vpack.c.bf16 %v1242, %v1240
        %v1267 = vpack.c.bf16 %v1243, %v1241
        %v1268 = vpack.c.bf16 %v1246, %v1244
        %v1269 = vpack.c.bf16 %v1247, %v1245
        %v1270 = vpack.c.bf16 %v1250, %v1248
        %v1271 = vpack.c.bf16 %v1251, %v1249
        %v1272 = vpack.c.bf16 %v1254, %v1252
        %v1273 = vpack.c.bf16 %v1255, %v1253
        %v1274 = vpack.c.bf16 %v1258, %v1256
        %v1275 = vpack.c.bf16 %v1259, %v1257
        %v1276 = vld [vmem:[#allocation10] sm:$0xf]
        %v1277 = vld [vmem:[#allocation10 + $0x4] sm:$0xf]
        %v1278 = vld [vmem:[#allocation10 + $0x8] sm:$0xf]
        %v1279 = vld [vmem:[#allocation10 + $0xc] sm:$0xf]
        %v1280 = vld [vmem:[#allocation10 + $0x10] sm:$0xf]
        %v1281 = vld [vmem:[#allocation10 + $0x14] sm:$0xf]
        %v1282 = vld [vmem:[#allocation10 + $0x18] sm:$0xf]
        %v1283 = vld [vmem:[#allocation10 + $0x1c] sm:$0xf]
        %v1284 = vld [vmem:[#allocation10 + $0x20] sm:$0xf]
        %v1285 = vld [vmem:[#allocation10 + $0x24] sm:$0xf]
        %v1286 = vld [vmem:[#allocation10 + $0x28] sm:$0xf]
        %v1287 = vld [vmem:[#allocation10 + $0x2c] sm:$0xf]
        %v1288 = vld [vmem:[#allocation10 + $0x30] sm:$0xf]
        %v1289 = vld [vmem:[#allocation10 + $0x34] sm:$0xf]
        %v1290 = vld [vmem:[#allocation10 + $0x38] sm:$0xf]
        %v1291 = vld [vmem:[#allocation10 + $0x3c] sm:$0xf]
        %v1292 = vld [vmem:[#allocation10 + $0x40] sm:$0xf]
        %v1293 = vld [vmem:[#allocation10 + $0x44] sm:$0xf]
        %v1294 = vld [vmem:[#allocation10 + $0x48] sm:$0xf]
        %v1295 = vld [vmem:[#allocation10 + $0x4c] sm:$0xf]
        %v1296 = vld [vmem:[#allocation10 + $0x50] sm:$0xf]
        %v1297 = vld [vmem:[#allocation10 + $0x54] sm:$0xf]
        %v1298 = vld [vmem:[#allocation10 + $0x58] sm:$0xf]
        %v1299 = vld [vmem:[#allocation10 + $0x5c] sm:$0xf]
        %v1300 = vld [vmem:[#allocation10 + $0x60] sm:$0xf]
        %v1301 = vld [vmem:[#allocation10 + $0x64] sm:$0xf]
        %v1302 = vld [vmem:[#allocation10 + $0x68] sm:$0xf]
        %v1303 = vld [vmem:[#allocation10 + $0x6c] sm:$0xf]
        %v1304 = vld [vmem:[#allocation10 + $0x70] sm:$0xf]
        %v1305 = vld [vmem:[#allocation10 + $0x74] sm:$0xf]
        %v1306 = vld [vmem:[#allocation10 + $0x78] sm:$0xf]
        %v1307 = vld [vmem:[#allocation10 + $0x7c] sm:$0xf]
        %v1308 = vld [vmem:[%s6] sm:$0x1]
        %v1309 = vld [vmem:[%s7] sm:$0x1]
        %v1310 = vld [vmem:[%s8] sm:$0x1]
        %v1312 = vperm.slane %v1308, 0
        %v1346 = vunpack.c.l.b16 %v1276
        %v1347 = vunpack.c.l.b16 %v1277
        %v1348 = vunpack.c.l.b16 %v1278
        %v1349 = vunpack.c.l.b16 %v1279
        %v1350 = vunpack.c.l.b16 %v1280
        %v1351 = vunpack.c.l.b16 %v1281
        %v1352 = vunpack.c.l.b16 %v1282
        %v1353 = vunpack.c.l.b16 %v1283
        %v1354 = vunpack.c.l.b16 %v1284
        %v1355 = vunpack.c.l.b16 %v1285
        %v1356 = vunpack.c.l.b16 %v1286
        %v1357 = vunpack.c.l.b16 %v1287
        %v1358 = vunpack.c.l.b16 %v1288
        %v1359 = vunpack.c.l.b16 %v1289
        %v1360 = vunpack.c.l.b16 %v1290
        %v1361 = vunpack.c.l.b16 %v1291
        %v1362 = vunpack.c.l.b16 %v1292
        %v1363 = vunpack.c.l.b16 %v1293
        %v1364 = vunpack.c.l.b16 %v1294
        %v1365 = vunpack.c.l.b16 %v1295
        %v1366 = vunpack.c.l.b16 %v1296
        %v1367 = vunpack.c.l.b16 %v1297
        %v1368 = vunpack.c.l.b16 %v1298
        %v1369 = vunpack.c.l.b16 %v1299
        %v1370 = vunpack.c.l.b16 %v1300
        %v1371 = vunpack.c.l.b16 %v1301
        %v1372 = vunpack.c.l.b16 %v1302
        %v1373 = vunpack.c.l.b16 %v1303
        %v1374 = vunpack.c.l.b16 %v1304
        %v1375 = vunpack.c.l.b16 %v1305
        %v1376 = vunpack.c.l.b16 %v1306
        %v1377 = vunpack.c.l.b16 %v1307
        %v1378 = vpack.c.b16 %v1347, %v1346
        %v1379 = vpack.c.b16 %v1349, %v1348
        %v1380 = vpack.c.b16 %v1351, %v1350
        %v1381 = vpack.c.b16 %v1353, %v1352
        %v1382 = vpack.c.b16 %v1355, %v1354
        %v1383 = vpack.c.b16 %v1357, %v1356
        %v1384 = vpack.c.b16 %v1359, %v1358
        %v1385 = vpack.c.b16 %v1361, %v1360
        %v1386 = vpack.c.b16 %v1363, %v1362
        %v1387 = vpack.c.b16 %v1365, %v1364
        %v1388 = vpack.c.b16 %v1367, %v1366
        %v1389 = vpack.c.b16 %v1369, %v1368
        %v1390 = vpack.c.b16 %v1371, %v1370
        %v1391 = vpack.c.b16 %v1373, %v1372
        %v1392 = vpack.c.b16 %v1375, %v1374
        %v1393 = vpack.c.b16 %v1377, %v1376
        %1410 = vmatpush.bf16.msra.mxu0 %v1385
        %1411 = vmatpush.bf16.msra.mxu0 %v1384
        %1412 = vmatpush.bf16.msra.mxu0 %v1383
        %1413 = vmatpush.bf16.msra.mxu0 %v1382
        %1414 = vmatpush.bf16.msra.mxu0 %v1381
        %1415 = vmatpush.bf16.msra.mxu0 %v1380
        %1416 = vmatpush.bf16.msra.mxu0 %v1379
        %1417 = vmatpush.bf16.msra.mxu0 %v1378
        %1418 = vmatmul.bf16.gmra.mxu0 %v1260
        %v1419 = vpop.f32.mrf.mxu0
        %v1420 = vadd.f32 %v1312, %v1419
        %v1421 = vpop.f32.mrf.mxu0
        %v1422 = vadd.f32 %v1312, %v1421
        %1423 = vmatmul.bf16.gmra.mxu0 %v1262
        %v1424 = vpop.f32.mrf.mxu0
        %v1425 = vadd.f32 %v1312, %v1424
        %v1426 = vpop.f32.mrf.mxu0
        %v1427 = vadd.f32 %v1312, %v1426
        %1428 = vmatmul.bf16.gmra.mxu0 %v1264
        %v1429 = vpop.f32.mrf.mxu0
        %v1430 = vadd.f32 %v1312, %v1429
        %v1431 = vpop.f32.mrf.mxu0
        %v1432 = vadd.f32 %v1312, %v1431
        %1433 = vmatmul.bf16.gmra.mxu0 %v1266
        %v1434 = vpop.f32.mrf.mxu0
        %v1435 = vadd.f32 %v1312, %v1434
        %v1436 = vpop.f32.mrf.mxu0
        %v1437 = vadd.f32 %v1312, %v1436
        %1438 = vmatmul.bf16.gmra.mxu0 %v1268
        %v1439 = vpop.f32.mrf.mxu0
        %v1440 = vadd.f32 %v1312, %v1439
        %v1441 = vpop.f32.mrf.mxu0
        %v1442 = vadd.f32 %v1312, %v1441
        %1443 = vmatmul.bf16.gmra.mxu0 %v1270
        %v1444 = vpop.f32.mrf.mxu0
        %v1445 = vadd.f32 %v1312, %v1444
        %v1446 = vpop.f32.mrf.mxu0
        %v1447 = vadd.f32 %v1312, %v1446
        %1448 = vmatmul.bf16.gmra.mxu0 %v1272
        %v1449 = vpop.f32.mrf.mxu0
        %v1450 = vadd.f32 %v1312, %v1449
        %v1451 = vpop.f32.mrf.mxu0
        %v1452 = vadd.f32 %v1312, %v1451
        %1453 = vmatmul.bf16.gmra.mxu0 %v1274
        %v1454 = vpop.f32.mrf.mxu0
        %v1455 = vadd.f32 %v1312, %v1454
        %v1456 = vpop.f32.mrf.mxu0
        %v1457 = vadd.f32 %v1312, %v1456
        %1458 = vdwg.mxu0
        %1459 = vmatpush.bf16.msra.mxu0 %v1393
        %1460 = vmatpush.bf16.msra.mxu0 %v1392
        %1461 = vmatpush.bf16.msra.mxu0 %v1391
        %1462 = vmatpush.bf16.msra.mxu0 %v1390
        %1463 = vmatpush.bf16.msra.mxu0 %v1389
        %1464 = vmatpush.bf16.msra.mxu0 %v1388
        %1465 = vmatpush.bf16.msra.mxu0 %v1387
        %1466 = vmatpush.bf16.msra.mxu0 %v1386
        %1467 = vmatmul.bf16.gmra.mxu0 %v1261
        %v1468 = vpop.f32.mrf.mxu0
        %v1469 = vadd.f32 %v1420, %v1468
        %v1470 = vpop.f32.mrf.mxu0
        %v1471 = vadd.f32 %v1422, %v1470
        %1472 = vmatmul.bf16.gmra.mxu0 %v1263
        %v1473 = vpop.f32.mrf.mxu0
        %v1474 = vadd.f32 %v1425, %v1473
        %v1475 = vpop.f32.mrf.mxu0
        %v1476 = vadd.f32 %v1427, %v1475
        %1477 = vmatmul.bf16.gmra.mxu0 %v1265
        %v1478 = vpop.f32.mrf.mxu0
        %v1479 = vadd.f32 %v1430, %v1478
        %v1480 = vpop.f32.mrf.mxu0
        %v1481 = vadd.f32 %v1432, %v1480
        %1482 = vmatmul.bf16.gmra.mxu0 %v1267
        %v1483 = vpop.f32.mrf.mxu0
        %v1484 = vadd.f32 %v1435, %v1483
        %v1485 = vpop.f32.mrf.mxu0
        %v1486 = vadd.f32 %v1437, %v1485
        %1487 = vmatmul.bf16.gmra.mxu0 %v1269
        %v1488 = vpop.f32.mrf.mxu0
        %v1489 = vadd.f32 %v1440, %v1488
        %v1490 = vpop.f32.mrf.mxu0
        %v1491 = vadd.f32 %v1442, %v1490
        %1492 = vmatmul.bf16.gmra.mxu0 %v1271
        %v1493 = vpop.f32.mrf.mxu0
        %v1494 = vadd.f32 %v1445, %v1493
        %v1495 = vpop.f32.mrf.mxu0
        %v1496 = vadd.f32 %v1447, %v1495
        %1497 = vmatmul.bf16.gmra.mxu0 %v1273
        %v1498 = vpop.f32.mrf.mxu0
        %v1499 = vadd.f32 %v1450, %v1498
        %v1500 = vpop.f32.mrf.mxu0
        %v1501 = vadd.f32 %v1452, %v1500
        %1502 = vmatmul.bf16.gmra.mxu0 %v1275
        %v1503 = vpop.f32.mrf.mxu0
        %v1504 = vadd.f32 %v1455, %v1503
        %v1505 = vpop.f32.mrf.mxu0
        %v1506 = vadd.f32 %v1457, %v1505
        %1507 = vdwg.mxu0
        %1508 = vadd.xlane.f32.xlu0 %v1469
        %v1509 = vpop.xlane.xlu0 %1508
        %1510 = vadd.xlane.f32.xlu0 %v1471
        %v1511 = vpop.xlane.xlu0 %1510
        %1512 = vadd.xlane.f32.xlu0 %v1474
        %v1513 = vpop.xlane.xlu0 %1512
        %1514 = vadd.xlane.f32.xlu0 %v1476
        %v1515 = vpop.xlane.xlu0 %1514
        %1516 = vadd.xlane.f32.xlu0 %v1479
        %v1517 = vpop.xlane.xlu0 %1516
        %1518 = vadd.xlane.f32.xlu0 %v1481
        %v1519 = vpop.xlane.xlu0 %1518
        %1520 = vadd.xlane.f32.xlu0 %v1484
        %v1521 = vpop.xlane.xlu0 %1520
        %1522 = vadd.xlane.f32.xlu0 %v1486
        %v1523 = vpop.xlane.xlu0 %1522
        %1524 = vadd.xlane.f32.xlu0 %v1489
        %v1525 = vpop.xlane.xlu0 %1524
        %1526 = vadd.xlane.f32.xlu0 %v1491
        %v1527 = vpop.xlane.xlu0 %1526
        %1528 = vadd.xlane.f32.xlu0 %v1494
        %v1529 = vpop.xlane.xlu0 %1528
        %1530 = vadd.xlane.f32.xlu0 %v1496
        %v1531 = vpop.xlane.xlu0 %1530
        %1532 = vadd.xlane.f32.xlu0 %v1499
        %v1533 = vpop.xlane.xlu0 %1532
        %1534 = vadd.xlane.f32.xlu0 %v1501
        %v1535 = vpop.xlane.xlu0 %1534
        %1536 = vadd.xlane.f32.xlu0 %v1504
        %v1537 = vpop.xlane.xlu0 %1536
        %1538 = vadd.xlane.f32.xlu0 %v1506
        %v1539 = vpop.xlane.xlu0 %1538
        %v1540 = vrcp.pop 128.0
        %v1541 = vmul.f32 128.0, %v1540
        %v1542 = vsub.f32 1.0, %v1541
        %v1543 = vmul.f32 %v1540, %v1542
        %v1544 = vadd.f32 %v1540, %v1543
        %vm1545 = vweird.f32 %v1540
        %v1546 = vsel %vm1545, %v1540, %v1544
        %v1547 = vmul.f32 %v1509, %v1546
        %v1548 = vmul.f32 %v1511, %v1546
        %v1549 = vmul.f32 %v1513, %v1546
        %v1550 = vmul.f32 %v1515, %v1546
        %v1551 = vmul.f32 %v1517, %v1546
        %v1552 = vmul.f32 %v1519, %v1546
        %v1553 = vmul.f32 %v1521, %v1546
        %v1554 = vmul.f32 %v1523, %v1546
        %v1555 = vmul.f32 %v1525, %v1546
        %v1556 = vmul.f32 %v1527, %v1546
        %v1557 = vmul.f32 %v1529, %v1546
        %v1558 = vmul.f32 %v1531, %v1546
        %v1559 = vmul.f32 %v1533, %v1546
        %v1560 = vmul.f32 %v1535, %v1546
        %v1561 = vmul.f32 %v1537, %v1546
        %v1562 = vmul.f32 %v1539, %v1546
        %v1563 = vmul.f32 %v1469, %v1469
        %v1564 = vmul.f32 %v1471, %v1471
        %v1565 = vmul.f32 %v1474, %v1474
        %v1566 = vmul.f32 %v1476, %v1476
        %v1567 = vmul.f32 %v1479, %v1479
        %v1568 = vmul.f32 %v1481, %v1481
        %v1569 = vmul.f32 %v1484, %v1484
        %v1570 = vmul.f32 %v1486, %v1486
        %v1571 = vmul.f32 %v1489, %v1489
        %v1572 = vmul.f32 %v1491, %v1491
        %v1573 = vmul.f32 %v1494, %v1494
        %v1574 = vmul.f32 %v1496, %v1496
        %v1575 = vmul.f32 %v1499, %v1499
        %v1576 = vmul.f32 %v1501, %v1501
        %v1577 = vmul.f32 %v1504, %v1504
        %v1578 = vmul.f32 %v1506, %v1506
        %1579 = vadd.xlane.f32.xlu0 %v1563
        %v1580 = vpop.xlane.xlu0 %1579
        %1581 = vadd.xlane.f32.xlu0 %v1564
        %v1582 = vpop.xlane.xlu0 %1581
        %1583 = vadd.xlane.f32.xlu0 %v1565
        %v1584 = vpop.xlane.xlu0 %1583
        %1585 = vadd.xlane.f32.xlu0 %v1566
        %v1586 = vpop.xlane.xlu0 %1585
        %1587 = vadd.xlane.f32.xlu0 %v1567
        %v1588 = vpop.xlane.xlu0 %1587
        %1589 = vadd.xlane.f32.xlu0 %v1568
        %v1590 = vpop.xlane.xlu0 %1589
        %1591 = vadd.xlane.f32.xlu0 %v1569
        %v1592 = vpop.xlane.xlu0 %1591
        %1593 = vadd.xlane.f32.xlu0 %v1570
        %v1594 = vpop.xlane.xlu0 %1593
        %1595 = vadd.xlane.f32.xlu0 %v1571
        %v1596 = vpop.xlane.xlu0 %1595
        %1597 = vadd.xlane.f32.xlu0 %v1572
        %v1598 = vpop.xlane.xlu0 %1597
        %1599 = vadd.xlane.f32.xlu0 %v1573
        %v1600 = vpop.xlane.xlu0 %1599
        %1601 = vadd.xlane.f32.xlu0 %v1574
        %v1602 = vpop.xlane.xlu0 %1601
        %1603 = vadd.xlane.f32.xlu0 %v1575
        %v1604 = vpop.xlane.xlu0 %1603
        %1605 = vadd.xlane.f32.xlu0 %v1576
        %v1606 = vpop.xlane.xlu0 %1605
        %1607 = vadd.xlane.f32.xlu0 %v1577
        %v1608 = vpop.xlane.xlu0 %1607
        %1609 = vadd.xlane.f32.xlu0 %v1578
        %v1610 = vpop.xlane.xlu0 %1609
        %v1611 = vmul.f32 %v1580, %v1546
        %v1612 = vmul.f32 %v1582, %v1546
        %v1613 = vmul.f32 %v1584, %v1546
        %v1614 = vmul.f32 %v1586, %v1546
        %v1615 = vmul.f32 %v1588, %v1546
        %v1616 = vmul.f32 %v1590, %v1546
        %v1617 = vmul.f32 %v1592, %v1546
        %v1618 = vmul.f32 %v1594, %v1546
        %v1619 = vmul.f32 %v1596, %v1546
        %v1620 = vmul.f32 %v1598, %v1546
        %v1621 = vmul.f32 %v1600, %v1546
        %v1622 = vmul.f32 %v1602, %v1546
        %v1623 = vmul.f32 %v1604, %v1546
        %v1624 = vmul.f32 %v1606, %v1546
        %v1625 = vmul.f32 %v1608, %v1546
        %v1626 = vmul.f32 %v1610, %v1546
        %v1627 = vmul.f32 %v1547, %v1547
        %v1628 = vmul.f32 %v1548, %v1548
        %v1629 = vmul.f32 %v1549, %v1549
        %v1630 = vmul.f32 %v1550, %v1550
        %v1631 = vmul.f32 %v1551, %v1551
        %v1632 = vmul.f32 %v1552, %v1552
        %v1633 = vmul.f32 %v1553, %v1553
        %v1634 = vmul.f32 %v1554, %v1554
        %v1635 = vmul.f32 %v1555, %v1555
        %v1636 = vmul.f32 %v1556, %v1556
        %v1637 = vmul.f32 %v1557, %v1557
        %v1638 = vmul.f32 %v1558, %v1558
        %v1639 = vmul.f32 %v1559, %v1559
        %v1640 = vmul.f32 %v1560, %v1560
        %v1641 = vmul.f32 %v1561, %v1561
        %v1642 = vmul.f32 %v1562, %v1562
        %v1643 = vsub.f32 %v1611, %v1627
        %v1644 = vsub.f32 %v1612, %v1628
        %v1645 = vsub.f32 %v1613, %v1629
        %v1646 = vsub.f32 %v1614, %v1630
        %v1647 = vsub.f32 %v1615, %v1631
        %v1648 = vsub.f32 %v1616, %v1632
        %v1649 = vsub.f32 %v1617, %v1633
        %v1650 = vsub.f32 %v1618, %v1634
        %v1651 = vsub.f32 %v1619, %v1635
        %v1652 = vsub.f32 %v1620, %v1636
        %v1653 = vsub.f32 %v1621, %v1637
        %v1654 = vsub.f32 %v1622, %v1638
        %v1655 = vsub.f32 %v1623, %v1639
        %v1656 = vsub.f32 %v1624, %v1640
        %v1657 = vsub.f32 %v1625, %v1641
        %v1658 = vsub.f32 %v1626, %v1642
        %v1659 = vmax.f32 %v1643, 0.0
        %v1660 = vmax.f32 %v1644, 0.0
        %v1661 = vmax.f32 %v1645, 0.0
        %v1662 = vmax.f32 %v1646, 0.0
        %v1663 = vmax.f32 %v1647, 0.0
        %v1664 = vmax.f32 %v1648, 0.0
        %v1665 = vmax.f32 %v1649, 0.0
        %v1666 = vmax.f32 %v1650, 0.0
        %v1667 = vmax.f32 %v1651, 0.0
        %v1668 = vmax.f32 %v1652, 0.0
        %v1669 = vmax.f32 %v1653, 0.0
        %v1670 = vmax.f32 %v1654, 0.0
        %v1671 = vmax.f32 %v1655, 0.0
        %v1672 = vmax.f32 %v1656, 0.0
        %v1673 = vmax.f32 %v1657, 0.0
        %v1674 = vmax.f32 %v1658, 0.0
        %v1675 = vadd.f32 %v1659, 1e-05
        %v1676 = vadd.f32 %v1660, 1e-05
        %v1677 = vadd.f32 %v1661, 1e-05
        %v1678 = vadd.f32 %v1662, 1e-05
        %v1679 = vadd.f32 %v1663, 1e-05
        %v1680 = vadd.f32 %v1664, 1e-05
        %v1681 = vadd.f32 %v1665, 1e-05
        %v1682 = vadd.f32 %v1666, 1e-05
        %v1683 = vadd.f32 %v1667, 1e-05
        %v1684 = vadd.f32 %v1668, 1e-05
        %v1685 = vadd.f32 %v1669, 1e-05
        %v1686 = vadd.f32 %v1670, 1e-05
        %v1687 = vadd.f32 %v1671, 1e-05
        %v1688 = vadd.f32 %v1672, 1e-05
        %v1689 = vadd.f32 %v1673, 1e-05
        %v1690 = vadd.f32 %v1674, 1e-05
        %v1691 = vrsqrt.pop %v1675
        %v1692 = vmul.f32 %v1691, %v1675
        %v1693 = vmul.f32 %v1692, %v1691
        %v1694 = vmul.f32 0.5, %v1693
        %v1695 = vsub.f32 1.5, %v1694
        %v1696 = vmul.f32 %v1691, %v1695
        %vm1697 = vweird.f32 %v1675
        %vm1698 = vweird.f32 %v1691
        %vm1699 = vmor %vm1697, %vm1698
        %v1700 = vsel %vm1699, %v1691, %v1696
        %v1701 = vrsqrt.pop %v1676
        %v1702 = vmul.f32 %v1701, %v1676
        %v1703 = vmul.f32 %v1702, %v1701
        %v1704 = vmul.f32 0.5, %v1703
        %v1705 = vsub.f32 1.5, %v1704
        %v1706 = vmul.f32 %v1701, %v1705
        %vm1707 = vweird.f32 %v1676
        %vm1708 = vweird.f32 %v1701
        %vm1709 = vmor %vm1707, %vm1708
        %v1710 = vsel %vm1709, %v1701, %v1706
        %v1711 = vrsqrt.pop %v1677
        %v1712 = vmul.f32 %v1711, %v1677
        %v1713 = vmul.f32 %v1712, %v1711
        %v1714 = vmul.f32 0.5, %v1713
        %v1715 = vsub.f32 1.5, %v1714
        %v1716 = vmul.f32 %v1711, %v1715
        %vm1717 = vweird.f32 %v1677
        %vm1718 = vweird.f32 %v1711
        %vm1719 = vmor %vm1717, %vm1718
        %v1720 = vsel %vm1719, %v1711, %v1716
        %v1721 = vrsqrt.pop %v1678
        %v1722 = vmul.f32 %v1721, %v1678
        %v1723 = vmul.f32 %v1722, %v1721
        %v1724 = vmul.f32 0.5, %v1723
        %v1725 = vsub.f32 1.5, %v1724
        %v1726 = vmul.f32 %v1721, %v1725
        %vm1727 = vweird.f32 %v1678
        %vm1728 = vweird.f32 %v1721
        %vm1729 = vmor %vm1727, %vm1728
        %v1730 = vsel %vm1729, %v1721, %v1726
        %v1731 = vrsqrt.pop %v1679
        %v1732 = vmul.f32 %v1731, %v1679
        %v1733 = vmul.f32 %v1732, %v1731
        %v1734 = vmul.f32 0.5, %v1733
        %v1735 = vsub.f32 1.5, %v1734
        %v1736 = vmul.f32 %v1731, %v1735
        %vm1737 = vweird.f32 %v1679
        %vm1738 = vweird.f32 %v1731
        %vm1739 = vmor %vm1737, %vm1738
        %v1740 = vsel %vm1739, %v1731, %v1736
        %v1741 = vrsqrt.pop %v1680
        %v1742 = vmul.f32 %v1741, %v1680
        %v1743 = vmul.f32 %v1742, %v1741
        %v1744 = vmul.f32 0.5, %v1743
        %v1745 = vsub.f32 1.5, %v1744
        %v1746 = vmul.f32 %v1741, %v1745
        %vm1747 = vweird.f32 %v1680
        %vm1748 = vweird.f32 %v1741
        %vm1749 = vmor %vm1747, %vm1748
        %v1750 = vsel %vm1749, %v1741, %v1746
        %v1751 = vrsqrt.pop %v1681
        %v1752 = vmul.f32 %v1751, %v1681
        %v1753 = vmul.f32 %v1752, %v1751
        %v1754 = vmul.f32 0.5, %v1753
        %v1755 = vsub.f32 1.5, %v1754
        %v1756 = vmul.f32 %v1751, %v1755
        %vm1757 = vweird.f32 %v1681
        %vm1758 = vweird.f32 %v1751
        %vm1759 = vmor %vm1757, %vm1758
        %v1760 = vsel %vm1759, %v1751, %v1756
        %v1761 = vrsqrt.pop %v1682
        %v1762 = vmul.f32 %v1761, %v1682
        %v1763 = vmul.f32 %v1762, %v1761
        %v1764 = vmul.f32 0.5, %v1763
        %v1765 = vsub.f32 1.5, %v1764
        %v1766 = vmul.f32 %v1761, %v1765
        %vm1767 = vweird.f32 %v1682
        %vm1768 = vweird.f32 %v1761
        %vm1769 = vmor %vm1767, %vm1768
        %v1770 = vsel %vm1769, %v1761, %v1766
        %v1771 = vrsqrt.pop %v1683
        %v1772 = vmul.f32 %v1771, %v1683
        %v1773 = vmul.f32 %v1772, %v1771
        %v1774 = vmul.f32 0.5, %v1773
        %v1775 = vsub.f32 1.5, %v1774
        %v1776 = vmul.f32 %v1771, %v1775
        %vm1777 = vweird.f32 %v1683
        %vm1778 = vweird.f32 %v1771
        %vm1779 = vmor %vm1777, %vm1778
        %v1780 = vsel %vm1779, %v1771, %v1776
        %v1781 = vrsqrt.pop %v1684
        %v1782 = vmul.f32 %v1781, %v1684
        %v1783 = vmul.f32 %v1782, %v1781
        %v1784 = vmul.f32 0.5, %v1783
        %v1785 = vsub.f32 1.5, %v1784
        %v1786 = vmul.f32 %v1781, %v1785
        %vm1787 = vweird.f32 %v1684
        %vm1788 = vweird.f32 %v1781
        %vm1789 = vmor %vm1787, %vm1788
        %v1790 = vsel %vm1789, %v1781, %v1786
        %v1791 = vrsqrt.pop %v1685
        %v1792 = vmul.f32 %v1791, %v1685
        %v1793 = vmul.f32 %v1792, %v1791
        %v1794 = vmul.f32 0.5, %v1793
        %v1795 = vsub.f32 1.5, %v1794
        %v1796 = vmul.f32 %v1791, %v1795
        %vm1797 = vweird.f32 %v1685
        %vm1798 = vweird.f32 %v1791
        %vm1799 = vmor %vm1797, %vm1798
        %v1800 = vsel %vm1799, %v1791, %v1796
        %v1801 = vrsqrt.pop %v1686
        %v1802 = vmul.f32 %v1801, %v1686
        %v1803 = vmul.f32 %v1802, %v1801
        %v1804 = vmul.f32 0.5, %v1803
        %v1805 = vsub.f32 1.5, %v1804
        %v1806 = vmul.f32 %v1801, %v1805
        %vm1807 = vweird.f32 %v1686
        %vm1808 = vweird.f32 %v1801
        %vm1809 = vmor %vm1807, %vm1808
        %v1810 = vsel %vm1809, %v1801, %v1806
        %v1811 = vrsqrt.pop %v1687
        %v1812 = vmul.f32 %v1811, %v1687
        %v1813 = vmul.f32 %v1812, %v1811
        %v1814 = vmul.f32 0.5, %v1813
        %v1815 = vsub.f32 1.5, %v1814
        %v1816 = vmul.f32 %v1811, %v1815
        %vm1817 = vweird.f32 %v1687
        %vm1818 = vweird.f32 %v1811
        %vm1819 = vmor %vm1817, %vm1818
        %v1820 = vsel %vm1819, %v1811, %v1816
        %v1821 = vrsqrt.pop %v1688
        %v1822 = vmul.f32 %v1821, %v1688
        %v1823 = vmul.f32 %v1822, %v1821
        %v1824 = vmul.f32 0.5, %v1823
        %v1825 = vsub.f32 1.5, %v1824
        %v1826 = vmul.f32 %v1821, %v1825
        %vm1827 = vweird.f32 %v1688
        %vm1828 = vweird.f32 %v1821
        %vm1829 = vmor %vm1827, %vm1828
        %v1830 = vsel %vm1829, %v1821, %v1826
        %v1831 = vrsqrt.pop %v1689
        %v1832 = vmul.f32 %v1831, %v1689
        %v1833 = vmul.f32 %v1832, %v1831
        %v1834 = vmul.f32 0.5, %v1833
        %v1835 = vsub.f32 1.5, %v1834
        %v1836 = vmul.f32 %v1831, %v1835
        %vm1837 = vweird.f32 %v1689
        %vm1838 = vweird.f32 %v1831
        %vm1839 = vmor %vm1837, %vm1838
        %v1840 = vsel %vm1839, %v1831, %v1836
        %v1841 = vrsqrt.pop %v1690
        %v1842 = vmul.f32 %v1841, %v1690
        %v1843 = vmul.f32 %v1842, %v1841
        %v1844 = vmul.f32 0.5, %v1843
        %v1845 = vsub.f32 1.5, %v1844
        %v1846 = vmul.f32 %v1841, %v1845
        %vm1847 = vweird.f32 %v1690
        %vm1848 = vweird.f32 %v1841
        %vm1849 = vmor %vm1847, %vm1848
        %v1850 = vsel %vm1849, %v1841, %v1846
        %v1851 = vmul.f32 %v1469, %v1700
        %v1852 = vmul.f32 %v1471, %v1710
        %v1853 = vmul.f32 %v1474, %v1720
        %v1854 = vmul.f32 %v1476, %v1730
        %v1855 = vmul.f32 %v1479, %v1740
        %v1856 = vmul.f32 %v1481, %v1750
        %v1857 = vmul.f32 %v1484, %v1760
        %v1858 = vmul.f32 %v1486, %v1770
        %v1859 = vmul.f32 %v1489, %v1780
        %v1860 = vmul.f32 %v1491, %v1790
        %v1861 = vmul.f32 %v1494, %v1800
        %v1862 = vmul.f32 %v1496, %v1810
        %v1863 = vmul.f32 %v1499, %v1820
        %v1864 = vmul.f32 %v1501, %v1830
        %v1865 = vmul.f32 %v1504, %v1840
        %v1866 = vmul.f32 %v1506, %v1850
        %v1867 = vmul.f32 %v1547, %v1700
        %v1868 = vmul.f32 %v1548, %v1710
        %v1869 = vmul.f32 %v1549, %v1720
        %v1870 = vmul.f32 %v1550, %v1730
        %v1871 = vmul.f32 %v1551, %v1740
        %v1872 = vmul.f32 %v1552, %v1750
        %v1873 = vmul.f32 %v1553, %v1760
        %v1874 = vmul.f32 %v1554, %v1770
        %v1875 = vmul.f32 %v1555, %v1780
        %v1876 = vmul.f32 %v1556, %v1790
        %v1877 = vmul.f32 %v1557, %v1800
        %v1878 = vmul.f32 %v1558, %v1810
        %v1879 = vmul.f32 %v1559, %v1820
        %v1880 = vmul.f32 %v1560, %v1830
        %v1881 = vmul.f32 %v1561, %v1840
        %v1882 = vmul.f32 %v1562, %v1850
        %v1883 = vsub.f32 %v1851, %v1867
        %v1884 = vsub.f32 %v1852, %v1868
        %v1885 = vsub.f32 %v1853, %v1869
        %v1886 = vsub.f32 %v1854, %v1870
        %v1887 = vsub.f32 %v1855, %v1871
        %v1888 = vsub.f32 %v1856, %v1872
        %v1889 = vsub.f32 %v1857, %v1873
        %v1890 = vsub.f32 %v1858, %v1874
        %v1891 = vsub.f32 %v1859, %v1875
        %v1892 = vsub.f32 %v1860, %v1876
        %v1893 = vsub.f32 %v1861, %v1877
        %v1894 = vsub.f32 %v1862, %v1878
        %v1895 = vsub.f32 %v1863, %v1879
        %v1896 = vsub.f32 %v1864, %v1880
        %v1897 = vsub.f32 %v1865, %v1881
        %v1898 = vsub.f32 %v1866, %v1882
        %v1900 = vperm.slane %v1309, 0
        %v1902 = vmul.f32 %v1883, %v1900
        %v1903 = vmul.f32 %v1884, %v1900
        %v1904 = vmul.f32 %v1885, %v1900
        %v1905 = vmul.f32 %v1886, %v1900
        %v1906 = vmul.f32 %v1887, %v1900
        %v1907 = vmul.f32 %v1888, %v1900
        %v1908 = vmul.f32 %v1889, %v1900
        %v1909 = vmul.f32 %v1890, %v1900
        %v1910 = vmul.f32 %v1891, %v1900
        %v1911 = vmul.f32 %v1892, %v1900
        %v1912 = vmul.f32 %v1893, %v1900
        %v1913 = vmul.f32 %v1894, %v1900
        %v1914 = vmul.f32 %v1895, %v1900
        %v1915 = vmul.f32 %v1896, %v1900
        %v1916 = vmul.f32 %v1897, %v1900
        %v1917 = vmul.f32 %v1898, %v1900
        %v1919 = vperm.slane %v1310, 0
        %v1921 = vadd.f32 %v1902, %v1919
        %v1922 = vadd.f32 %v1903, %v1919
        %v1923 = vadd.f32 %v1904, %v1919
        %v1924 = vadd.f32 %v1905, %v1919
        %v1925 = vadd.f32 %v1906, %v1919
        %v1926 = vadd.f32 %v1907, %v1919
        %v1927 = vadd.f32 %v1908, %v1919
        %v1928 = vadd.f32 %v1909, %v1919
        %v1929 = vadd.f32 %v1910, %v1919
        %v1930 = vadd.f32 %v1911, %v1919
        %v1931 = vadd.f32 %v1912, %v1919
        %v1932 = vadd.f32 %v1913, %v1919
        %v1933 = vadd.f32 %v1914, %v1919
        %v1934 = vadd.f32 %v1915, %v1919
        %v1935 = vadd.f32 %v1916, %v1919
        %v1936 = vadd.f32 %v1917, %v1919
        %v1937 = vmax.f32 %v1921, 0.0
        %v1938 = vmax.f32 %v1922, 0.0
        %v1939 = vmax.f32 %v1923, 0.0
        %v1940 = vmax.f32 %v1924, 0.0
        %v1941 = vmax.f32 %v1925, 0.0
        %v1942 = vmax.f32 %v1926, 0.0
        %v1943 = vmax.f32 %v1927, 0.0
        %v1944 = vmax.f32 %v1928, 0.0
        %v1945 = vmax.f32 %v1929, 0.0
        %v1946 = vmax.f32 %v1930, 0.0
        %v1947 = vmax.f32 %v1931, 0.0
        %v1948 = vmax.f32 %v1932, 0.0
        %v1949 = vmax.f32 %v1933, 0.0
        %v1950 = vmax.f32 %v1934, 0.0
        %v1951 = vmax.f32 %v1935, 0.0
        %v1952 = vmax.f32 %v1936, 0.0
        %v1953 = vpack.c.bf16 %v1937, %v1937
        %v1954 = vpack.c.bf16 %v1938, %v1938
        %v1955 = vpack.c.bf16 %v1939, %v1939
        %v1956 = vpack.c.bf16 %v1940, %v1940
        %v1957 = vpack.c.bf16 %v1941, %v1941
        %v1958 = vpack.c.bf16 %v1942, %v1942
        %v1959 = vpack.c.bf16 %v1943, %v1943
        %v1960 = vpack.c.bf16 %v1944, %v1944
        %v1961 = vpack.c.bf16 %v1945, %v1945
        %v1962 = vpack.c.bf16 %v1946, %v1946
        %v1963 = vpack.c.bf16 %v1947, %v1947
        %v1964 = vpack.c.bf16 %v1948, %v1948
        %v1965 = vpack.c.bf16 %v1949, %v1949
        %v1966 = vpack.c.bf16 %v1950, %v1950
        %v1967 = vpack.c.bf16 %v1951, %v1951
        %v1968 = vpack.c.bf16 %v1952, %v1952
        %1969 = vst [vmem:[%s414] sm:$0xf] %v1953
        %1970 = vst [vmem:[%s414 + $0x4] sm:$0xf] %v1954
        %1971 = vst [vmem:[%s414 + $0x8] sm:$0xf] %v1955
        %1972 = vst [vmem:[%s414 + $0xc] sm:$0xf] %v1956
        %1973 = vst [vmem:[%s414 + $0x10] sm:$0xf] %v1957
        %1974 = vst [vmem:[%s414 + $0x14] sm:$0xf] %v1958
        %1975 = vst [vmem:[%s414 + $0x18] sm:$0xf] %v1959
        %1976 = vst [vmem:[%s414 + $0x1c] sm:$0xf] %v1960
        %1977 = vst [vmem:[%s414 + $0x20] sm:$0xf] %v1961
        %1978 = vst [vmem:[%s414 + $0x24] sm:$0xf] %v1962
        %1979 = vst [vmem:[%s414 + $0x28] sm:$0xf] %v1963
        %1980 = vst [vmem:[%s414 + $0x2c] sm:$0xf] %v1964
        %1981 = vst [vmem:[%s414 + $0x30] sm:$0xf] %v1965
        %1982 = vst [vmem:[%s414 + $0x34] sm:$0xf] %v1966
        %1983 = vst [vmem:[%s414 + $0x38] sm:$0xf] %v1967
        %1984 = vst [vmem:[%s414 + $0x3c] sm:$0xf] %v1968
        %s1985 = sand.u32 %s230, 1
        %s1986 = scalar_lea.sflag [#allocation4], %s1985
        %s1987 = sand.u32 %s230, 1
        %s1988 = smul.addr %s1987, 64
        %s1989 = scalar_lea.vmem [#allocation11], %s1988
        // Predicated region
        $region77: #{tpu_custom_call.1} parent=55 // pred_check
          %p1990 = pneg %p240
        $region78: #{tpu_custom_call.1} parent=55 // pred_check_branch
          %1992 = sbr.rel (%p1990) target = $region80
        $region79: #{tpu_custom_call.1} parent=55 // pred_region
          %s1993 = smul.u32 16, %s28
          %1995 = vsyncadd %s1986, 0
          %s1996 = smul.addr %s1993, 4
          %s1997 = scalar_lea.hbm %s9, %s1996
          %s1998 = sshll.u32 %s1989, 4
          %s1999 = int_to_ptr.vmem [resolvable:$true] %s1998
          %s2000 = sshll.u32 %s1997, 4
          %s2001 = int_to_ptr.hbm [resolvable:$true] %s2000
          %2006 = dma.vmem_to_hbm [thread:$0]  %s1999, 1024, %s2001, %s1986, 64, 64, 4
        $region80: #{tpu_custom_call.1} parent=55 // pred_fallthru
          _
      $region56: #{tpu_custom_call.1} parent=5 // pred_fallthru
        _
      %p2007 = scmp.le.s32.totalorder 2, %s23
      // Predicated region
      $region81: #{tpu_custom_call.1} parent=5 // pred_check
        %p2008 = pneg %p2007
      $region82: #{tpu_custom_call.1} parent=5 // pred_check_branch
        %2010 = sbr.rel (%p2008) target = $region84
      $region83: #{tpu_custom_call.1} parent=5 // pred_region
        %s2011 = ssub.s32 %s23, 2
        // Predicated region
        $region85: #{tpu_custom_call.1} parent=83 // pred_check
          %p2012 = pneg %p246
        $region86: #{tpu_custom_call.1} parent=83 // pred_check_branch
          %2014 = sbr.rel (%p2012) target = $region88
        $region87: #{tpu_custom_call.1} parent=83 // pred_region
          %s2015 = sand.u32 %s231, 1
          %s2016 = scalar_lea.sflag [#allocation4], %s2015
          %s2017 = sand.u32 %s231, 1
          %s2018 = smul.addr %s2017, 64
          %s2019 = scalar_lea.vmem [#allocation11], %s2018
          %2021 = dma.done %s2016, 1024
        $region88: #{tpu_custom_call.1} parent=83 // pred_fallthru
          _
      $region84: #{tpu_custom_call.1} parent=5 // pred_fallthru
        _
    $region6: #{tpu_custom_call.1} parent=1 // loop_footer
      %s27 = sadd.s32 1, %s23
    $region7: #{tpu_custom_call.1} parent=1 // loop_footer_branch
      %22 = sbr.rel target = $region3
    $region8: #{tpu_custom_call.1} parent=1 // loop_exit
      _
    %2022 = vsyncpa [#allocation3], 1
    %s2023 = scalar_lea.sflag [#allocation3], 1
    %2024 = vsyncpa %s2023, 1
    %2025 = vsyncpa [#allocation6], 1
    %2026 = vsyncpa [#allocation9], 1
    %2027 = vsyncpa [#allocation4], 1
    %s2028 = scalar_lea.sflag [#allocation4], 1
    %2029 = vsyncpa %s2028, 1

// kernel: tpu_custom_call.1
$region0: #{tpu_custom_call.1}
  #allocation0 [shape = 'u32[]', space=smem, size = 0x4, offset = 0x4, fixed_abs, tag = 'smem constant byte address 0x4 - core index']
  #allocation1 [shape = 'u32[72,128]{1,0:T(1,128)}', space=vmem, size = 0x9000, scoped, tag = 'internal scratch']
  %s0 = inlined_call_operand.hbm [shape: bf16[384,128], index: 0, kind: input, shape index: {}]
  %s1 = inlined_call_operand.hbm [shape: bf16[128,256], index: 1, kind: input, shape index: {}]
  %s2 = inlined_call_operand.hbm [shape: f32[1,256], index: 2, kind: input, shape index: {}]
  %s3 = inlined_call_operand.vmem [shape: f32[1,256], index: 3, kind: input, shape index: {}]
  %s4 = inlined_call_operand.hbm [shape: f32[1,256], index: 4, kind: input, shape index: {}]
  %s5 = inlined_call_operand.hbm [shape: bf16[256,128], index: 5, kind: input, shape index: {}]
  %s6 = inlined_call_operand.vmem [shape: f32[1,128], index: 6, kind: input, shape index: {}]
  %s7 = inlined_call_operand.vmem [shape: f32[1,128], index: 7, kind: input, shape index: {}]
  %s8 = inlined_call_operand.vmem [shape: f32[1,128], index: 8, kind: input, shape index: {}]
  %s9 = inlined_call_operand.hbm [shape: bf16[384,128], index: 9, kind: output, shape index: {}]
  %s10 = sld [smem:[#allocation0]]
  $region89: #{tpu_custom_call.1} parent=0
    _
  %s12 = ssub.s32 1, %s10
  %s13 = scalar_select 0, %s12, %s10
  $region1: #{tpu_custom_call.1} parent=0
    #allocation2 [shape = 'u8[65536]{0}', space=vmem, size = 0x10000, scoped, tag = 'input window, operand 0']
    #allocation3 [shape = 's32[2]{0}', space=sflag, size = 0x8, scoped, tag = 'scoped memory for tpu_custom_call.1']
    #allocation4 [shape = 's32[2]{0}', space=sflag, size = 0x8, scoped, tag = 'scoped memory for tpu_custom_call.1']
    #allocation5 [shape = 'u8[65536]{0}', space=vmem, size = 0x10000, scoped, tag = 'input window, operand 1, single buffered']
    #allocation6 [shape = 's32[1]{0}', space=sflag, size = 0x4, scoped, tag = 'scoped memory for tpu_custom_call.1']
    #allocation7 [shape = 'u8[1024]{0}', space=vmem, size = 0x400, scoped, tag = 'input window, operand 2, single buffered']
    #allocation8 [shape = 'u8[1024]{0}', space=vmem, size = 0x400, scoped, tag = 'input window, operand 4, single buffered']
    #allocation9 [shape = 's32[1]{0}', space=sflag, size = 0x4, scoped, tag = 'scoped memory for tpu_custom_call.1']
    #allocation10 [shape = 'u8[65536]{0}', space=vmem, size = 0x10000, scoped, tag = 'input window, operand 5, single buffered']
    #allocation11 [shape = 'u8[65536]{0}', space=vmem, size = 0x10000, scoped, tag = 'output window, operand 0']
    %14 = vsyncpa [#allocation3], 0
    %s15 = scalar_lea.sflag [#allocation3], 1
    %16 = vsyncpa %s15, 0
    %17 = vsyncpa [#allocation6], 0
    %18 = vsyncpa [#allocation9], 0
    %19 = vsyncpa [#allocation4], 0
    %s20 = scalar_lea.sflag [#allocation4], 1
    %21 = vsyncpa %s20, 0
    loop: start=0, step=1, limit=5
    $region2: #{tpu_custom_call.1} parent=1 // loop_pre_header
      _
    $region3: #{tpu_custom_call.1} parent=1 // loop_header
      %s23 = sphi 0, %s27
      %p24 = scmp.ge.s32.totalorder %s23, 5
      %s33 = sphi 0, %s35
      %s36 = sphi 0, %s33
      %s37 = sphi 0, %s36
      %s53 = sphi 0, %s37
      %s57 = sphi 0, %s57
      %s59 = sphi 0, %s57
      %s60 = sphi 0, %s59
      %s74 = sphi 0, %s60
      %s78 = sphi 0, %s78
      %s80 = sphi 0, %s78
      %s81 = sphi 0, %s80
      %s95 = sphi 0, %s81
      %s99 = sphi 0, %s99
      %s101 = sphi 0, %s99
      %s102 = sphi 0, %s101
      %s116 = sphi 0, %s102
      %s120 = sphi 0, %s120
      %s122 = sphi 0, %s120
      %s123 = sphi 0, %s122
      %s137 = sphi 0, %s123
      %s141 = sphi 0, %s141
      %s143 = sphi 0, %s141
      %s144 = sphi 0, %s143
      %s158 = sphi 0, %s144
      %s162 = sphi 0, %s162
      %s164 = sphi 0, %s162
      %s165 = sphi 0, %s164
      %s179 = sphi 0, %s165
      %s183 = sphi 0, %s183
      %s185 = sphi 0, %s183
      %s186 = sphi 0, %s185
      %s200 = sphi 0, %s186
      %s204 = sphi 0, %s204
      %s206 = sphi 0, %s204
      %s207 = sphi 0, %s206
      %s221 = sphi 0, %s207
      %s227 = sphi 0, %s229
      %s230 = sphi 0, %s227
      %s231 = sphi 0, %s230
      %s247 = sphi 0, %s231
    $region4: #{tpu_custom_call.1} parent=1 // loop_header_branch
      %26 = sbr.rel (%p24) target = $region8
    $region5: #{tpu_custom_call.1} parent=1 // loop_body
      %s28 = ssub.s32 %s23, 1
      %s29 = ssub.s32 %s23, 2
      %s30 = sadd.s32 %s23, 1
      %s31 = ssub.s32 %s23, %s30
      %p32 = scmp.eq.s32.totalorder %s31, 0
      %s34 = sadd.s32 %s33, 1
      %s35 = scalar_select %p32, %s33, %s34
      %p38 = pneg %p32
      %p39 = scmp.eq.s32.totalorder %s23, 2
      %p40 = por %p38, %p39
      %p41 = scmp.ne.s32.totalorder %s33, %s36
      %p42 = scmp.eq.s32.totalorder %s23, 0
      %p43 = por %p41, %p42
      %p44 = scmp.ne.s32.totalorder %s33, %s36
      %p45 = scmp.eq.s32.totalorder %s28, 2
      %p46 = por %p44, %p45
      %p47 = scmp.ne.s32.totalorder %s36, %s37
      %p48 = scmp.eq.s32.totalorder %s28, 0
      %p49 = por %p47, %p48
      %p50 = scmp.ne.s32.totalorder %s36, %s37
      %p51 = scmp.eq.s32.totalorder %s29, 2
      %p52 = por %p50, %p51
      %p54 = scmp.ne.s32.totalorder %s37, %s53
      %p55 = scmp.eq.s32.totalorder %s29, 0
      %p56 = por %p54, %p55
      %s58 = sadd.s32 %s57, 1
      %p61 = scmp.eq.s32.totalorder %s23, 2
      %p62 = scmp.ne.s32.totalorder %s57, %s59
      %p63 = scmp.eq.s32.totalorder %s23, 0
      %p64 = por %p62, %p63
      %p65 = scmp.ne.s32.totalorder %s57, %s59
      %p66 = scmp.eq.s32.totalorder %s28, 2
      %p67 = por %p65, %p66
      %p68 = scmp.ne.s32.totalorder %s59, %s60
      %p69 = scmp.eq.s32.totalorder %s28, 0
      %p70 = por %p68, %p69
      %p71 = scmp.ne.s32.totalorder %s59, %s60
      %p72 = scmp.eq.s32.totalorder %s29, 2
      %p73 = por %p71, %p72
      %p75 = scmp.ne.s32.totalorder %s60, %s74
      %p76 = scmp.eq.s32.totalorder %s29, 0
      %p77 = por %p75, %p76
      %s79 = sadd.s32 %s78, 1
      %p82 = scmp.eq.s32.totalorder %s23, 2
      %p83 = scmp.ne.s32.totalorder %s78, %s80
      %p84 = scmp.eq.s32.totalorder %s23, 0
      %p85 = por %p83, %p84
      %p86 = scmp.ne.s32.totalorder %s78, %s80
      %p87 = scmp.eq.s32.totalorder %s28, 2
      %p88 = por %p86, %p87
      %p89 = scmp.ne.s32.totalorder %s80, %s81
      %p90 = scmp.eq.s32.totalorder %s28, 0
      %p91 = por %p89, %p90
      %p92 = scmp.ne.s32.totalorder %s80, %s81
      %p93 = scmp.eq.s32.totalorder %s29, 2
      %p94 = por %p92, %p93
      %p96 = scmp.ne.s32.totalorder %s81, %s95
      %p97 = scmp.eq.s32.totalorder %s29, 0
      %p98 = por %p96, %p97
      %s100 = sadd.s32 %s99, 1
      %p103 = scmp.eq.s32.totalorder %s23, 2
      %p104 = scmp.ne.s32.totalorder %s99, %s101
      %p105 = scmp.eq.s32.totalorder %s23, 0
      %p106 = por %p104, %p105
      %p107 = scmp.ne.s32.totalorder %s99, %s101
      %p108 = scmp.eq.s32.totalorder %s28, 2
      %p109 = por %p107, %p108
      %p110 = scmp.ne.s32.totalorder %s101, %s102
      %p111 = scmp.eq.s32.totalorder %s28, 0
      %p112 = por %p110, %p111
      %p113 = scmp.ne.s32.totalorder %s101, %s102
      %p114 = scmp.eq.s32.totalorder %s29, 2
      %p115 = por %p113, %p114
      %p117 = scmp.ne.s32.totalorder %s102, %s116
      %p118 = scmp.eq.s32.totalorder %s29, 0
      %p119 = por %p117, %p118
      %s121 = sadd.s32 %s120, 1
      %p124 = scmp.eq.s32.totalorder %s23, 2
      %p125 = scmp.ne.s32.totalorder %s120, %s122
      %p126 = scmp.eq.s32.totalorder %s23, 0
      %p127 = por %p125, %p126
      %p128 = scmp.ne.s32.totalorder %s120, %s122
      %p129 = scmp.eq.s32.totalorder %s28, 2
      %p130 = por %p128, %p129
      %p131 = scmp.ne.s32.totalorder %s122, %s123
      %p132 = scmp.eq.s32.totalorder %s28, 0
      %p133 = por %p131, %p132
      %p134 = scmp.ne.s32.totalorder %s122, %s123
      %p135 = scmp.eq.s32.totalorder %s29, 2
      %p136 = por %p134, %p135
      %p138 = scmp.ne.s32.totalorder %s123, %s137
      %p139 = scmp.eq.s32.totalorder %s29, 0
      %p140 = por %p138, %p139
      %s142 = sadd.s32 %s141, 1
      %p145 = scmp.eq.s32.totalorder %s23, 2
      %p146 = scmp.ne.s32.totalorder %s141, %s143
      %p147 = scmp.eq.s32.totalorder %s23, 0
      %p148 = por %p146, %p147
      %p149 = scmp.ne.s32.totalorder %s141, %s143
      %p150 = scmp.eq.s32.totalorder %s28, 2
      %p151 = por %p149, %p150
      %p152 = scmp.ne.s32.totalorder %s143, %s144
      %p153 = scmp.eq.s32.totalorder %s28, 0
      %p154 = por %p152, %p153
      %p155 = scmp.ne.s32.totalorder %s143, %s144
      %p156 = scmp.eq.s32.totalorder %s29, 2
      %p157 = por %p155, %p156
      %p159 = scmp.ne.s32.totalorder %s144, %s158
      %p160 = scmp.eq.s32.totalorder %s29, 0
      %p161 = por %p159, %p160
      %s163 = sadd.s32 %s162, 1
      %p166 = scmp.eq.s32.totalorder %s23, 2
      %p167 = scmp.ne.s32.totalorder %s162, %s164
      %p168 = scmp.eq.s32.totalorder %s23, 0
      %p169 = por %p167, %p168
      %p170 = scmp.ne.s32.totalorder %s162, %s164
      %p171 = scmp.eq.s32.totalorder %s28, 2
      %p172 = por %p170, %p171
      %p173 = scmp.ne.s32.totalorder %s164, %s165
      %p174 = scmp.eq.s32.totalorder %s28, 0
      %p175 = por %p173, %p174
      %p176 = scmp.ne.s32.totalorder %s164, %s165
      %p177 = scmp.eq.s32.totalorder %s29, 2
      %p178 = por %p176, %p177
      %p180 = scmp.ne.s32.totalorder %s165, %s179
      %p181 = scmp.eq.s32.totalorder %s29, 0
      %p182 = por %p180, %p181
      %s184 = sadd.s32 %s183, 1
      %p187 = scmp.eq.s32.totalorder %s23, 2
      %p188 = scmp.ne.s32.totalorder %s183, %s185
      %p189 = scmp.eq.s32.totalorder %s23, 0
      %p190 = por %p188, %p189
      %p191 = scmp.ne.s32.totalorder %s183, %s185
      %p192 = scmp.eq.s32.totalorder %s28, 2
      %p193 = por %p191, %p192
      %p194 = scmp.ne.s32.totalorder %s185, %s186
      %p195 = scmp.eq.s32.totalorder %s28, 0
      %p196 = por %p194, %p195
      %p197 = scmp.ne.s32.totalorder %s185, %s186
      %p198 = scmp.eq.s32.totalorder %s29, 2
      %p199 = por %p197, %p198
      %p201 = scmp.ne.s32.totalorder %s186, %s200
      %p202 = scmp.eq.s32.totalorder %s29, 0
      %p203 = por %p201, %p202
      %s205 = sadd.s32 %s204, 1
      %p208 = scmp.eq.s32.totalorder %s23, 2
      %p209 = scmp.ne.s32.totalorder %s204, %s206
      %p210 = scmp.eq.s32.totalorder %s23, 0
      %p211 = por %p209, %p210
      %p212 = scmp.ne.s32.totalorder %s204, %s206
      %p213 = scmp.eq.s32.totalorder %s28, 2
      %p214 = por %p212, %p213
      %p215 = scmp.ne.s32.totalorder %s206, %s207
      %p216 = scmp.eq.s32.totalorder %s28, 0
      %p217 = por %p215, %p216
      %p218 = scmp.ne.s32.totalorder %s206, %s207
      %p219 = scmp.eq.s32.totalorder %s29, 2
      %p220 = por %p218, %p219
      %p222 = scmp.ne.s32.totalorder %s207, %s221
      %p223 = scmp.eq.s32.totalorder %s29, 0
      %p224 = por %p222, %p223
      %s225 = ssub.s32 %s23, %s30
      %p226 = scmp.eq.s32.totalorder %s225, 0
      %s228 = sadd.s32 %s227, 1
      %s229 = scalar_select %p226, %s227, %s228
      %p232 = pneg %p226
      %p233 = scmp.eq.s32.totalorder %s23, 2
      %p234 = por %p232, %p233
      %p235 = scmp.ne.s32.totalorder %s227, %s230
      %p236 = scmp.eq.s32.totalorder %s23, 0
      %p237 = por %p235, %p236
      %p238 = scmp.ne.s32.totalorder %s227, %s230
      %p239 = scmp.eq.s32.totalorder %s28, 2
      %p240 = por %p238, %p239
      %p241 = scmp.ne.s32.totalorder %s230, %s231
      %p242 = scmp.eq.s32.totalorder %s28, 0
      %p243 = por %p241, %p242
      %p244 = scmp.ne.s32.totalorder %s230, %s231
      %p245 = scmp.eq.s32.totalorder %s29, 2
      %p246 = por %p244, %p245
      %p248 = scmp.ne.s32.totalorder %s231, %s247
      %p249 = scmp.eq.s32.totalorder %s29, 0
      %p250 = por %p248, %p249
      %p251 = scmp.le.s32.totalorder 1, %s23
      %p252 = scmp.lt.s32.totalorder %s23, 4
      %p253 = pnand %p251, %p252
      %p254 = pneg %p253
      // Predicated region
      $region9: #{tpu_custom_call.1} parent=5 // pred_check
        _
      $region10: #{tpu_custom_call.1} parent=5 // pred_check_branch
        %256 = sbr.rel (%p253) target = $region12
      $region11: #{tpu_custom_call.1} parent=5 // pred_region
        %s257 = ssub.s32 %s23, 1
        // Predicated region
        $region13: #{tpu_custom_call.1} parent=11 // pred_check
          %p258 = pneg %p70
        $region14: #{tpu_custom_call.1} parent=11 // pred_check_branch
          %260 = sbr.rel (%p258) target = $region16
        $region15: #{tpu_custom_call.1} parent=11 // pred_region
          %262 = vsyncadd [#allocation6], 0
          %s263 = sshll.u32 %s1, 4
          %s264 = int_to_ptr.hbm [resolvable:$true] %s263
          %s265 = sshll.u32 [#allocation5], 4
          %s266 = int_to_ptr.vmem [resolvable:$true] %s265
          %271 = dma.hbm_to_vmem [thread:$0]  %s264, 2048, %s266, [#allocation6], 128, 128, 8
        $region16: #{tpu_custom_call.1} parent=11 // pred_fallthru
          _
        // Predicated region
        $region17: #{tpu_custom_call.1} parent=11 // pred_check
          %p272 = pneg %p91
        $region18: #{tpu_custom_call.1} parent=11 // pred_check_branch
          %274 = sbr.rel (%p272) target = $region20
        $region19: #{tpu_custom_call.1} parent=11 // pred_region
          %276 = vsyncadd [#allocation6], 0
          %s278 = sshll.u32 %s2, 4
          %s279 = int_to_ptr.hbm [resolvable:$true] %s278
          %s280 = sshll.u32 [#allocation7], 4
          %s281 = int_to_ptr.vmem [resolvable:$true] %s280
          %283 = dma.hbm_to_vmem [thread:$0]  %s279, 32, %s281, [#allocation6]
        $region20: #{tpu_custom_call.1} parent=11 // pred_fallthru
          _
        // Predicated region
        $region21: #{tpu_custom_call.1} parent=11 // pred_check
          %p284 = pneg %p112
        $region22: #{tpu_custom_call.1} parent=11 // pred_check_branch
          %286 = sbr.rel (%p284) target = $region24
        $region23: #{tpu_custom_call.1} parent=11 // pred_region
          _
        $region24: #{tpu_custom_call.1} parent=11 // pred_fallthru
          _
        // Predicated region
        $region25: #{tpu_custom_call.1} parent=11 // pred_check
          %p287 = pneg %p133
        $region26: #{tpu_custom_call.1} parent=11 // pred_check_branch
          %289 = sbr.rel (%p287) target = $region28
        $region27: #{tpu_custom_call.1} parent=11 // pred_region
          %291 = vsyncadd [#allocation9], 0
          %s293 = sshll.u32 %s4, 4
          %s294 = int_to_ptr.hbm [resolvable:$true] %s293
          %s295 = sshll.u32 [#allocation8], 4
          %s296 = int_to_ptr.vmem [resolvable:$true] %s295
          %298 = dma.hbm_to_vmem [thread:$0]  %s294, 32, %s296, [#allocation9]
        $region28: #{tpu_custom_call.1} parent=11 // pred_fallthru
          _
        // Predicated region
        $region29: #{tpu_custom_call.1} parent=11 // pred_check
          %p299 = pneg %p154
        $region30: #{tpu_custom_call.1} parent=11 // pred_check_branch
          %301 = sbr.rel (%p299) target = $region32
        $region31: #{tpu_custom_call.1} parent=11 // pred_region
          %303 = vsyncadd [#allocation9], 0
          %s304 = sshll.u32 %s5, 4
          %s305 = int_to_ptr.hbm [resolvable:$true] %s304
          %s306 = sshll.u32 [#allocation10], 4
          %s307 = int_to_ptr.vmem [resolvable:$true] %s306
          %312 = dma.hbm_to_vmem [thread:$0]  %s305, 2048, %s307, [#allocation9], 64, 64, 4
        $region32: #{tpu_custom_call.1} parent=11 // pred_fallthru
          _
        // Predicated region
        $region33: #{tpu_custom_call.1} parent=11 // pred_check
          %p313 = pneg %p175
        $region34: #{tpu_custom_call.1} parent=11 // pred_check_branch
          %315 = sbr.rel (%p313) target = $region36
        $region35: #{tpu_custom_call.1} parent=11 // pred_region
          _
        $region36: #{tpu_custom_call.1} parent=11 // pred_fallthru
          _
        // Predicated region
        $region37: #{tpu_custom_call.1} parent=11 // pred_check
          %p316 = pneg %p196
        $region38: #{tpu_custom_call.1} parent=11 // pred_check_branch
          %318 = sbr.rel (%p316) target = $region40
        $region39: #{tpu_custom_call.1} parent=11 // pred_region
          _
        $region40: #{tpu_custom_call.1} parent=11 // pred_fallthru
          _
        // Predicated region
        $region41: #{tpu_custom_call.1} parent=11 // pred_check
          %p319 = pneg %p217
        $region42: #{tpu_custom_call.1} parent=11 // pred_check_branch
          %321 = sbr.rel (%p319) target = $region44
        $region43: #{tpu_custom_call.1} parent=11 // pred_region
          _
        $region44: #{tpu_custom_call.1} parent=11 // pred_fallthru
          _
      $region12: #{tpu_custom_call.1} parent=5 // pred_fallthru
        _
      %p322 = scmp.lt.s32.totalorder %s23, 3
      // Predicated region
      $region45: #{tpu_custom_call.1} parent=5 // pred_check
        %p323 = pneg %p322
      $region46: #{tpu_custom_call.1} parent=5 // pred_check_branch
        %325 = sbr.rel (%p323) target = $region48
      $region47: #{tpu_custom_call.1} parent=5 // pred_region
        // Predicated region
        $region49: #{tpu_custom_call.1} parent=47 // pred_check
          %p326 = pneg %p43
        $region50: #{tpu_custom_call.1} parent=47 // pred_check_branch
          %328 = sbr.rel (%p326) target = $region52
        $region51: #{tpu_custom_call.1} parent=47 // pred_region
          %s329 = sand.u32 %s33, 1
          %s330 = scalar_lea.sflag [#allocation3], %s329
          %s331 = sand.u32 %s33, 1
          %s332 = smul.addr %s331, 64
          %s333 = scalar_lea.vmem [#allocation2], %s332
          %s334 = smul.u32 16, %s23
          %336 = vsyncadd %s330, 0
          %s337 = smul.addr %s334, 4
          %s338 = scalar_lea.hbm %s0, %s337
          %s339 = sshll.u32 %s338, 4
          %s340 = int_to_ptr.hbm [resolvable:$true] %s339
          %s341 = sshll.u32 %s333, 4
          %s342 = int_to_ptr.vmem [resolvable:$true] %s341
          %347 = dma.hbm_to_vmem [thread:$0]  %s340, 1024, %s342, %s330, 64, 64, 4
        $region52: #{tpu_custom_call.1} parent=47 // pred_fallthru
          _
      $region48: #{tpu_custom_call.1} parent=5 // pred_fallthru
        _
      %p348 = scmp.le.s32.totalorder 1, %s23
      %p349 = scmp.lt.s32.totalorder %s23, 4
      %p350 = pnand %p348, %p349
      %p351 = pneg %p350
      // Predicated region
      $region53: #{tpu_custom_call.1} parent=5 // pred_check
        _
      $region54: #{tpu_custom_call.1} parent=5 // pred_check_branch
        %353 = sbr.rel (%p350) target = $region56
      $region55: #{tpu_custom_call.1} parent=5 // pred_region
        %s354 = ssub.s32 %s23, 1
        %s355 = sand.u32 %s36, 1
        %s356 = scalar_lea.sflag [#allocation3], %s355
        %s357 = sand.u32 %s36, 1
        %s358 = smul.addr %s357, 64
        %s359 = scalar_lea.vmem [#allocation2], %s358
        // Predicated region
        $region57: #{tpu_custom_call.1} parent=55 // pred_check
          %p360 = pneg %p49
        $region58: #{tpu_custom_call.1} parent=55 // pred_check_branch
          %362 = sbr.rel (%p360) target = $region60
        $region59: #{tpu_custom_call.1} parent=55 // pred_region
          %364 = dma.done %s356, 1024
        $region60: #{tpu_custom_call.1} parent=55 // pred_fallthru
          _
        // Predicated region
        $region61: #{tpu_custom_call.1} parent=55 // pred_check
          %p365 = pneg %p70
        $region62: #{tpu_custom_call.1} parent=55 // pred_check_branch
          %367 = sbr.rel (%p365) target = $region64
        $region63: #{tpu_custom_call.1} parent=55 // pred_region
          %369 = dma.done [#allocation6], 2048
        $region64: #{tpu_custom_call.1} parent=55 // pred_fallthru
          _
        // Predicated region
        $region65: #{tpu_custom_call.1} parent=55 // pred_check
          %p370 = pneg %p91
        $region66: #{tpu_custom_call.1} parent=55 // pred_check_branch
          %372 = sbr.rel (%p370) target = $region68
        $region67: #{tpu_custom_call.1} parent=55 // pred_region
          %374 = dma.done [#allocation6], 32
        $region68: #{tpu_custom_call.1} parent=55 // pred_fallthru
          _
        // Predicated region
        $region69: #{tpu_custom_call.1} parent=55 // pred_check
          %p375 = pneg %p133
        $region70: #{tpu_custom_call.1} parent=55 // pred_check_branch
          %377 = sbr.rel (%p375) target = $region72
        $region71: #{tpu_custom_call.1} parent=55 // pred_region
          %379 = dma.done [#allocation9], 32
        $region72: #{tpu_custom_call.1} parent=55 // pred_fallthru
          _
        // Predicated region
        $region73: #{tpu_custom_call.1} parent=55 // pred_check
          %p380 = pneg %p154
        $region74: #{tpu_custom_call.1} parent=55 // pred_check_branch
          %382 = sbr.rel (%p380) target = $region76
        $region75: #{tpu_custom_call.1} parent=55 // pred_region
          %384 = dma.done [#allocation9], 2048
        $region76: #{tpu_custom_call.1} parent=55 // pred_fallthru
          _
        %s385 = sand.u32 %s36, 1
        %s386 = scalar_lea.sflag [#allocation3], %s385
        %s387 = sand.u32 %s36, 1
        %s388 = smul.addr %s387, 64
        %s389 = scalar_lea.vmem [#allocation2], %s388
        %p390 = pneg %p49
        %p391 = pneg %p46
        %p392 = pneg %p70
        %p393 = pneg %p67
        %p394 = pneg %p91
        %p395 = pneg %p88
        %p396 = pneg %p112
        %p397 = pneg %p109
        %p398 = pneg %p133
        %p399 = pneg %p130
        %p400 = pneg %p154
        %p401 = pneg %p151
        %p402 = pneg %p175
        %p403 = pneg %p172
        %p404 = pneg %p196
        %p405 = pneg %p193
        %p406 = pneg %p217
        %p407 = pneg %p214
        %p408 = pneg %p243
        %p409 = pneg %p240
        %s410 = sand.u32 %s230, 1
        %s411 = scalar_lea.sflag [#allocation4], %s410
        %s412 = sand.u32 %s230, 1
        %s413 = smul.addr %s412, 64
        %s414 = scalar_lea.vmem [#allocation11], %s413
        %s415 = smul.u32 16, %s28
        %s416 = smul.u32 16, %s28
        %v417 = vld [vmem:[%s359] sm:$0xf]
        %v418 = vld [vmem:[%s359 + $0x4] sm:$0xf]
        %v419 = vld [vmem:[%s359 + $0x8] sm:$0xf]
        %v420 = vld [vmem:[%s359 + $0xc] sm:$0xf]
        %v421 = vld [vmem:[%s359 + $0x10] sm:$0xf]
        %v422 = vld [vmem:[%s359 + $0x14] sm:$0xf]
        %v423 = vld [vmem:[%s359 + $0x18] sm:$0xf]
        %v424 = vld [vmem:[%s359 + $0x1c] sm:$0xf]
        %v425 = vld [vmem:[%s359 + $0x20] sm:$0xf]
        %v426 = vld [vmem:[%s359 + $0x24] sm:$0xf]
        %v427 = vld [vmem:[%s359 + $0x28] sm:$0xf]
        %v428 = vld [vmem:[%s359 + $0x2c] sm:$0xf]
        %v429 = vld [vmem:[%s359 + $0x30] sm:$0xf]
        %v430 = vld [vmem:[%s359 + $0x34] sm:$0xf]
        %v431 = vld [vmem:[%s359 + $0x38] sm:$0xf]
        %v432 = vld [vmem:[%s359 + $0x3c] sm:$0xf]
        %v433 = vld [vmem:[#allocation5] sm:$0xff]
        %v434 = vld [vmem:[#allocation5 + $0x8] sm:$0xff]
        %v435 = vld [vmem:[#allocation5 + $0x10] sm:$0xff]
        %v436 = vld [vmem:[#allocation5 + $0x18] sm:$0xff]
        %v437 = vld [vmem:[#allocation5 + $0x20] sm:$0xff]
        %v438 = vld [vmem:[#allocation5 + $0x28] sm:$0xff]
        %v439 = vld [vmem:[#allocation5 + $0x30] sm:$0xff]
        %v440 = vld [vmem:[#allocation5 + $0x38] sm:$0xff]
        %v441 = vld [vmem:[#allocation5 + $0x40] sm:$0xff]
        %v442 = vld [vmem:[#allocation5 + $0x48] sm:$0xff]
        %v443 = vld [vmem:[#allocation5 + $0x50] sm:$0xff]
        %v444 = vld [vmem:[#allocation5 + $0x58] sm:$0xff]
        %v445 = vld [vmem:[#allocation5 + $0x60] sm:$0xff]
        %v446 = vld [vmem:[#allocation5 + $0x68] sm:$0xff]
        %v447 = vld [vmem:[#allocation5 + $0x70] sm:$0xff]
        %v448 = vld [vmem:[#allocation5 + $0x78] sm:$0xff]
        %v449 = vld [vmem:[#allocation7] sm:$0x3]
        %v450 = vld [vmem:[%s3] sm:$0x3]
        %v451 = vld [vmem:[#allocation8] sm:$0x3]
        %v453 = vperm.slane %v449, 0
        %v454 = vperm.slane %v449, 1
        %v473 = vunpack.c.l.b16 %v417
        %v474 = vunpack.c.l.b16 %v418
        %v475 = vunpack.c.l.b16 %v419
        %v476 = vunpack.c.l.b16 %v420
        %v477 = vunpack.c.l.b16 %v421
        %v478 = vunpack.c.l.b16 %v422
        %v479 = vunpack.c.l.b16 %v423
        %v480 = vunpack.c.l.b16 %v424
        %v481 = vunpack.c.l.b16 %v425
        %v482 = vunpack.c.l.b16 %v426
        %v483 = vunpack.c.l.b16 %v427
        %v484 = vunpack.c.l.b16 %v428
        %v485 = vunpack.c.l.b16 %v429
        %v486 = vunpack.c.l.b16 %v430
        %v487 = vunpack.c.l.b16 %v431
        %v488 = vunpack.c.l.b16 %v432
        %v489 = vpack.c.b16 %v474, %v473
        %v490 = vpack.c.b16 %v476, %v475
        %v491 = vpack.c.b16 %v478, %v477
        %v492 = vpack.c.b16 %v480, %v479
        %v493 = vpack.c.b16 %v482, %v481
        %v494 = vpack.c.b16 %v484, %v483
        %v495 = vpack.c.b16 %v486, %v485
        %v496 = vpack.c.b16 %v488, %v487
        %v521 = vunpack.c.l.b16 %v433
        %v522 = vunpack.c.h.b16 %v433
        %v523 = vunpack.c.l.b16 %v434
        %v524 = vunpack.c.h.b16 %v434
        %v525 = vunpack.c.l.b16 %v435
        %v526 = vunpack.c.h.b16 %v435
        %v527 = vunpack.c.l.b16 %v436
        %v528 = vunpack.c.h.b16 %v436
        %v529 = vunpack.c.l.b16 %v437
        %v530 = vunpack.c.h.b16 %v437
        %v531 = vunpack.c.l.b16 %v438
        %v532 = vunpack.c.h.b16 %v438
        %v533 = vunpack.c.l.b16 %v439
        %v534 = vunpack.c.h.b16 %v439
        %v535 = vunpack.c.l.b16 %v440
        %v536 = vunpack.c.h.b16 %v440
        %v537 = vunpack.c.l.b16 %v441
        %v538 = vunpack.c.h.b16 %v441
        %v539 = vunpack.c.l.b16 %v442
        %v540 = vunpack.c.h.b16 %v442
        %v541 = vunpack.c.l.b16 %v443
        %v542 = vunpack.c.h.b16 %v443
        %v543 = vunpack.c.l.b16 %v444
        %v544 = vunpack.c.h.b16 %v444
        %v545 = vunpack.c.l.b16 %v445
        %v546 = vunpack.c.h.b16 %v445
        %v547 = vunpack.c.l.b16 %v446
        %v548 = vunpack.c.h.b16 %v446
        %v549 = vunpack.c.l.b16 %v447
        %v550 = vunpack.c.h.b16 %v447
        %v551 = vunpack.c.l.b16 %v448
        %v552 = vunpack.c.h.b16 %v448
        %v553 = vpack.c.b16 %v523, %v521
        %v554 = vpack.c.b16 %v524, %v522
        %v555 = vpack.c.b16 %v527, %v525
        %v556 = vpack.c.b16 %v528, %v526
        %v557 = vpack.c.b16 %v531, %v529
        %v558 = vpack.c.b16 %v532, %v530
        %v559 = vpack.c.b16 %v535, %v533
        %v560 = vpack.c.b16 %v536, %v534
        %v561 = vpack.c.b16 %v539, %v537
        %v562 = vpack.c.b16 %v540, %v538
        %v563 = vpack.c.b16 %v543, %v541
        %v564 = vpack.c.b16 %v544, %v542
        %v565 = vpack.c.b16 %v547, %v545
        %v566 = vpack.c.b16 %v548, %v546
        %v567 = vpack.c.b16 %v551, %v549
        %v568 = vpack.c.b16 %v552, %v550
        %585 = vmatpush.bf16.msra.mxu0 %v567
        %586 = vmatpush.bf16.msra.mxu0 %v565
        %587 = vmatpush.bf16.msra.mxu0 %v563
        %588 = vmatpush.bf16.msra.mxu0 %v561
        %589 = vmatpush.bf16.msra.mxu0 %v559
        %590 = vmatpush.bf16.msra.mxu0 %v557
        %591 = vmatpush.bf16.msra.mxu0 %v555
        %592 = vmatpush.bf16.msra.mxu0 %v553
        %593 = vmatmul.bf16.gmra.mxu0 %v489
        %v594 = vpop.f32.mrf.mxu0
        %v595 = vadd.f32 %v453, %v594
        %v596 = vpop.f32.mrf.mxu0
        %v597 = vadd.f32 %v453, %v596
        %598 = vmatmul.bf16.gmra.mxu0 %v490
        %v599 = vpop.f32.mrf.mxu0
        %v600 = vadd.f32 %v453, %v599
        %v601 = vpop.f32.mrf.mxu0
        %v602 = vadd.f32 %v453, %v601
        %603 = vmatmul.bf16.gmra.mxu0 %v491
        %v604 = vpop.f32.mrf.mxu0
        %v605 = vadd.f32 %v453, %v604
        %v606 = vpop.f32.mrf.mxu0
        %v607 = vadd.f32 %v453, %v606
        %608 = vmatmul.bf16.gmra.mxu0 %v492
        %v609 = vpop.f32.mrf.mxu0
        %v610 = vadd.f32 %v453, %v609
        %v611 = vpop.f32.mrf.mxu0
        %v612 = vadd.f32 %v453, %v611
        %613 = vmatmul.bf16.gmra.mxu0 %v493
        %v614 = vpop.f32.mrf.mxu0
        %v615 = vadd.f32 %v453, %v614
        %v616 = vpop.f32.mrf.mxu0
        %v617 = vadd.f32 %v453, %v616
        %618 = vmatmul.bf16.gmra.mxu0 %v494
        %v619 = vpop.f32.mrf.mxu0
        %v620 = vadd.f32 %v453, %v619
        %v621 = vpop.f32.mrf.mxu0
        %v622 = vadd.f32 %v453, %v621
        %623 = vmatmul.bf16.gmra.mxu0 %v495
        %v624 = vpop.f32.mrf.mxu0
        %v625 = vadd.f32 %v453, %v624
        %v626 = vpop.f32.mrf.mxu0
        %v627 = vadd.f32 %v453, %v626
        %628 = vmatmul.bf16.gmra.mxu0 %v496
        %v629 = vpop.f32.mrf.mxu0
        %v630 = vadd.f32 %v453, %v629
        %v631 = vpop.f32.mrf.mxu0
        %v632 = vadd.f32 %v453, %v631
        %633 = vdwg.mxu0
        %634 = vmatpush.bf16.msra.mxu0 %v568
        %635 = vmatpush.bf16.msra.mxu0 %v566
        %636 = vmatpush.bf16.msra.mxu0 %v564
        %637 = vmatpush.bf16.msra.mxu0 %v562
        %638 = vmatpush.bf16.msra.mxu0 %v560
        %639 = vmatpush.bf16.msra.mxu0 %v558
        %640 = vmatpush.bf16.msra.mxu0 %v556
        %641 = vmatpush.bf16.msra.mxu0 %v554
        %642 = vmatmul.bf16.gmra.mxu0 %v489
        %v643 = vpop.f32.mrf.mxu0
        %v644 = vadd.f32 %v454, %v643
        %v645 = vpop.f32.mrf.mxu0
        %v646 = vadd.f32 %v454, %v645
        %647 = vmatmul.bf16.gmra.mxu0 %v490
        %v648 = vpop.f32.mrf.mxu0
        %v649 = vadd.f32 %v454, %v648
        %v650 = vpop.f32.mrf.mxu0
        %v651 = vadd.f32 %v454, %v650
        %652 = vmatmul.bf16.gmra.mxu0 %v491
        %v653 = vpop.f32.mrf.mxu0
        %v654 = vadd.f32 %v454, %v653
        %v655 = vpop.f32.mrf.mxu0
        %v656 = vadd.f32 %v454, %v655
        %657 = vmatmul.bf16.gmra.mxu0 %v492
        %v658 = vpop.f32.mrf.mxu0
        %v659 = vadd.f32 %v454, %v658
        %v660 = vpop.f32.mrf.mxu0
        %v661 = vadd.f32 %v454, %v660
        %662 = vmatmul.bf16.gmra.mxu0 %v493
        %v663 = vpop.f32.mrf.mxu0
        %v664 = vadd.f32 %v454, %v663
        %v665 = vpop.f32.mrf.mxu0
        %v666 = vadd.f32 %v454, %v665
        %667 = vmatmul.bf16.gmra.mxu0 %v494
        %v668 = vpop.f32.mrf.mxu0
        %v669 = vadd.f32 %v454, %v668
        %v670 = vpop.f32.mrf.mxu0
        %v671 = vadd.f32 %v454, %v670
        %672 = vmatmul.bf16.gmra.mxu0 %v495
        %v673 = vpop.f32.mrf.mxu0
        %v674 = vadd.f32 %v454, %v673
        %v675 = vpop.f32.mrf.mxu0
        %v676 = vadd.f32 %v454, %v675
        %677 = vmatmul.bf16.gmra.mxu0 %v496
        %v678 = vpop.f32.mrf.mxu0
        %v679 = vadd.f32 %v454, %v678
        %v680 = vpop.f32.mrf.mxu0
        %v681 = vadd.f32 %v454, %v680
        %682 = vdwg.mxu0
        %v683 = vadd.f32 %v595, %v644
        %684 = vadd.xlane.f32.xlu0 %v683
        %v685 = vpop.xlane.xlu0 %684
        %v686 = vadd.f32 %v597, %v646
        %687 = vadd.xlane.f32.xlu0 %v686
        %v688 = vpop.xlane.xlu0 %687
        %v689 = vadd.f32 %v600, %v649
        %690 = vadd.xlane.f32.xlu0 %v689
        %v691 = vpop.xlane.xlu0 %690
        %v692 = vadd.f32 %v602, %v651
        %693 = vadd.xlane.f32.xlu0 %v692
        %v694 = vpop.xlane.xlu0 %693
        %v695 = vadd.f32 %v605, %v654
        %696 = vadd.xlane.f32.xlu0 %v695
        %v697 = vpop.xlane.xlu0 %696
        %v698 = vadd.f32 %v607, %v656
        %699 = vadd.xlane.f32.xlu0 %v698
        %v700 = vpop.xlane.xlu0 %699
        %v701 = vadd.f32 %v610, %v659
        %702 = vadd.xlane.f32.xlu0 %v701
        %v703 = vpop.xlane.xlu0 %702
        %v704 = vadd.f32 %v612, %v661
        %705 = vadd.xlane.f32.xlu0 %v704
        %v706 = vpop.xlane.xlu0 %705
        %v707 = vadd.f32 %v615, %v664
        %708 = vadd.xlane.f32.xlu0 %v707
        %v709 = vpop.xlane.xlu0 %708
        %v710 = vadd.f32 %v617, %v666
        %711 = vadd.xlane.f32.xlu0 %v710
        %v712 = vpop.xlane.xlu0 %711
        %v713 = vadd.f32 %v620, %v669
        %714 = vadd.xlane.f32.xlu0 %v713
        %v715 = vpop.xlane.xlu0 %714
        %v716 = vadd.f32 %v622, %v671
        %717 = vadd.xlane.f32.xlu0 %v716
        %v718 = vpop.xlane.xlu0 %717
        %v719 = vadd.f32 %v625, %v674
        %720 = vadd.xlane.f32.xlu0 %v719
        %v721 = vpop.xlane.xlu0 %720
        %v722 = vadd.f32 %v627, %v676
        %723 = vadd.xlane.f32.xlu0 %v722
        %v724 = vpop.xlane.xlu0 %723
        %v725 = vadd.f32 %v630, %v679
        %726 = vadd.xlane.f32.xlu0 %v725
        %v727 = vpop.xlane.xlu0 %726
        %v728 = vadd.f32 %v632, %v681
        %729 = vadd.xlane.f32.xlu0 %v728
        %v730 = vpop.xlane.xlu0 %729
        %v731 = vrcp.pop 256.0
        %v732 = vmul.f32 256.0, %v731
        %v733 = vsub.f32 1.0, %v732
        %v734 = vmul.f32 %v731, %v733
        %v735 = vadd.f32 %v731, %v734
        %vm736 = vweird.f32 %v731
        %v737 = vsel %vm736, %v731, %v735
        %v738 = vmul.f32 %v685, %v737
        %v739 = vmul.f32 %v688, %v737
        %v740 = vmul.f32 %v691, %v737
        %v741 = vmul.f32 %v694, %v737
        %v742 = vmul.f32 %v697, %v737
        %v743 = vmul.f32 %v700, %v737
        %v744 = vmul.f32 %v703, %v737
        %v745 = vmul.f32 %v706, %v737
        %v746 = vmul.f32 %v709, %v737
        %v747 = vmul.f32 %v712, %v737
        %v748 = vmul.f32 %v715, %v737
        %v749 = vmul.f32 %v718, %v737
        %v750 = vmul.f32 %v721, %v737
        %v751 = vmul.f32 %v724, %v737
        %v752 = vmul.f32 %v727, %v737
        %v753 = vmul.f32 %v730, %v737
        %v754 = vmul.f32 %v595, %v595
        %v755 = vmul.f32 %v644, %v644
        %v756 = vmul.f32 %v597, %v597
        %v757 = vmul.f32 %v646, %v646
        %v758 = vmul.f32 %v600, %v600
        %v759 = vmul.f32 %v649, %v649
        %v760 = vmul.f32 %v602, %v602
        %v761 = vmul.f32 %v651, %v651
        %v762 = vmul.f32 %v605, %v605
        %v763 = vmul.f32 %v654, %v654
        %v764 = vmul.f32 %v607, %v607
        %v765 = vmul.f32 %v656, %v656
        %v766 = vmul.f32 %v610, %v610
        %v767 = vmul.f32 %v659, %v659
        %v768 = vmul.f32 %v612, %v612
        %v769 = vmul.f32 %v661, %v661
        %v770 = vmul.f32 %v615, %v615
        %v771 = vmul.f32 %v664, %v664
        %v772 = vmul.f32 %v617, %v617
        %v773 = vmul.f32 %v666, %v666
        %v774 = vmul.f32 %v620, %v620
        %v775 = vmul.f32 %v669, %v669
        %v776 = vmul.f32 %v622, %v622
        %v777 = vmul.f32 %v671, %v671
        %v778 = vmul.f32 %v625, %v625
        %v779 = vmul.f32 %v674, %v674
        %v780 = vmul.f32 %v627, %v627
        %v781 = vmul.f32 %v676, %v676
        %v782 = vmul.f32 %v630, %v630
        %v783 = vmul.f32 %v679, %v679
        %v784 = vmul.f32 %v632, %v632
        %v785 = vmul.f32 %v681, %v681
        %v786 = vadd.f32 %v754, %v755
        %787 = vadd.xlane.f32.xlu0 %v786
        %v788 = vpop.xlane.xlu0 %787
        %v789 = vadd.f32 %v756, %v757
        %790 = vadd.xlane.f32.xlu0 %v789
        %v791 = vpop.xlane.xlu0 %790
        %v792 = vadd.f32 %v758, %v759
        %793 = vadd.xlane.f32.xlu0 %v792
        %v794 = vpop.xlane.xlu0 %793
        %v795 = vadd.f32 %v760, %v761
        %796 = vadd.xlane.f32.xlu0 %v795
        %v797 = vpop.xlane.xlu0 %796
        %v798 = vadd.f32 %v762, %v763
        %799 = vadd.xlane.f32.xlu0 %v798
        %v800 = vpop.xlane.xlu0 %799
        %v801 = vadd.f32 %v764, %v765
        %802 = vadd.xlane.f32.xlu0 %v801
        %v803 = vpop.xlane.xlu0 %802
        %v804 = vadd.f32 %v766, %v767
        %805 = vadd.xlane.f32.xlu0 %v804
        %v806 = vpop.xlane.xlu0 %805
        %v807 = vadd.f32 %v768, %v769
        %808 = vadd.xlane.f32.xlu0 %v807
        %v809 = vpop.xlane.xlu0 %808
        %v810 = vadd.f32 %v770, %v771
        %811 = vadd.xlane.f32.xlu0 %v810
        %v812 = vpop.xlane.xlu0 %811
        %v813 = vadd.f32 %v772, %v773
        %814 = vadd.xlane.f32.xlu0 %v813
        %v815 = vpop.xlane.xlu0 %814
        %v816 = vadd.f32 %v774, %v775
        %817 = vadd.xlane.f32.xlu0 %v816
        %v818 = vpop.xlane.xlu0 %817
        %v819 = vadd.f32 %v776, %v777
        %820 = vadd.xlane.f32.xlu0 %v819
        %v821 = vpop.xlane.xlu0 %820
        %v822 = vadd.f32 %v778, %v779
        %823 = vadd.xlane.f32.xlu0 %v822
        %v824 = vpop.xlane.xlu0 %823
        %v825 = vadd.f32 %v780, %v781
        %826 = vadd.xlane.f32.xlu0 %v825
        %v827 = vpop.xlane.xlu0 %826
        %v828 = vadd.f32 %v782, %v783
        %829 = vadd.xlane.f32.xlu0 %v828
        %v830 = vpop.xlane.xlu0 %829
        %v831 = vadd.f32 %v784, %v785
        %832 = vadd.xlane.f32.xlu0 %v831
        %v833 = vpop.xlane.xlu0 %832
        %v834 = vmul.f32 %v788, %v737
        %v835 = vmul.f32 %v791, %v737
        %v836 = vmul.f32 %v794, %v737
        %v837 = vmul.f32 %v797, %v737
        %v838 = vmul.f32 %v800, %v737
        %v839 = vmul.f32 %v803, %v737
        %v840 = vmul.f32 %v806, %v737
        %v841 = vmul.f32 %v809, %v737
        %v842 = vmul.f32 %v812, %v737
        %v843 = vmul.f32 %v815, %v737
        %v844 = vmul.f32 %v818, %v737
        %v845 = vmul.f32 %v821, %v737
        %v846 = vmul.f32 %v824, %v737
        %v847 = vmul.f32 %v827, %v737
        %v848 = vmul.f32 %v830, %v737
        %v849 = vmul.f32 %v833, %v737
        %v850 = vmul.f32 %v738, %v738
        %v851 = vmul.f32 %v739, %v739
        %v852 = vmul.f32 %v740, %v740
        %v853 = vmul.f32 %v741, %v741
        %v854 = vmul.f32 %v742, %v742
        %v855 = vmul.f32 %v743, %v743
        %v856 = vmul.f32 %v744, %v744
        %v857 = vmul.f32 %v745, %v745
        %v858 = vmul.f32 %v746, %v746
        %v859 = vmul.f32 %v747, %v747
        %v860 = vmul.f32 %v748, %v748
        %v861 = vmul.f32 %v749, %v749
        %v862 = vmul.f32 %v750, %v750
        %v863 = vmul.f32 %v751, %v751
        %v864 = vmul.f32 %v752, %v752
        %v865 = vmul.f32 %v753, %v753
        %v866 = vsub.f32 %v834, %v850
        %v867 = vsub.f32 %v835, %v851
        %v868 = vsub.f32 %v836, %v852
        %v869 = vsub.f32 %v837, %v853
        %v870 = vsub.f32 %v838, %v854
        %v871 = vsub.f32 %v839, %v855
        %v872 = vsub.f32 %v840, %v856
        %v873 = vsub.f32 %v841, %v857
        %v874 = vsub.f32 %v842, %v858
        %v875 = vsub.f32 %v843, %v859
        %v876 = vsub.f32 %v844, %v860
        %v877 = vsub.f32 %v845, %v861
        %v878 = vsub.f32 %v846, %v862
        %v879 = vsub.f32 %v847, %v863
        %v880 = vsub.f32 %v848, %v864
        %v881 = vsub.f32 %v849, %v865
        %v882 = vmax.f32 %v866, 0.0
        %v883 = vmax.f32 %v867, 0.0
        %v884 = vmax.f32 %v868, 0.0
        %v885 = vmax.f32 %v869, 0.0
        %v886 = vmax.f32 %v870, 0.0
        %v887 = vmax.f32 %v871, 0.0
        %v888 = vmax.f32 %v872, 0.0
        %v889 = vmax.f32 %v873, 0.0
        %v890 = vmax.f32 %v874, 0.0
        %v891 = vmax.f32 %v875, 0.0
        %v892 = vmax.f32 %v876, 0.0
        %v893 = vmax.f32 %v877, 0.0
        %v894 = vmax.f32 %v878, 0.0
        %v895 = vmax.f32 %v879, 0.0
        %v896 = vmax.f32 %v880, 0.0
        %v897 = vmax.f32 %v881, 0.0
        %v898 = vadd.f32 %v882, 1e-05
        %v899 = vadd.f32 %v883, 1e-05
        %v900 = vadd.f32 %v884, 1e-05
        %v901 = vadd.f32 %v885, 1e-05
        %v902 = vadd.f32 %v886, 1e-05
        %v903 = vadd.f32 %v887, 1e-05
        %v904 = vadd.f32 %v888, 1e-05
        %v905 = vadd.f32 %v889, 1e-05
        %v906 = vadd.f32 %v890, 1e-05
        %v907 = vadd.f32 %v891, 1e-05
        %v908 = vadd.f32 %v892, 1e-05
        %v909 = vadd.f32 %v893, 1e-05
        %v910 = vadd.f32 %v894, 1e-05
        %v911 = vadd.f32 %v895, 1e-05
        %v912 = vadd.f32 %v896, 1e-05
        %v913 = vadd.f32 %v897, 1e-05
        %v914 = vrsqrt.pop %v898
        %v915 = vmul.f32 %v914, %v898
        %v916 = vmul.f32 %v915, %v914
        %v917 = vmul.f32 0.5, %v916
        %v918 = vsub.f32 1.5, %v917
        %v919 = vmul.f32 %v914, %v918
        %vm920 = vweird.f32 %v898
        %vm921 = vweird.f32 %v914
        %vm922 = vmor %vm920, %vm921
        %v923 = vsel %vm922, %v914, %v919
        %v924 = vrsqrt.pop %v899
        %v925 = vmul.f32 %v924, %v899
        %v926 = vmul.f32 %v925, %v924
        %v927 = vmul.f32 0.5, %v926
        %v928 = vsub.f32 1.5, %v927
        %v929 = vmul.f32 %v924, %v928
        %vm930 = vweird.f32 %v899
        %vm931 = vweird.f32 %v924
        %vm932 = vmor %vm930, %vm931
        %v933 = vsel %vm932, %v924, %v929
        %v934 = vrsqrt.pop %v900
        %v935 = vmul.f32 %v934, %v900
        %v936 = vmul.f32 %v935, %v934
        %v937 = vmul.f32 0.5, %v936
        %v938 = vsub.f32 1.5, %v937
        %v939 = vmul.f32 %v934, %v938
        %vm940 = vweird.f32 %v900
        %vm941 = vweird.f32 %v934
        %vm942 = vmor %vm940, %vm941
        %v943 = vsel %vm942, %v934, %v939
        %v944 = vrsqrt.pop %v901
        %v945 = vmul.f32 %v944, %v901
        %v946 = vmul.f32 %v945, %v944
        %v947 = vmul.f32 0.5, %v946
        %v948 = vsub.f32 1.5, %v947
        %v949 = vmul.f32 %v944, %v948
        %vm950 = vweird.f32 %v901
        %vm951 = vweird.f32 %v944
        %vm952 = vmor %vm950, %vm951
        %v953 = vsel %vm952, %v944, %v949
        %v954 = vrsqrt.pop %v902
        %v955 = vmul.f32 %v954, %v902
        %v956 = vmul.f32 %v955, %v954
        %v957 = vmul.f32 0.5, %v956
        %v958 = vsub.f32 1.5, %v957
        %v959 = vmul.f32 %v954, %v958
        %vm960 = vweird.f32 %v902
        %vm961 = vweird.f32 %v954
        %vm962 = vmor %vm960, %vm961
        %v963 = vsel %vm962, %v954, %v959
        %v964 = vrsqrt.pop %v903
        %v965 = vmul.f32 %v964, %v903
        %v966 = vmul.f32 %v965, %v964
        %v967 = vmul.f32 0.5, %v966
        %v968 = vsub.f32 1.5, %v967
        %v969 = vmul.f32 %v964, %v968
        %vm970 = vweird.f32 %v903
        %vm971 = vweird.f32 %v964
        %vm972 = vmor %vm970, %vm971
        %v973 = vsel %vm972, %v964, %v969
        %v974 = vrsqrt.pop %v904
        %v975 = vmul.f32 %v974, %v904
        %v976 = vmul.f32 %v975, %v974
        %v977 = vmul.f32 0.5, %v976
        %v978 = vsub.f32 1.5, %v977
        %v979 = vmul.f32 %v974, %v978
        %vm980 = vweird.f32 %v904
        %vm981 = vweird.f32 %v974
        %vm982 = vmor %vm980, %vm981
        %v983 = vsel %vm982, %v974, %v979
        %v984 = vrsqrt.pop %v905
        %v985 = vmul.f32 %v984, %v905
        %v986 = vmul.f32 %v985, %v984
        %v987 = vmul.f32 0.5, %v986
        %v988 = vsub.f32 1.5, %v987
        %v989 = vmul.f32 %v984, %v988
        %vm990 = vweird.f32 %v905
        %vm991 = vweird.f32 %v984
        %vm992 = vmor %vm990, %vm991
        %v993 = vsel %vm992, %v984, %v989
        %v994 = vrsqrt.pop %v906
        %v995 = vmul.f32 %v994, %v906
        %v996 = vmul.f32 %v995, %v994
        %v997 = vmul.f32 0.5, %v996
        %v998 = vsub.f32 1.5, %v997
        %v999 = vmul.f32 %v994, %v998
        %vm1000 = vweird.f32 %v906
        %vm1001 = vweird.f32 %v994
        %vm1002 = vmor %vm1000, %vm1001
        %v1003 = vsel %vm1002, %v994, %v999
        %v1004 = vrsqrt.pop %v907
        %v1005 = vmul.f32 %v1004, %v907
        %v1006 = vmul.f32 %v1005, %v1004
        %v1007 = vmul.f32 0.5, %v1006
        %v1008 = vsub.f32 1.5, %v1007
        %v1009 = vmul.f32 %v1004, %v1008
        %vm1010 = vweird.f32 %v907
        %vm1011 = vweird.f32 %v1004
        %vm1012 = vmor %vm1010, %vm1011
        %v1013 = vsel %vm1012, %v1004, %v1009
        %v1014 = vrsqrt.pop %v908
        %v1015 = vmul.f32 %v1014, %v908
        %v1016 = vmul.f32 %v1015, %v1014
        %v1017 = vmul.f32 0.5, %v1016
        %v1018 = vsub.f32 1.5, %v1017
        %v1019 = vmul.f32 %v1014, %v1018
        %vm1020 = vweird.f32 %v908
        %vm1021 = vweird.f32 %v1014
        %vm1022 = vmor %vm1020, %vm1021
        %v1023 = vsel %vm1022, %v1014, %v1019
        %v1024 = vrsqrt.pop %v909
        %v1025 = vmul.f32 %v1024, %v909
        %v1026 = vmul.f32 %v1025, %v1024
        %v1027 = vmul.f32 0.5, %v1026
        %v1028 = vsub.f32 1.5, %v1027
        %v1029 = vmul.f32 %v1024, %v1028
        %vm1030 = vweird.f32 %v909
        %vm1031 = vweird.f32 %v1024
        %vm1032 = vmor %vm1030, %vm1031
        %v1033 = vsel %vm1032, %v1024, %v1029
        %v1034 = vrsqrt.pop %v910
        %v1035 = vmul.f32 %v1034, %v910
        %v1036 = vmul.f32 %v1035, %v1034
        %v1037 = vmul.f32 0.5, %v1036
        %v1038 = vsub.f32 1.5, %v1037
        %v1039 = vmul.f32 %v1034, %v1038
        %vm1040 = vweird.f32 %v910
        %vm1041 = vweird.f32 %v1034
        %vm1042 = vmor %vm1040, %vm1041
        %v1043 = vsel %vm1042, %v1034, %v1039
        %v1044 = vrsqrt.pop %v911
        %v1045 = vmul.f32 %v1044, %v911
        %v1046 = vmul.f32 %v1045, %v1044
        %v1047 = vmul.f32 0.5, %v1046
        %v1048 = vsub.f32 1.5, %v1047
        %v1049 = vmul.f32 %v1044, %v1048
        %vm1050 = vweird.f32 %v911
        %vm1051 = vweird.f32 %v1044
        %vm1052 = vmor %vm1050, %vm1051
        %v1053 = vsel %vm1052, %v1044, %v1049
        %v1054 = vrsqrt.pop %v912
        %v1055 = vmul.f32 %v1054, %v912
        %v1056 = vmul.f32 %v1055, %v1054
        %v1057 = vmul.f32 0.5, %v1056
        %v1058 = vsub.f32 1.5, %v1057
        %v1059 = vmul.f32 %v1054, %v1058
        %vm1060 = vweird.f32 %v912
        %vm1061 = vweird.f32 %v1054
        %vm1062 = vmor %vm1060, %vm1061
        %v1063 = vsel %vm1062, %v1054, %v1059
        %v1064 = vrsqrt.pop %v913
        %v1065 = vmul.f32 %v1064, %v913
        %v1066 = vmul.f32 %v1065, %v1064
        %v1067 = vmul.f32 0.5, %v1066
        %v1068 = vsub.f32 1.5, %v1067
        %v1069 = vmul.f32 %v1064, %v1068
        %vm1070 = vweird.f32 %v913
        %vm1071 = vweird.f32 %v1064
        %vm1072 = vmor %vm1070, %vm1071
        %v1073 = vsel %vm1072, %v1064, %v1069
        %v1074 = vmul.f32 %v595, %v923
        %v1075 = vmul.f32 %v644, %v923
        %v1076 = vmul.f32 %v597, %v933
        %v1077 = vmul.f32 %v646, %v933
        %v1078 = vmul.f32 %v600, %v943
        %v1079 = vmul.f32 %v649, %v943
        %v1080 = vmul.f32 %v602, %v953
        %v1081 = vmul.f32 %v651, %v953
        %v1082 = vmul.f32 %v605, %v963
        %v1083 = vmul.f32 %v654, %v963
        %v1084 = vmul.f32 %v607, %v973
        %v1085 = vmul.f32 %v656, %v973
        %v1086 = vmul.f32 %v610, %v983
        %v1087 = vmul.f32 %v659, %v983
        %v1088 = vmul.f32 %v612, %v993
        %v1089 = vmul.f32 %v661, %v993
        %v1090 = vmul.f32 %v615, %v1003
        %v1091 = vmul.f32 %v664, %v1003
        %v1092 = vmul.f32 %v617, %v1013
        %v1093 = vmul.f32 %v666, %v1013
        %v1094 = vmul.f32 %v620, %v1023
        %v1095 = vmul.f32 %v669, %v1023
        %v1096 = vmul.f32 %v622, %v1033
        %v1097 = vmul.f32 %v671, %v1033
        %v1098 = vmul.f32 %v625, %v1043
        %v1099 = vmul.f32 %v674, %v1043
        %v1100 = vmul.f32 %v627, %v1053
        %v1101 = vmul.f32 %v676, %v1053
        %v1102 = vmul.f32 %v630, %v1063
        %v1103 = vmul.f32 %v679, %v1063
        %v1104 = vmul.f32 %v632, %v1073
        %v1105 = vmul.f32 %v681, %v1073
        %v1106 = vmul.f32 %v738, %v923
        %v1107 = vmul.f32 %v739, %v933
        %v1108 = vmul.f32 %v740, %v943
        %v1109 = vmul.f32 %v741, %v953
        %v1110 = vmul.f32 %v742, %v963
        %v1111 = vmul.f32 %v743, %v973
        %v1112 = vmul.f32 %v744, %v983
        %v1113 = vmul.f32 %v745, %v993
        %v1114 = vmul.f32 %v746, %v1003
        %v1115 = vmul.f32 %v747, %v1013
        %v1116 = vmul.f32 %v748, %v1023
        %v1117 = vmul.f32 %v749, %v1033
        %v1118 = vmul.f32 %v750, %v1043
        %v1119 = vmul.f32 %v751, %v1053
        %v1120 = vmul.f32 %v752, %v1063
        %v1121 = vmul.f32 %v753, %v1073
        %v1122 = vsub.f32 %v1074, %v1106
        %v1123 = vsub.f32 %v1075, %v1106
        %v1124 = vsub.f32 %v1076, %v1107
        %v1125 = vsub.f32 %v1077, %v1107
        %v1126 = vsub.f32 %v1078, %v1108
        %v1127 = vsub.f32 %v1079, %v1108
        %v1128 = vsub.f32 %v1080, %v1109
        %v1129 = vsub.f32 %v1081, %v1109
        %v1130 = vsub.f32 %v1082, %v1110
        %v1131 = vsub.f32 %v1083, %v1110
        %v1132 = vsub.f32 %v1084, %v1111
        %v1133 = vsub.f32 %v1085, %v1111
        %v1134 = vsub.f32 %v1086, %v1112
        %v1135 = vsub.f32 %v1087, %v1112
        %v1136 = vsub.f32 %v1088, %v1113
        %v1137 = vsub.f32 %v1089, %v1113
        %v1138 = vsub.f32 %v1090, %v1114
        %v1139 = vsub.f32 %v1091, %v1114
        %v1140 = vsub.f32 %v1092, %v1115
        %v1141 = vsub.f32 %v1093, %v1115
        %v1142 = vsub.f32 %v1094, %v1116
        %v1143 = vsub.f32 %v1095, %v1116
        %v1144 = vsub.f32 %v1096, %v1117
        %v1145 = vsub.f32 %v1097, %v1117
        %v1146 = vsub.f32 %v1098, %v1118
        %v1147 = vsub.f32 %v1099, %v1118
        %v1148 = vsub.f32 %v1100, %v1119
        %v1149 = vsub.f32 %v1101, %v1119
        %v1150 = vsub.f32 %v1102, %v1120
        %v1151 = vsub.f32 %v1103, %v1120
        %v1152 = vsub.f32 %v1104, %v1121
        %v1153 = vsub.f32 %v1105, %v1121
        %v1155 = vperm.slane %v450, 0
        %v1156 = vperm.slane %v450, 1
        %v1159 = vmul.f32 %v1122, %v1155
        %v1160 = vmul.f32 %v1123, %v1156
        %v1161 = vmul.f32 %v1124, %v1155
        %v1162 = vmul.f32 %v1125, %v1156
        %v1163 = vmul.f32 %v1126, %v1155
        %v1164 = vmul.f32 %v1127, %v1156
        %v1165 = vmul.f32 %v1128, %v1155
        %v1166 = vmul.f32 %v1129, %v1156
        %v1167 = vmul.f32 %v1130, %v1155
        %v1168 = vmul.f32 %v1131, %v1156
        %v1169 = vmul.f32 %v1132, %v1155
        %v1170 = vmul.f32 %v1133, %v1156
        %v1171 = vmul.f32 %v1134, %v1155
        %v1172 = vmul.f32 %v1135, %v1156
        %v1173 = vmul.f32 %v1136, %v1155
        %v1174 = vmul.f32 %v1137, %v1156
        %v1175 = vmul.f32 %v1138, %v1155
        %v1176 = vmul.f32 %v1139, %v1156
        %v1177 = vmul.f32 %v1140, %v1155
        %v1178 = vmul.f32 %v1141, %v1156
        %v1179 = vmul.f32 %v1142, %v1155
        %v1180 = vmul.f32 %v1143, %v1156
        %v1181 = vmul.f32 %v1144, %v1155
        %v1182 = vmul.f32 %v1145, %v1156
        %v1183 = vmul.f32 %v1146, %v1155
        %v1184 = vmul.f32 %v1147, %v1156
        %v1185 = vmul.f32 %v1148, %v1155
        %v1186 = vmul.f32 %v1149, %v1156
        %v1187 = vmul.f32 %v1150, %v1155
        %v1188 = vmul.f32 %v1151, %v1156
        %v1189 = vmul.f32 %v1152, %v1155
        %v1190 = vmul.f32 %v1153, %v1156
        %v1192 = vperm.slane %v451, 0
        %v1193 = vperm.slane %v451, 1
        %v1196 = vadd.f32 %v1159, %v1192
        %v1197 = vadd.f32 %v1160, %v1193
        %v1198 = vadd.f32 %v1161, %v1192
        %v1199 = vadd.f32 %v1162, %v1193
        %v1200 = vadd.f32 %v1163, %v1192
        %v1201 = vadd.f32 %v1164, %v1193
        %v1202 = vadd.f32 %v1165, %v1192
        %v1203 = vadd.f32 %v1166, %v1193
        %v1204 = vadd.f32 %v1167, %v1192
        %v1205 = vadd.f32 %v1168, %v1193
        %v1206 = vadd.f32 %v1169, %v1192
        %v1207 = vadd.f32 %v1170, %v1193
        %v1208 = vadd.f32 %v1171, %v1192
        %v1209 = vadd.f32 %v1172, %v1193
        %v1210 = vadd.f32 %v1173, %v1192
        %v1211 = vadd.f32 %v1174, %v1193
        %v1212 = vadd.f32 %v1175, %v1192
        %v1213 = vadd.f32 %v1176, %v1193
        %v1214 = vadd.f32 %v1177, %v1192
        %v1215 = vadd.f32 %v1178, %v1193
        %v1216 = vadd.f32 %v1179, %v1192
        %v1217 = vadd.f32 %v1180, %v1193
        %v1218 = vadd.f32 %v1181, %v1192
        %v1219 = vadd.f32 %v1182, %v1193
        %v1220 = vadd.f32 %v1183, %v1192
        %v1221 = vadd.f32 %v1184, %v1193
        %v1222 = vadd.f32 %v1185, %v1192
        %v1223 = vadd.f32 %v1186, %v1193
        %v1224 = vadd.f32 %v1187, %v1192
        %v1225 = vadd.f32 %v1188, %v1193
        %v1226 = vadd.f32 %v1189, %v1192
        %v1227 = vadd.f32 %v1190, %v1193
        %v1228 = vmax.f32 %v1196, 0.0
        %v1229 = vmax.f32 %v1197, 0.0
        %v1230 = vmax.f32 %v1198, 0.0
        %v1231 = vmax.f32 %v1199, 0.0
        %v1232 = vmax.f32 %v1200, 0.0
        %v1233 = vmax.f32 %v1201, 0.0
        %v1234 = vmax.f32 %v1202, 0.0
        %v1235 = vmax.f32 %v1203, 0.0
        %v1236 = vmax.f32 %v1204, 0.0
        %v1237 = vmax.f32 %v1205, 0.0
        %v1238 = vmax.f32 %v1206, 0.0
        %v1239 = vmax.f32 %v1207, 0.0
        %v1240 = vmax.f32 %v1208, 0.0
        %v1241 = vmax.f32 %v1209, 0.0
        %v1242 = vmax.f32 %v1210, 0.0
        %v1243 = vmax.f32 %v1211, 0.0
        %v1244 = vmax.f32 %v1212, 0.0
        %v1245 = vmax.f32 %v1213, 0.0
        %v1246 = vmax.f32 %v1214, 0.0
        %v1247 = vmax.f32 %v1215, 0.0
        %v1248 = vmax.f32 %v1216, 0.0
        %v1249 = vmax.f32 %v1217, 0.0
        %v1250 = vmax.f32 %v1218, 0.0
        %v1251 = vmax.f32 %v1219, 0.0
        %v1252 = vmax.f32 %v1220, 0.0
        %v1253 = vmax.f32 %v1221, 0.0
        %v1254 = vmax.f32 %v1222, 0.0
        %v1255 = vmax.f32 %v1223, 0.0
        %v1256 = vmax.f32 %v1224, 0.0
        %v1257 = vmax.f32 %v1225, 0.0
        %v1258 = vmax.f32 %v1226, 0.0
        %v1259 = vmax.f32 %v1227, 0.0
        %v1260 = vpack.c.bf16 %v1230, %v1228
        %v1261 = vpack.c.bf16 %v1231, %v1229
        %v1262 = vpack.c.bf16 %v1234, %v1232
        %v1263 = vpack.c.bf16 %v1235, %v1233
        %v1264 = vpack.c.bf16 %v1238, %v1236
        %v1265 = vpack.c.bf16 %v1239, %v1237
        %v1266 = vpack.c.bf16 %v1242, %v1240
        %v1267 = vpack.c.bf16 %v1243, %v1241
        %v1268 = vpack.c.bf16 %v1246, %v1244
        %v1269 = vpack.c.bf16 %v1247, %v1245
        %v1270 = vpack.c.bf16 %v1250, %v1248
        %v1271 = vpack.c.bf16 %v1251, %v1249
        %v1272 = vpack.c.bf16 %v1254, %v1252
        %v1273 = vpack.c.bf16 %v1255, %v1253
        %v1274 = vpack.c.bf16 %v1258, %v1256
        %v1275 = vpack.c.bf16 %v1259, %v1257
        %v1276 = vld [vmem:[#allocation10] sm:$0xf]
        %v1277 = vld [vmem:[#allocation10 + $0x4] sm:$0xf]
        %v1278 = vld [vmem:[#allocation10 + $0x8] sm:$0xf]
        %v1279 = vld [vmem:[#allocation10 + $0xc] sm:$0xf]
        %v1280 = vld [vmem:[#allocation10 + $0x10] sm:$0xf]
        %v1281 = vld [vmem:[#allocation10 + $0x14] sm:$0xf]
        %v1282 = vld [vmem:[#allocation10 + $0x18] sm:$0xf]
        %v1283 = vld [vmem:[#allocation10 + $0x1c] sm:$0xf]
        %v1284 = vld [vmem:[#allocation10 + $0x20] sm:$0xf]
        %v1285 = vld [vmem:[#allocation10 + $0x24] sm:$0xf]
        %v1286 = vld [vmem:[#allocation10 + $0x28] sm:$0xf]
        %v1287 = vld [vmem:[#allocation10 + $0x2c] sm:$0xf]
        %v1288 = vld [vmem:[#allocation10 + $0x30] sm:$0xf]
        %v1289 = vld [vmem:[#allocation10 + $0x34] sm:$0xf]
        %v1290 = vld [vmem:[#allocation10 + $0x38] sm:$0xf]
        %v1291 = vld [vmem:[#allocation10 + $0x3c] sm:$0xf]
        %v1292 = vld [vmem:[#allocation10 + $0x40] sm:$0xf]
        %v1293 = vld [vmem:[#allocation10 + $0x44] sm:$0xf]
        %v1294 = vld [vmem:[#allocation10 + $0x48] sm:$0xf]
        %v1295 = vld [vmem:[#allocation10 + $0x4c] sm:$0xf]
        %v1296 = vld [vmem:[#allocation10 + $0x50] sm:$0xf]
        %v1297 = vld [vmem:[#allocation10 + $0x54] sm:$0xf]
        %v1298 = vld [vmem:[#allocation10 + $0x58] sm:$0xf]
        %v1299 = vld [vmem:[#allocation10 + $0x5c] sm:$0xf]
        %v1300 = vld [vmem:[#allocation10 + $0x60] sm:$0xf]
        %v1301 = vld [vmem:[#allocation10 + $0x64] sm:$0xf]
        %v1302 = vld [vmem:[#allocation10 + $0x68] sm:$0xf]
        %v1303 = vld [vmem:[#allocation10 + $0x6c] sm:$0xf]
        %v1304 = vld [vmem:[#allocation10 + $0x70] sm:$0xf]
        %v1305 = vld [vmem:[#allocation10 + $0x74] sm:$0xf]
        %v1306 = vld [vmem:[#allocation10 + $0x78] sm:$0xf]
        %v1307 = vld [vmem:[#allocation10 + $0x7c] sm:$0xf]
        %v1308 = vld [vmem:[%s6] sm:$0x1]
        %v1309 = vld [vmem:[%s7] sm:$0x1]
        %v1310 = vld [vmem:[%s8] sm:$0x1]
        %v1312 = vperm.slane %v1308, 0
        %v1346 = vunpack.c.l.b16 %v1276
        %v1347 = vunpack.c.l.b16 %v1277
        %v1348 = vunpack.c.l.b16 %v1278
        %v1349 = vunpack.c.l.b16 %v1279
        %v1350 = vunpack.c.l.b16 %v1280
        %v1351 = vunpack.c.l.b16 %v1281
        %v1352 = vunpack.c.l.b16 %v1282
        %v1353 = vunpack.c.l.b16 %v1283
        %v1354 = vunpack.c.l.b16 %v1284
        %v1355 = vunpack.c.l.b16 %v1285
        %v1356 = vunpack.c.l.b16 %v1286
        %v1357 = vunpack.c.l.b16 %v1287
        %v1358 = vunpack.c.l.b16 %v1288
        %v1359 = vunpack.c.l.b16 %v1289
        %v1360 = vunpack.c.l.b16 %v1290
        %v1361 = vunpack.c.l.b16 %v1291
        %v1362 = vunpack.c.l.b16 %v1292
        %v1363 = vunpack.c.l.b16 %v1293
        %v1364 = vunpack.c.l.b16 %v1294
        %v1365 = vunpack.c.l.b16 %v1295
        %v1366 = vunpack.c.l.b16 %v1296
        %v1367 = vunpack.c.l.b16 %v1297
        %v1368 = vunpack.c.l.b16 %v1298
        %v1369 = vunpack.c.l.b16 %v1299
        %v1370 = vunpack.c.l.b16 %v1300
        %v1371 = vunpack.c.l.b16 %v1301
        %v1372 = vunpack.c.l.b16 %v1302
        %v1373 = vunpack.c.l.b16 %v1303
        %v1374 = vunpack.c.l.b16 %v1304
        %v1375 = vunpack.c.l.b16 %v1305
        %v1376 = vunpack.c.l.b16 %v1306
        %v1377 = vunpack.c.l.b16 %v1307
        %v1378 = vpack.c.b16 %v1347, %v1346
        %v1379 = vpack.c.b16 %v1349, %v1348
        %v1380 = vpack.c.b16 %v1351, %v1350
        %v1381 = vpack.c.b16 %v1353, %v1352
        %v1382 = vpack.c.b16 %v1355, %v1354
        %v1383 = vpack.c.b16 %v1357, %v1356
        %v1384 = vpack.c.b16 %v1359, %v1358
        %v1385 = vpack.c.b16 %v1361, %v1360
        %v1386 = vpack.c.b16 %v1363, %v1362
        %v1387 = vpack.c.b16 %v1365, %v1364
        %v1388 = vpack.c.b16 %v1367, %v1366
        %v1389 = vpack.c.b16 %v1369, %v1368
        %v1390 = vpack.c.b16 %v1371, %v1370
        %v1391 = vpack.c.b16 %v1373, %v1372
        %v1392 = vpack.c.b16 %v1375, %v1374
        %v1393 = vpack.c.b16 %v1377, %v1376
        %1410 = vmatpush.bf16.msra.mxu0 %v1385
        %1411 = vmatpush.bf16.msra.mxu0 %v1384
        %1412 = vmatpush.bf16.msra.mxu0 %v1383
        %1413 = vmatpush.bf16.msra.mxu0 %v1382
        %1414 = vmatpush.bf16.msra.mxu0 %v1381
        %1415 = vmatpush.bf16.msra.mxu0 %v1380
        %1416 = vmatpush.bf16.msra.mxu0 %v1379
        %1417 = vmatpush.bf16.msra.mxu0 %v1378
        %1418 = vmatmul.bf16.gmra.mxu0 %v1260
        %v1419 = vpop.f32.mrf.mxu0
        %v1420 = vadd.f32 %v1312, %v1419
        %v1421 = vpop.f32.mrf.mxu0
        %v1422 = vadd.f32 %v1312, %v1421
        %1423 = vmatmul.bf16.gmra.mxu0 %v1262
        %v1424 = vpop.f32.mrf.mxu0
        %v1425 = vadd.f32 %v1312, %v1424
        %v1426 = vpop.f32.mrf.mxu0
        %v1427 = vadd.f32 %v1312, %v1426
        %1428 = vmatmul.bf16.gmra.mxu0 %v1264
        %v1429 = vpop.f32.mrf.mxu0
        %v1430 = vadd.f32 %v1312, %v1429
        %v1431 = vpop.f32.mrf.mxu0
        %v1432 = vadd.f32 %v1312, %v1431
        %1433 = vmatmul.bf16.gmra.mxu0 %v1266
        %v1434 = vpop.f32.mrf.mxu0
        %v1435 = vadd.f32 %v1312, %v1434
        %v1436 = vpop.f32.mrf.mxu0
        %v1437 = vadd.f32 %v1312, %v1436
        %1438 = vmatmul.bf16.gmra.mxu0 %v1268
        %v1439 = vpop.f32.mrf.mxu0
        %v1440 = vadd.f32 %v1312, %v1439
        %v1441 = vpop.f32.mrf.mxu0
        %v1442 = vadd.f32 %v1312, %v1441
        %1443 = vmatmul.bf16.gmra.mxu0 %v1270
        %v1444 = vpop.f32.mrf.mxu0
        %v1445 = vadd.f32 %v1312, %v1444
        %v1446 = vpop.f32.mrf.mxu0
        %v1447 = vadd.f32 %v1312, %v1446
        %1448 = vmatmul.bf16.gmra.mxu0 %v1272
        %v1449 = vpop.f32.mrf.mxu0
        %v1450 = vadd.f32 %v1312, %v1449
        %v1451 = vpop.f32.mrf.mxu0
        %v1452 = vadd.f32 %v1312, %v1451
        %1453 = vmatmul.bf16.gmra.mxu0 %v1274
        %v1454 = vpop.f32.mrf.mxu0
        %v1455 = vadd.f32 %v1312, %v1454
        %v1456 = vpop.f32.mrf.mxu0
        %v1457 = vadd.f32 %v1312, %v1456
        %1458 = vdwg.mxu0
        %1459 = vmatpush.bf16.msra.mxu0 %v1393
        %1460 = vmatpush.bf16.msra.mxu0 %v1392
        %1461 = vmatpush.bf16.msra.mxu0 %v1391
        %1462 = vmatpush.bf16.msra.mxu0 %v1390
        %1463 = vmatpush.bf16.msra.mxu0 %v1389
        %1464 = vmatpush.bf16.msra.mxu0 %v1388
        %1465 = vmatpush.bf16.msra.mxu0 %v1387
        %1466 = vmatpush.bf16.msra.mxu0 %v1386
        %1467 = vmatmul.bf16.gmra.mxu0 %v1261
        %v1468 = vpop.f32.mrf.mxu0
        %v1469 = vadd.f32 %v1420, %v1468
        %v1470 = vpop.f32.mrf.mxu0
        %v1471 = vadd.f32 %v1422, %v1470
        %1472 = vmatmul.bf16.gmra.mxu0 %v1263
        %v1473 = vpop.f32.mrf.mxu0
        %v1474 = vadd.f32 %v1425, %v1473
        %v1475 = vpop.f32.mrf.mxu0
        %v1476 = vadd.f32 %v1427, %v1475
        %1477 = vmatmul.bf16.gmra.mxu0 %v1265
        %v1478 = vpop.f32.mrf.mxu0
        %v1479 = vadd.f32 %v1430, %v1478
        %v1480 = vpop.f32.mrf.mxu0
        %v1481 = vadd.f32 %v1432, %v1480
        %1482 = vmatmul.bf16.gmra.mxu0 %v1267
        %v1483 = vpop.f32.mrf.mxu0
        %v1484 = vadd.f32 %v1435, %v1483
        %v1485 = vpop.f32.mrf.mxu0
        %v1486 = vadd.f32 %v1437, %v1485
        %1487 = vmatmul.bf16.gmra.mxu0 %v1269
        %v1488 = vpop.f32.mrf.mxu0
        %v1489 = vadd.f32 %v1440, %v1488
        %v1490 = vpop.f32.mrf.mxu0
        %v1491 = vadd.f32 %v1442, %v1490
        %1492 = vmatmul.bf16.gmra.mxu0 %v1271
        %v1493 = vpop.f32.mrf.mxu0
        %v1494 = vadd.f32 %v1445, %v1493
        %v1495 = vpop.f32.mrf.mxu0
        %v1496 = vadd.f32 %v1447, %v1495
        %1497 = vmatmul.bf16.gmra.mxu0 %v1273
        %v1498 = vpop.f32.mrf.mxu0
        %v1499 = vadd.f32 %v1450, %v1498
        %v1500 = vpop.f32.mrf.mxu0
        %v1501 = vadd.f32 %v1452, %v1500
        %1502 = vmatmul.bf16.gmra.mxu0 %v1275
        %v1503 = vpop.f32.mrf.mxu0
        %v1504 = vadd.f32 %v1455, %v1503
        %v1505 = vpop.f32.mrf.mxu0
        %v1506 = vadd.f32 %v1457, %v1505
        %1507 = vdwg.mxu0
        %1508 = vadd.xlane.f32.xlu0 %v1469
        %v1509 = vpop.xlane.xlu0 %1508
        %1510 = vadd.xlane.f32.xlu0 %v1471
        %v1511 = vpop.xlane.xlu0 %1510
        %1512 = vadd.xlane.f32.xlu0 %v1474
        %v1513 = vpop.xlane.xlu0 %1512
        %1514 = vadd.xlane.f32.xlu0 %v1476
        %v1515 = vpop.xlane.xlu0 %1514
        %1516 = vadd.xlane.f32.xlu0 %v1479
        %v1517 = vpop.xlane.xlu0 %1516
        %1518 = vadd.xlane.f32.xlu0 %v1481
        %v1519 = vpop.xlane.xlu0 %1518
        %1520 = vadd.xlane.f32.xlu0 %v1484
        %v1521 = vpop.xlane.xlu0 %1520
        %1522 = vadd.xlane.f32.xlu0 %v1486
        %v1523 = vpop.xlane.xlu0 %1522
        %1524 = vadd.xlane.f32.xlu0 %v1489
        %v1525 = vpop.xlane.xlu0 %1524
        %1526 = vadd.xlane.f32.xlu0 %v1491
        %v1527 = vpop.xlane.xlu0 %1526
        %1528 = vadd.xlane.f32.xlu0 %v1494
        %v1529 = vpop.xlane.xlu0 %1528
        %1530 = vadd.xlane.f32.xlu0 %v1496
        %v1531 = vpop.xlane.xlu0 %1530
        %1532 = vadd.xlane.f32.xlu0 %v1499
        %v1533 = vpop.xlane.xlu0 %1532
        %1534 = vadd.xlane.f32.xlu0 %v1501
        %v1535 = vpop.xlane.xlu0 %1534
        %1536 = vadd.xlane.f32.xlu0 %v1504
        %v1537 = vpop.xlane.xlu0 %1536
        %1538 = vadd.xlane.f32.xlu0 %v1506
        %v1539 = vpop.xlane.xlu0 %1538
        %v1540 = vrcp.pop 128.0
        %v1541 = vmul.f32 128.0, %v1540
        %v1542 = vsub.f32 1.0, %v1541
        %v1543 = vmul.f32 %v1540, %v1542
        %v1544 = vadd.f32 %v1540, %v1543
        %vm1545 = vweird.f32 %v1540
        %v1546 = vsel %vm1545, %v1540, %v1544
        %v1547 = vmul.f32 %v1509, %v1546
        %v1548 = vmul.f32 %v1511, %v1546
        %v1549 = vmul.f32 %v1513, %v1546
        %v1550 = vmul.f32 %v1515, %v1546
        %v1551 = vmul.f32 %v1517, %v1546
        %v1552 = vmul.f32 %v1519, %v1546
        %v1553 = vmul.f32 %v1521, %v1546
        %v1554 = vmul.f32 %v1523, %v1546
        %v1555 = vmul.f32 %v1525, %v1546
        %v1556 = vmul.f32 %v1527, %v1546
        %v1557 = vmul.f32 %v1529, %v1546
        %v1558 = vmul.f32 %v1531, %v1546
        %v1559 = vmul.f32 %v1533, %v1546
        %v1560 = vmul.f32 %v1535, %v1546
        %v1561 = vmul.f32 %v1537, %v1546
        %v1562 = vmul.f32 %v1539, %v1546
        %v1563 = vmul.f32 %v1469, %v1469
        %v1564 = vmul.f32 %v1471, %v1471
        %v1565 = vmul.f32 %v1474, %v1474
        %v1566 = vmul.f32 %v1476, %v1476
        %v1567 = vmul.f32 %v1479, %v1479
        %v1568 = vmul.f32 %v1481, %v1481
        %v1569 = vmul.f32 %v1484, %v1484
        %v1570 = vmul.f32 %v1486, %v1486
        %v1571 = vmul.f32 %v1489, %v1489
        %v1572 = vmul.f32 %v1491, %v1491
        %v1573 = vmul.f32 %v1494, %v1494
        %v1574 = vmul.f32 %v1496, %v1496
        %v1575 = vmul.f32 %v1499, %v1499
        %v1576 = vmul.f32 %v1501, %v1501
        %v1577 = vmul.f32 %v1504, %v1504
        %v1578 = vmul.f32 %v1506, %v1506
        %1579 = vadd.xlane.f32.xlu0 %v1563
        %v1580 = vpop.xlane.xlu0 %1579
        %1581 = vadd.xlane.f32.xlu0 %v1564
        %v1582 = vpop.xlane.xlu0 %1581
        %1583 = vadd.xlane.f32.xlu0 %v1565
        %v1584 = vpop.xlane.xlu0 %1583
        %1585 = vadd.xlane.f32.xlu0 %v1566
        %v1586 = vpop.xlane.xlu0 %1585
        %1587 = vadd.xlane.f32.xlu0 %v1567
        %v1588 = vpop.xlane.xlu0 %1587
        %1589 = vadd.xlane.f32.xlu0 %v1568
        %v1590 = vpop.xlane.xlu0 %1589
        %1591 = vadd.xlane.f32.xlu0 %v1569
        %v1592 = vpop.xlane.xlu0 %1591
        %1593 = vadd.xlane.f32.xlu0 %v1570
        %v1594 = vpop.xlane.xlu0 %1593
        %1595 = vadd.xlane.f32.xlu0 %v1571
        %v1596 = vpop.xlane.xlu0 %1595
        %1597 = vadd.xlane.f32.xlu0 %v1572
        %v1598 = vpop.xlane.xlu0 %1597
        %1599 = vadd.xlane.f32.xlu0 %v1573
        %v1600 = vpop.xlane.xlu0 %1599
        %1601 = vadd.xlane.f32.xlu0 %v1574
        %v1602 = vpop.xlane.xlu0 %1601
        %1603 = vadd.xlane.f32.xlu0 %v1575
        %v1604 = vpop.xlane.xlu0 %1603
        %1605 = vadd.xlane.f32.xlu0 %v1576
        %v1606 = vpop.xlane.xlu0 %1605
        %1607 = vadd.xlane.f32.xlu0 %v1577
        %v1608 = vpop.xlane.xlu0 %1607
        %1609 = vadd.xlane.f32.xlu0 %v1578
        %v1610 = vpop.xlane.xlu0 %1609
        %v1611 = vmul.f32 %v1580, %v1546
        %v1612 = vmul.f32 %v1582, %v1546
        %v1613 = vmul.f32 %v1584, %v1546
        %v1614 = vmul.f32 %v1586, %v1546
        %v1615 = vmul.f32 %v1588, %v1546
        %v1616 = vmul.f32 %v1590, %v1546
        %v1617 = vmul.f32 %v1592, %v1546
        %v1618 = vmul.f32 %v1594, %v1546
        %v1619 = vmul.f32 %v1596, %v1546
        %v1620 = vmul.f32 %v1598, %v1546
        %v1621 = vmul.f32 %v1600, %v1546
        %v1622 = vmul.f32 %v1602, %v1546
        %v1623 = vmul.f32 %v1604, %v1546
        %v1624 = vmul.f32 %v1606, %v1546
        %v1625 = vmul.f32 %v1608, %v1546
        %v1626 = vmul.f32 %v1610, %v1546
        %v1627 = vmul.f32 %v1547, %v1547
        %v1628 = vmul.f32 %v1548, %v1548
        %v1629 = vmul.f32 %v1549, %v1549
        %v1630 = vmul.f32 %v1550, %v1550
        %v1631 = vmul.f32 %v1551, %v1551
        %v1632 = vmul.f32 %v1552, %v1552
        %v1633 = vmul.f32 %v1553, %v1553
        %v1634 = vmul.f32 %v1554, %v1554
        %v1635 = vmul.f32 %v1555, %v1555
        %v1636 = vmul.f32 %v1556, %v1556
        %v1637 = vmul.f32 %v1557, %v1557
        %v1638 = vmul.f32 %v1558, %v1558
        %v1639 = vmul.f32 %v1559, %v1559
        %v1640 = vmul.f32 %v1560, %v1560
        %v1641 = vmul.f32 %v1561, %v1561
        %v1642 = vmul.f32 %v1562, %v1562
        %v1643 = vsub.f32 %v1611, %v1627
        %v1644 = vsub.f32 %v1612, %v1628
        %v1645 = vsub.f32 %v1613, %v1629
        %v1646 = vsub.f32 %v1614, %v1630
        %v1647 = vsub.f32 %v1615, %v1631
        %v1648 = vsub.f32 %v1616, %v1632
        %v1649 = vsub.f32 %v1617, %v1633
        %v1650 = vsub.f32 %v1618, %v1634
        %v1651 = vsub.f32 %v1619, %v1635
        %v1652 = vsub.f32 %v1620, %v1636
        %v1653 = vsub.f32 %v1621, %v1637
        %v1654 = vsub.f32 %v1622, %v1638
        %v1655 = vsub.f32 %v1623, %v1639
        %v1656 = vsub.f32 %v1624, %v1640
        %v1657 = vsub.f32 %v1625, %v1641
        %v1658 = vsub.f32 %v1626, %v1642
        %v1659 = vmax.f32 %v1643, 0.0
        %v1660 = vmax.f32 %v1644, 0.0
        %v1661 = vmax.f32 %v1645, 0.0
        %v1662 = vmax.f32 %v1646, 0.0
        %v1663 = vmax.f32 %v1647, 0.0
        %v1664 = vmax.f32 %v1648, 0.0
        %v1665 = vmax.f32 %v1649, 0.0
        %v1666 = vmax.f32 %v1650, 0.0
        %v1667 = vmax.f32 %v1651, 0.0
        %v1668 = vmax.f32 %v1652, 0.0
        %v1669 = vmax.f32 %v1653, 0.0
        %v1670 = vmax.f32 %v1654, 0.0
        %v1671 = vmax.f32 %v1655, 0.0
        %v1672 = vmax.f32 %v1656, 0.0
        %v1673 = vmax.f32 %v1657, 0.0
        %v1674 = vmax.f32 %v1658, 0.0
        %v1675 = vadd.f32 %v1659, 1e-05
        %v1676 = vadd.f32 %v1660, 1e-05
        %v1677 = vadd.f32 %v1661, 1e-05
        %v1678 = vadd.f32 %v1662, 1e-05
        %v1679 = vadd.f32 %v1663, 1e-05
        %v1680 = vadd.f32 %v1664, 1e-05
        %v1681 = vadd.f32 %v1665, 1e-05
        %v1682 = vadd.f32 %v1666, 1e-05
        %v1683 = vadd.f32 %v1667, 1e-05
        %v1684 = vadd.f32 %v1668, 1e-05
        %v1685 = vadd.f32 %v1669, 1e-05
        %v1686 = vadd.f32 %v1670, 1e-05
        %v1687 = vadd.f32 %v1671, 1e-05
        %v1688 = vadd.f32 %v1672, 1e-05
        %v1689 = vadd.f32 %v1673, 1e-05
        %v1690 = vadd.f32 %v1674, 1e-05
        %v1691 = vrsqrt.pop %v1675
        %v1692 = vmul.f32 %v1691, %v1675
        %v1693 = vmul.f32 %v1692, %v1691
        %v1694 = vmul.f32 0.5, %v1693
        %v1695 = vsub.f32 1.5, %v1694
        %v1696 = vmul.f32 %v1691, %v1695
        %vm1697 = vweird.f32 %v1675
        %vm1698 = vweird.f32 %v1691
        %vm1699 = vmor %vm1697, %vm1698
        %v1700 = vsel %vm1699, %v1691, %v1696
        %v1701 = vrsqrt.pop %v1676
        %v1702 = vmul.f32 %v1701, %v1676
        %v1703 = vmul.f32 %v1702, %v1701
        %v1704 = vmul.f32 0.5, %v1703
        %v1705 = vsub.f32 1.5, %v1704
        %v1706 = vmul.f32 %v1701, %v1705
        %vm1707 = vweird.f32 %v1676
        %vm1708 = vweird.f32 %v1701
        %vm1709 = vmor %vm1707, %vm1708
        %v1710 = vsel %vm1709, %v1701, %v1706
        %v1711 = vrsqrt.pop %v1677
        %v1712 = vmul.f32 %v1711, %v1677
        %v1713 = vmul.f32 %v1712, %v1711
        %v1714 = vmul.f32 0.5, %v1713
        %v1715 = vsub.f32 1.5, %v1714
        %v1716 = vmul.f32 %v1711, %v1715
        %vm1717 = vweird.f32 %v1677
        %vm1718 = vweird.f32 %v1711
        %vm1719 = vmor %vm1717, %vm1718
        %v1720 = vsel %vm1719, %v1711, %v1716
        %v1721 = vrsqrt.pop %v1678
        %v1722 = vmul.f32 %v1721, %v1678
        %v1723 = vmul.f32 %v1722, %v1721
        %v1724 = vmul.f32 0.5, %v1723
        %v1725 = vsub.f32 1.5, %v1724
        %v1726 = vmul.f32 %v1721, %v1725
        %vm1727 = vweird.f32 %v1678
        %vm1728 = vweird.f32 %v1721
        %vm1729 = vmor %vm1727, %vm1728
        %v1730 = vsel %vm1729, %v1721, %v1726
        %v1731 = vrsqrt.pop %v1679
        %v1732 = vmul.f32 %v1731, %v1679
        %v1733 = vmul.f32 %v1732, %v1731
        %v1734 = vmul.f32 0.5, %v1733
        %v1735 = vsub.f32 1.5, %v1734
        %v1736 = vmul.f32 %v1731, %v1735
        %vm1737 = vweird.f32 %v1679
        %vm1738 = vweird.f32 %v1731
        %vm1739 = vmor %vm1737, %vm1738
        %v1740 = vsel %vm1739, %v1731, %v1736
        %v1741 = vrsqrt.pop %v1680
        %v1742 = vmul.f32 %v1741, %v1680
        %v1743 = vmul.f32 %v1742, %v1741
        %v1744 = vmul.f32 0.5, %v1743
        %v1745 = vsub.f32 1.5, %v1744
        %v1746 = vmul.f32 %v1741, %v1745
        %vm1747 = vweird.f32 %v1680
        %vm1748 = vweird.f32 %v1741
        %vm1749 = vmor %vm1747, %vm1748
        %v1750 = vsel %vm1749, %v1741, %v1746
        %v1751 = vrsqrt.pop %v1681
        %v1752 = vmul.f32 %v1751, %v1681
        %v1753 = vmul.f32 %v1752, %v1751
        %v1754 = vmul.f32 0.5, %v1753
        %v1755 = vsub.f32 1.5, %v1754
        %v1756 = vmul.f32 %v1751, %v1755
        %vm1757 = vweird.f32 %v1681
        %vm1758 = vweird.f32 %v1751
        %vm1759 = vmor %vm1757, %vm1758
        %v1760 = vsel %vm1759, %v1751, %v1756
        %v1761 = vrsqrt.pop %v1682
        %v1762 = vmul.f32 %v1761, %v1682
        %v1763 = vmul.f32 %v1762, %v1761
        %v1764 = vmul.f32 0.5, %v1763
        %v1765 = vsub.f32 1.5, %v1764
        %v1766 = vmul.f32 %v1761, %v1765
        %vm1767 = vweird.f32 %v1682
        %vm1768 = vweird.f32 %v1761
        %vm1769 = vmor %vm1767, %vm1768
        %v1770 = vsel %vm1769, %v1761, %v1766
        %v1771 = vrsqrt.pop %v1683
        %v1772 = vmul.f32 %v1771, %v1683
        %v1773 = vmul.f32 %v1772, %v1771
        %v1774 = vmul.f32 0.5, %v1773
        %v1775 = vsub.f32 1.5, %v1774
        %v1776 = vmul.f32 %v1771, %v1775
        %vm1777 = vweird.f32 %v1683
        %vm1778 = vweird.f32 %v1771
        %vm1779 = vmor %vm1777, %vm1778
        %v1780 = vsel %vm1779, %v1771, %v1776
        %v1781 = vrsqrt.pop %v1684
        %v1782 = vmul.f32 %v1781, %v1684
        %v1783 = vmul.f32 %v1782, %v1781
        %v1784 = vmul.f32 0.5, %v1783
        %v1785 = vsub.f32 1.5, %v1784
        %v1786 = vmul.f32 %v1781, %v1785
        %vm1787 = vweird.f32 %v1684
        %vm1788 = vweird.f32 %v1781
        %vm1789 = vmor %vm1787, %vm1788
        %v1790 = vsel %vm1789, %v1781, %v1786
        %v1791 = vrsqrt.pop %v1685
        %v1792 = vmul.f32 %v1791, %v1685
        %v1793 = vmul.f32 %v1792, %v1791
        %v1794 = vmul.f32 0.5, %v1793
        %v1795 = vsub.f32 1.5, %v1794
        %v1796 = vmul.f32 %v1791, %v1795
        %vm1797 = vweird.f32 %v1685
        %vm1798 = vweird.f32 %v1791
        %vm1799 = vmor %vm1797, %vm1798
        %v1800 = vsel %vm1799, %v1791, %v1796
        %v1801 = vrsqrt.pop %v1686
        %v1802 = vmul.f32 %v1801, %v1686
        %v1803 = vmul.f32 %v1802, %v1801
        %v1804 = vmul.f32 0.5, %v1803
        %v1805 = vsub.f32 1.5, %v1804
        %v1806 = vmul.f32 %v1801, %v1805
        %vm1807 = vweird.f32 %v1686
        %vm1808 = vweird.f32 %v1801
        %vm1809 = vmor %vm1807, %vm1808
        %v1810 = vsel %vm1809, %v1801, %v1806
        %v1811 = vrsqrt.pop %v1687
        %v1812 = vmul.f32 %v1811, %v1687
        %v1813 = vmul.f32 %v1812, %v1811
        %v1814 = vmul.f32 0.5, %v1813
        %v1815 = vsub.f32 1.5, %v1814
        %v1816 = vmul.f32 %v1811, %v1815
        %vm1817 = vweird.f32 %v1687
        %vm1818 = vweird.f32 %v1811
        %vm1819 = vmor %vm1817, %vm1818
        %v1820 = vsel %vm1819, %v1811, %v1816
        %v1821 = vrsqrt.pop %v1688
        %v1822 = vmul.f32 %v1821, %v1688
        %v1823 = vmul.f32 %v1822, %v1821
        %v1824 = vmul.f32 0.5, %v1823
        %v1825 = vsub.f32 1.5, %v1824
        %v1826 = vmul.f32 %v1821, %v1825
        %vm1827 = vweird.f32 %v1688
        %vm1828 = vweird.f32 %v1821
        %vm1829 = vmor %vm1827, %vm1828
        %v1830 = vsel %vm1829, %v1821, %v1826
        %v1831 = vrsqrt.pop %v1689
        %v1832 = vmul.f32 %v1831, %v1689
        %v1833 = vmul.f32 %v1832, %v1831
        %v1834 = vmul.f32 0.5, %v1833
        %v1835 = vsub.f32 1.5, %v1834
        %v1836 = vmul.f32 %v1831, %v1835
        %vm1837 = vweird.f32 %v1689
        %vm1838 = vweird.f32 %v1831
        %vm1839 = vmor %vm1837, %vm1838
        %v1840 = vsel %vm1839, %v1831, %v1836
        %v1841 = vrsqrt.pop %v1690
        %v1842 = vmul.f32 %v1841, %v1690
        %v1843 = vmul.f32 %v1842, %v1841
        %v1844 = vmul.f32 0.5, %v1843
        %v1845 = vsub.f32 1.5, %v1844
        %v1846 = vmul.f32 %v1841, %v1845
        %vm1847 = vweird.f32 %v1690
        %vm1848 = vweird.f32 %v1841
        %vm1849 = vmor %vm1847, %vm1848
        %v1850 = vsel %vm1849, %v1841, %v1846
        %v1851 = vmul.f32 %v1469, %v1700
        %v1852 = vmul.f32 %v1471, %v1710
        %v1853 = vmul.f32 %v1474, %v1720
        %v1854 = vmul.f32 %v1476, %v1730
        %v1855 = vmul.f32 %v1479, %v1740
        %v1856 = vmul.f32 %v1481, %v1750
        %v1857 = vmul.f32 %v1484, %v1760
        %v1858 = vmul.f32 %v1486, %v1770
        %v1859 = vmul.f32 %v1489, %v1780
        %v1860 = vmul.f32 %v1491, %v1790
        %v1861 = vmul.f32 %v1494, %v1800
        %v1862 = vmul.f32 %v1496, %v1810
        %v1863 = vmul.f32 %v1499, %v1820
        %v1864 = vmul.f32 %v1501, %v1830
        %v1865 = vmul.f32 %v1504, %v1840
        %v1866 = vmul.f32 %v1506, %v1850
        %v1867 = vmul.f32 %v1547, %v1700
        %v1868 = vmul.f32 %v1548, %v1710
        %v1869 = vmul.f32 %v1549, %v1720
        %v1870 = vmul.f32 %v1550, %v1730
        %v1871 = vmul.f32 %v1551, %v1740
        %v1872 = vmul.f32 %v1552, %v1750
        %v1873 = vmul.f32 %v1553, %v1760
        %v1874 = vmul.f32 %v1554, %v1770
        %v1875 = vmul.f32 %v1555, %v1780
        %v1876 = vmul.f32 %v1556, %v1790
        %v1877 = vmul.f32 %v1557, %v1800
        %v1878 = vmul.f32 %v1558, %v1810
        %v1879 = vmul.f32 %v1559, %v1820
        %v1880 = vmul.f32 %v1560, %v1830
        %v1881 = vmul.f32 %v1561, %v1840
        %v1882 = vmul.f32 %v1562, %v1850
        %v1883 = vsub.f32 %v1851, %v1867
        %v1884 = vsub.f32 %v1852, %v1868
        %v1885 = vsub.f32 %v1853, %v1869
        %v1886 = vsub.f32 %v1854, %v1870
        %v1887 = vsub.f32 %v1855, %v1871
        %v1888 = vsub.f32 %v1856, %v1872
        %v1889 = vsub.f32 %v1857, %v1873
        %v1890 = vsub.f32 %v1858, %v1874
        %v1891 = vsub.f32 %v1859, %v1875
        %v1892 = vsub.f32 %v1860, %v1876
        %v1893 = vsub.f32 %v1861, %v1877
        %v1894 = vsub.f32 %v1862, %v1878
        %v1895 = vsub.f32 %v1863, %v1879
        %v1896 = vsub.f32 %v1864, %v1880
        %v1897 = vsub.f32 %v1865, %v1881
        %v1898 = vsub.f32 %v1866, %v1882
        %v1900 = vperm.slane %v1309, 0
        %v1902 = vmul.f32 %v1883, %v1900
        %v1903 = vmul.f32 %v1884, %v1900
        %v1904 = vmul.f32 %v1885, %v1900
        %v1905 = vmul.f32 %v1886, %v1900
        %v1906 = vmul.f32 %v1887, %v1900
        %v1907 = vmul.f32 %v1888, %v1900
        %v1908 = vmul.f32 %v1889, %v1900
        %v1909 = vmul.f32 %v1890, %v1900
        %v1910 = vmul.f32 %v1891, %v1900
        %v1911 = vmul.f32 %v1892, %v1900
        %v1912 = vmul.f32 %v1893, %v1900
        %v1913 = vmul.f32 %v1894, %v1900
        %v1914 = vmul.f32 %v1895, %v1900
        %v1915 = vmul.f32 %v1896, %v1900
        %v1916 = vmul.f32 %v1897, %v1900
        %v1917 = vmul.f32 %v1898, %v1900
        %v1919 = vperm.slane %v1310, 0
        %v1921 = vadd.f32 %v1902, %v1919
        %v1922 = vadd.f32 %v1903, %v1919
        %v1923 = vadd.f32 %v1904, %v1919
        %v1924 = vadd.f32 %v1905, %v1919
        %v1925 = vadd.f32 %v1906, %v1919
        %v1926 = vadd.f32 %v1907, %v1919
        %v1927 = vadd.f32 %v1908, %v1919
        %v1928 = vadd.f32 %v1909, %v1919
        %v1929 = vadd.f32 %v1910, %v1919
        %v1930 = vadd.f32 %v1911, %v1919
        %v1931 = vadd.f32 %v1912, %v1919
        %v1932 = vadd.f32 %v1913, %v1919
        %v1933 = vadd.f32 %v1914, %v1919
        %v1934 = vadd.f32 %v1915, %v1919
        %v1935 = vadd.f32 %v1916, %v1919
        %v1936 = vadd.f32 %v1917, %v1919
        %v1937 = vmax.f32 %v1921, 0.0
        %v1938 = vmax.f32 %v1922, 0.0
        %v1939 = vmax.f32 %v1923, 0.0
        %v1940 = vmax.f32 %v1924, 0.0
        %v1941 = vmax.f32 %v1925, 0.0
        %v1942 = vmax.f32 %v1926, 0.0
        %v1943 = vmax.f32 %v1927, 0.0
        %v1944 = vmax.f32 %v1928, 0.0
        %v1945 = vmax.f32 %v1929, 0.0
        %v1946 = vmax.f32 %v1930, 0.0
        %v1947 = vmax.f32 %v1931, 0.0
        %v1948 = vmax.f32 %v1932, 0.0
        %v1949 = vmax.f32 %v1933, 0.0
        %v1950 = vmax.f32 %v1934, 0.0
        %v1951 = vmax.f32 %v1935, 0.0
        %v1952 = vmax.f32 %v1936, 0.0
        %v1953 = vpack.c.bf16 %v1937, %v1937
        %v1954 = vpack.c.bf16 %v1938, %v1938
        %v1955 = vpack.c.bf16 %v1939, %v1939
        %v1956 = vpack.c.bf16 %v1940, %v1940
        %v1957 = vpack.c.bf16 %v1941, %v1941
        %v1958 = vpack.c.bf16 %v1942, %v1942
        %v1959 = vpack.c.bf16 %v1943, %v1943
        %v1960 = vpack.c.bf16 %v1944, %v1944
        %v1961 = vpack.c.bf16 %v1945, %v1945
        %v1962 = vpack.c.bf16 %v1946, %v1946
        %v1963 = vpack.c.bf16 %v1947, %v1947
        %v1964 = vpack.c.bf16 %v1948, %v1948
        %v1965 = vpack.c.bf16 %v1949, %v1949
        %v1966 = vpack.c.bf16 %v1950, %v1950
        %v1967 = vpack.c.bf16 %v1951, %v1951
        %v1968 = vpack.c.bf16 %v1952, %v1952
        %1969 = vst [vmem:[%s414] sm:$0xf] %v1953
        %1970 = vst [vmem:[%s414 + $0x4] sm:$0xf] %v1954
        %1971 = vst [vmem:[%s414 + $0x8] sm:$0xf] %v1955
        %1972 = vst [vmem:[%s414 + $0xc] sm:$0xf] %v1956
        %1973 = vst [vmem:[%s414 + $0x10] sm:$0xf] %v1957
        %1974 = vst [vmem:[%s414 + $0x14] sm:$0xf] %v1958
        %1975 = vst [vmem:[%s414 + $0x18] sm:$0xf] %v1959
        %1976 = vst [vmem:[%s414 + $0x1c] sm:$0xf] %v1960
        %1977 = vst [vmem:[%s414 + $0x20] sm:$0xf] %v1961
        %1978 = vst [vmem:[%s414 + $0x24] sm:$0xf] %v1962
        %1979 = vst [vmem:[%s414 + $0x28] sm:$0xf] %v1963
        %1980 = vst [vmem:[%s414 + $0x2c] sm:$0xf] %v1964
        %1981 = vst [vmem:[%s414 + $0x30] sm:$0xf] %v1965
        %1982 = vst [vmem:[%s414 + $0x34] sm:$0xf] %v1966
        %1983 = vst [vmem:[%s414 + $0x38] sm:$0xf] %v1967
        %1984 = vst [vmem:[%s414 + $0x3c] sm:$0xf] %v1968
        %s1985 = sand.u32 %s230, 1
        %s1986 = scalar_lea.sflag [#allocation4], %s1985
        %s1987 = sand.u32 %s230, 1
        %s1988 = smul.addr %s1987, 64
        %s1989 = scalar_lea.vmem [#allocation11], %s1988
        // Predicated region
        $region77: #{tpu_custom_call.1} parent=55 // pred_check
          %p1990 = pneg %p240
        $region78: #{tpu_custom_call.1} parent=55 // pred_check_branch
          %1992 = sbr.rel (%p1990) target = $region80
        $region79: #{tpu_custom_call.1} parent=55 // pred_region
          %s1993 = smul.u32 16, %s28
          %1995 = vsyncadd %s1986, 0
          %s1996 = smul.addr %s1993, 4
          %s1997 = scalar_lea.hbm %s9, %s1996
          %s1998 = sshll.u32 %s1989, 4
          %s1999 = int_to_ptr.vmem [resolvable:$true] %s1998
          %s2000 = sshll.u32 %s1997, 4
          %s2001 = int_to_ptr.hbm [resolvable:$true] %s2000
          %2006 = dma.vmem_to_hbm [thread:$0]  %s1999, 1024, %s2001, %s1986, 64, 64, 4
        $region80: #{tpu_custom_call.1} parent=55 // pred_fallthru
          _
      $region56: #{tpu_custom_call.1} parent=5 // pred_fallthru
        _
      %p2007 = scmp.le.s32.totalorder 2, %s23
      // Predicated region
      $region81: #{tpu_custom_call.1} parent=5 // pred_check
        %p2008 = pneg %p2007
      $region82: #{tpu_custom_call.1} parent=5 // pred_check_branch
        %2010 = sbr.rel (%p2008) target = $region84
      $region83: #{tpu_custom_call.1} parent=5 // pred_region
        %s2011 = ssub.s32 %s23, 2
        // Predicated region
        $region85: #{tpu_custom_call.1} parent=83 // pred_check
          %p2012 = pneg %p246
        $region86: #{tpu_custom_call.1} parent=83 // pred_check_branch
          %2014 = sbr.rel (%p2012) target = $region88
        $region87: #{tpu_custom_call.1} parent=83 // pred_region
          %s2015 = sand.u32 %s231, 1
          %s2016 = scalar_lea.sflag [#allocation4], %s2015
          %s2017 = sand.u32 %s231, 1
          %s2018 = smul.addr %s2017, 64
          %s2019 = scalar_lea.vmem [#allocation11], %s2018
          %2021 = dma.done %s2016, 1024
        $region88: #{tpu_custom_call.1} parent=83 // pred_fallthru
          _
      $region84: #{tpu_custom_call.1} parent=5 // pred_fallthru
        _
    $region6: #{tpu_custom_call.1} parent=1 // loop_footer
      %s27 = sadd.s32 1, %s23
    $region7: #{tpu_custom_call.1} parent=1 // loop_footer_branch
      %22 = sbr.rel target = $region3
    $region8: #{tpu_custom_call.1} parent=1 // loop_exit
      _
    %2022 = vsyncpa [#allocation3], 1
    %s2023 = scalar_lea.sflag [#allocation3], 1
    %2024 = vsyncpa %s2023, 1
    %2025 = vsyncpa [#allocation6], 1
    %2026 = vsyncpa [#allocation9], 1
    %2027 = vsyncpa [#allocation4], 1
    %s2028 = scalar_lea.sflag [#allocation4], 1
    %2029 = vsyncpa %s2028, 1

</llo_original>
